<compile_context>
chip_gen: v6e
topology: v6e:2x2x1
jax: 0.10.0
libtpu: 0.0.40
codegen_flags: <defaults>
</compile_context>

<pallas_src>
import jax
import jax.numpy as jnp
from jax.experimental import pallas as pl
from jax.experimental.pallas import tpu as pltpu

# Matmul-operand dtype.  Kept float32 for numerical parity with the f32
# PyTorch reference (the pass is overhead-bound at these shapes, so bf16 buys
# nothing).  Accumulation is always f32 via preferred_element_type.
COMPUTE_DTYPE = jnp.float32


# --------------------------------------------------------------------------- #
# Fused decoder kernel (one batch element per grid step)
# --------------------------------------------------------------------------- #
def _decoder_kernel(x_ref, w0_ref, b0_ref, *refs):
    *layer_refs, o_ref = refs
    n_layers = len(layer_refs) // 2

    # ----- Conv1d(kernel_size=1) + ReLU ------------------------------------
    x = x_ref[0]                                             # (T0, in_dim) f32
    h = jnp.dot(x.astype(w0_ref.dtype), w0_ref[...],
                preferred_element_type=jnp.float32)
    h = jnp.maximum(h + b0_ref[...], 0.0)                    # (T0, h_dim)

    # Shared helper: build [x[u-1] | x[u] | x[u+1]] for the fused ConvT matmul.
    def shifted_cat(xin):
        L, cin = xin.shape
        zrow = jnp.zeros((1, cin), jnp.float32)
        x_prev = jnp.concatenate([zrow, xin[:L - 1, :]], axis=0)   # x[u-1]
        x_next = jnp.concatenate([xin[1:, :], zrow], axis=0)       # x[u+1]
        return jnp.concatenate([x_prev, xin, x_next], axis=1)      # (L, 3*cin)

    # ----- ConvTranspose1d(k=4, s=2, p=1) + ReLU, interleaved in time ------
    def upsample_relu(xin, wf_ref, bf_ref):
        L = xin.shape[0]
        cout = wf_ref.shape[1] // 2
        y = jnp.dot(shifted_cat(xin).astype(wf_ref.dtype), wf_ref[...],
                    preferred_element_type=jnp.float32) + bf_ref[...]
        y = jnp.maximum(y, 0.0)                                    # (L, 2*cout)

        # Interleave the two phases along time with a 0/1 permutation matmul:
        # blocked order zb = [evens ; odds]; interleaved row t <- blocked row
        # (t >> 1) + (t & 1) * L.  (Avoids lane-crossing reshapes.)
        zb = jnp.concatenate([y[:, :cout], y[:, cout:]], axis=0)   # (2L, cout)
        L2 = 2 * L
        t = jax.lax.broadcasted_iota(jnp.int32, (L2, L2), 0)
        s = jax.lax.broadcasted_iota(jnp.int32, (L2, L2), 1)
        perm = (s == ((t >> 1) + (t & 1) * L)).astype(jnp.float32)
        return jnp.dot(perm, zb, preferred_element_type=jnp.float32)  # (2L, cout)

    for i in range(n_layers - 1):                            # layers 1..5 (+ReLU)
        h = upsample_relu(h, layer_refs[2 * i], layer_refs[2 * i + 1])

    # ----- Final ConvTranspose1d (Cout=1), NO ReLU, lane-dense blocked out --
    wf = layer_refs[2 * (n_layers - 1)]
    bf = layer_refs[2 * (n_layers - 1) + 1]
    L = h.shape[0]                                           # e.g. 256
    y = jnp.dot(shifted_cat(h).astype(wf.dtype), wf[...],
                preferred_element_type=jnp.float32) + bf[...]    # (L, 2)
    # y[r, 0] = out[2r], y[r, 1] = out[2r+1]

    # Repack into blocked (T0, Q) with out_blk[u, q] = out[Q*u + q]
    #   = y[S*u + (q >> 1), q & 1],   S = Q // 2 = L // T0.
    # Built from iota masks + one tiny matmul (no lane reshape / transpose).
    T0, Q = o_ref.shape[1], o_ref.shape[2]
    S = Q // 2                                   # static python int, power of 2
    shift = S.bit_length() - 1
    r_idx = jax.lax.broadcasted_iota(jnp.int32, (L, Q), 0)
    q_idx = jax.lax.broadcasted_iota(jnp.int32, (L, Q), 1)
    sel = (r_idx & (S - 1)) == (q_idx >> 1)
    vals = jnp.where((q_idx & 1) == 0, y[:, 0:1], y[:, 1:2])       # (L, Q)
    m = jnp.where(sel, vals, 0.0)                                  # (L, Q)
    u_idx = jax.lax.broadcasted_iota(jnp.int32, (T0, L), 0)
    rr_idx = jax.lax.broadcasted_iota(jnp.int32, (T0, L), 1)
    gat = ((rr_idx >> shift) == u_idx).astype(jnp.float32)         # (T0, L)
    o_ref[0] = jnp.dot(gat, m, preferred_element_type=jnp.float32)  # (T0, Q)


# --------------------------------------------------------------------------- #
# Wrapper
# --------------------------------------------------------------------------- #
def decoder_forward(x_ncw, params):
    """x_ncw: (B, in_dim, T) exactly like the torch module.  Returns (B, 1, 64*T)."""
    B, in_dim, T0 = x_ncw.shape
    w0, b0 = params["in_proj"]
    layers = params["up_layers"]
    n_up = len(layers)
    T_out = T0 * (2 ** n_up)
    Q = T_out // T0                                          # == 2**n_up

    x_btc = jnp.transpose(x_ncw, (0, 2, 1))                  # (B, T0, in_dim)

    operands = [x_btc, w0, b0]
    in_specs = [
        pl.BlockSpec((1, T0, in_dim), lambda b: (b, 0, 0)),
        pl.BlockSpec(w0.shape, lambda b: (0, 0)),
        pl.BlockSpec(b0.shape, lambda b: (0, 0)),
    ]
    for wf, bf in layers:
        operands += [wf, bf]
        in_specs += [pl.BlockSpec(wf.shape, lambda b: (0, 0)),
                     pl.BlockSpec(bf.shape, lambda b: (0, 0))]

    out_blk = pl.pallas_call(
        _decoder_kernel,
        out_shape=jax.ShapeDtypeStruct((B, T0, Q), jnp.float32),
        grid=(B,),
        in_specs=in_specs,
        out_specs=pl.BlockSpec((1, T0, Q), lambda b: (b, 0, 0)),
        compiler_params=pltpu.CompilerParams(
            dimension_semantics=("parallel",)),
    )(*operands)

    # Blocked (B, T0, 2**n_up) -> (B, 1, T_out); row-major reshape is exactly
    # the time un-blocking (index = Q*u + q), done for free by XLA.
    return out_blk.reshape(B, 1, T_out)


# --------------------------------------------------------------------------- #
# Deterministic synthetic parameters (torch layouts) + kernel-layout prep
# --------------------------------------------------------------------------- #
def init_torch_params(key, in_dim, h_dim, n_up=6):
    keys = jax.random.split(key, 2 * (n_up + 1))

    def uniform(k, shape, fan_in):
        bound = 1.0 / (fan_in ** 0.5)
        return jax.random.uniform(k, shape, jnp.float32, -bound, bound)

    # Conv1d(in_dim, h_dim, k=1): weight (h_dim, in_dim, 1), bias (h_dim,)
    w_in = uniform(keys[0], (h_dim, in_dim, 1), in_dim)
    b_in = uniform(keys[1], (h_dim,), in_dim)
    convts = []
    for i in range(n_up):
        cout = h_dim if i < n_up - 1 else 1
        # ConvTranspose1d(h_dim, cout, 4): weight (h_dim, cout, 4), bias (cout,)
        w = uniform(keys[2 + 2 * i], (h_dim, cout, 4), h_dim)
        b = uniform(keys[3 + 2 * i], (cout,), h_dim)
        convts.append((w, b))
    return (w_in, b_in), convts


def prepare_params(torch_params, compute_dtype=COMPUTE_DTYPE):
    """Convert torch-layout weights into the fused kernel layouts."""
    (w_in, b_in), convts = torch_params
    w0 = jnp.transpose(w_in[:, :, 0], (1, 0)).astype(compute_dtype)   # (in_dim, h)
    b0 = b_in[None, :].astype(jnp.float32)                            # (1, h)
    layers = []
    for w, b in convts:
        cin, cout, _ = w.shape                      # torch ConvT layout (Cin, Cout, K)
        wk = jnp.transpose(w, (2, 0, 1))            # (K, Cin, Cout)
        zeros = jnp.zeros((cin, cout), jnp.float32)
        # even[u] = x[u-1]@W3 + x[u]@W1 ;  odd[u] = x[u]@W2 + x[u+1]@W0
        w_even = jnp.concatenate([wk[3], wk[1], zeros], axis=0)       # rows: prev|cur|next
        w_odd = jnp.concatenate([zeros, wk[2], wk[0]], axis=0)
        wf = jnp.concatenate([w_even, w_odd], axis=1).astype(compute_dtype)  # (3Cin, 2Cout)
        bf = jnp.concatenate([b, b], axis=0)[None, :].astype(jnp.float32)    # (1, 2Cout)
        layers.append((wf, bf))
    return {"in_proj": (w0, b0), "up_layers": layers}


# --------------------------------------------------------------------------- #
# Pure-XLA reference (torch semantics, f32, HIGHEST precision)
# --------------------------------------------------------------------------- #
def decoder_reference(x_ncw, torch_params):
    (w_in, b_in), convts = torch_params
    y = jnp.einsum("bct,oc->bot", x_ncw, w_in[:, :, 0],
                   precision=jax.lax.Precision.HIGHEST) + b_in[None, :, None]
    y = jnp.maximum(y, 0.0)
    n = len(convts)
    for i, (w, b) in enumerate(convts):
        # ConvTranspose1d(k=4, s=2, p=1) == lhs-dilated conv with the spatially
        # flipped, channel-swapped kernel and padding k-1-p = 2.
        rhs = jnp.transpose(jnp.flip(w, axis=2), (1, 0, 2))     # (Cout, Cin, K)
        y = jax.lax.conv_general_dilated(
            y, rhs, window_strides=(1,), padding=[(2, 2)], lhs_dilation=(2,),
            dimension_numbers=("NCH", "OIH", "NCH"),
            precision=jax.lax.Precision.HIGHEST) + b[None, :, None]
        if i < n - 1:
            y = jnp.maximum(y, 0.0)
    return y


if __name__ == "__main__":
    in_dim, h_dim = 4, 32          # Decoder(in_dim=4, h_dim=32)
    B, T0 = 2, 8                   # input: (batch=2, channels=in_dim, time=8)

    key = jax.random.PRNGKey(0)
    kp, kx = jax.random.split(key)
    torch_params = init_torch_params(kp, in_dim, h_dim)
    params = prepare_params(torch_params)
    x = jax.random.normal(kx, (B, in_dim, T0), jnp.float32)

    fwd = jax.jit(lambda inp: decoder_forward(inp, params))
    out = jax.block_until_ready(fwd(x))

    assert out.shape == (B, 1, T0 * 64), out.shape
    assert bool(jnp.all(jnp.isfinite(out)))

    ref = decoder_reference(x, torch_params)
    rel = float(jnp.linalg.norm(out - ref) / (jnp.linalg.norm(ref) + 1e-12))
    assert rel < 5e-2, f"relative error vs reference: {rel}"

    print("KERNEL_OK")
</pallas_src>

<mosaic_0001>
module attributes {stable_mosaic.version = 11 : i64} {
  func.func @_decoder_kernel(%arg0: i32, %arg1: memref<1x8x4xf32, #tpu.memory_space<vmem>>, %arg2: memref<4x32xf32, #tpu.memory_space<vmem>>, %arg3: memref<1x32xf32, #tpu.memory_space<vmem>>, %arg4: memref<96x64xf32, #tpu.memory_space<vmem>>, %arg5: memref<1x64xf32, #tpu.memory_space<vmem>>, %arg6: memref<96x64xf32, #tpu.memory_space<vmem>>, %arg7: memref<1x64xf32, #tpu.memory_space<vmem>>, %arg8: memref<96x64xf32, #tpu.memory_space<vmem>>, %arg9: memref<1x64xf32, #tpu.memory_space<vmem>>, %arg10: memref<96x64xf32, #tpu.memory_space<vmem>>, %arg11: memref<1x64xf32, #tpu.memory_space<vmem>>, %arg12: memref<96x64xf32, #tpu.memory_space<vmem>>, %arg13: memref<1x64xf32, #tpu.memory_space<vmem>>, %arg14: memref<96x2xf32, #tpu.memory_space<vmem>>, %arg15: memref<1x2xf32, #tpu.memory_space<vmem>>, %arg16: memref<1x8x64xf32, #tpu.memory_space<vmem>>) attributes {dimension_semantics = [#tpu.dimension_semantics<parallel>], iteration_bounds = array<i64: 2>, scalar_prefetch = 0 : i64, scratch_operands = 0 : i64, tpu.core_type = #tpu.core_type<tc>, window_params = [{transform_indices = @transform_0, window_bounds = array<i64: 1, 8, 4>}, {pipeline_mode = #tpu.pipeline_mode<synchronous>, transform_indices = @transform_1, window_bounds = array<i64: 4, 32>}, {pipeline_mode = #tpu.pipeline_mode<synchronous>, transform_indices = @transform_2, window_bounds = array<i64: 1, 32>}, {pipeline_mode = #tpu.pipeline_mode<synchronous>, transform_indices = @transform_3, window_bounds = array<i64: 96, 64>}, {pipeline_mode = #tpu.pipeline_mode<synchronous>, transform_indices = @transform_4, window_bounds = array<i64: 1, 64>}, {pipeline_mode = #tpu.pipeline_mode<synchronous>, transform_indices = @transform_5, window_bounds = array<i64: 96, 64>}, {pipeline_mode = #tpu.pipeline_mode<synchronous>, transform_indices = @transform_6, window_bounds = array<i64: 1, 64>}, {pipeline_mode = #tpu.pipeline_mode<synchronous>, transform_indices = @transform_7, window_bounds = array<i64: 96, 64>}, {pipeline_mode = #tpu.pipeline_mode<synchronous>, transform_indices = @transform_8, window_bounds = array<i64: 1, 64>}, {pipeline_mode = #tpu.pipeline_mode<synchronous>, transform_indices = @transform_9, window_bounds = array<i64: 96, 64>}, {pipeline_mode = #tpu.pipeline_mode<synchronous>, transform_indices = @transform_10, window_bounds = array<i64: 1, 64>}, {pipeline_mode = #tpu.pipeline_mode<synchronous>, transform_indices = @transform_11, window_bounds = array<i64: 96, 64>}, {pipeline_mode = #tpu.pipeline_mode<synchronous>, transform_indices = @transform_12, window_bounds = array<i64: 1, 64>}, {pipeline_mode = #tpu.pipeline_mode<synchronous>, transform_indices = @transform_13, window_bounds = array<i64: 96, 2>}, {pipeline_mode = #tpu.pipeline_mode<synchronous>, transform_indices = @transform_14, window_bounds = array<i64: 1, 2>}, {transform_indices = @transform_15, window_bounds = array<i64: 1, 8, 64>}]} {
    %c0 = arith.constant 0 : index
    %c0_0 = arith.constant 0 : index
    %c0_1 = arith.constant 0 : index
    %0 = vector.load %arg1[%c0, %c0_0, %c0_1] : memref<1x8x4xf32, #tpu.memory_space<vmem>>, vector<1x8x4xf32>
    %1 = vector.shape_cast %0 : vector<1x8x4xf32> to vector<8x4xf32>
    %c0_2 = arith.constant 0 : index
    %c0_3 = arith.constant 0 : index
    %2 = vector.load %arg2[%c0_2, %c0_3] : memref<4x32xf32, #tpu.memory_space<vmem>>, vector<4x32xf32>
    %cst = arith.constant dense<0.000000e+00> : vector<8x32xf32>
    %3 = tpu.matmul %1, %2, %cst {dimension_numbers = #tpu.dot_dimension_numbers<[1], [0], [0], [1], [0, 0, 1, 1], [], []>} : vector<8x4xf32>, vector<4x32xf32>, vector<8x32xf32> -> vector<8x32xf32>
    %c0_4 = arith.constant 0 : index
    %c0_5 = arith.constant 0 : index
    %4 = vector.load %arg3[%c0_4, %c0_5] : memref<1x32xf32, #tpu.memory_space<vmem>>, vector<1x32xf32>
    %5 = vector.broadcast %4 : vector<1x32xf32> to vector<8x32xf32>
    %6 = arith.addf %3, %5 : vector<8x32xf32>
    %cst_6 = arith.constant 0.000000e+00 : f32
    %7 = vector.broadcast %cst_6 : f32 to vector<8x32xf32>
    %8 = arith.maximumf %6, %7 : vector<8x32xf32>
    %cst_7 = arith.constant 0.000000e+00 : f32
    %9 = vector.broadcast %cst_7 : f32 to vector<1x32xf32>
    %10 = vector.extract_strided_slice %8 {offsets = [0, 0], sizes = [7, 32], strides = [1, 1]} : vector<8x32xf32> to vector<7x32xf32>
    %11 = tpu.concatenate %9, %10 in 0 : vector<1x32xf32>, vector<7x32xf32> -> vector<8x32xf32>
    %12 = vector.extract_strided_slice %8 {offsets = [1, 0], sizes = [7, 32], strides = [1, 1]} : vector<8x32xf32> to vector<7x32xf32>
    %13 = tpu.concatenate %12, %9 in 0 : vector<7x32xf32>, vector<1x32xf32> -> vector<8x32xf32>
    %14 = tpu.concatenate %11, %8, %13 in 1 : vector<8x32xf32>, vector<8x32xf32>, vector<8x32xf32> -> vector<8x96xf32>
    %c0_8 = arith.constant 0 : index
    %c0_9 = arith.constant 0 : index
    %15 = vector.load %arg4[%c0_8, %c0_9] : memref<96x64xf32, #tpu.memory_space<vmem>>, vector<96x64xf32>
    %cst_10 = arith.constant dense<0.000000e+00> : vector<8x64xf32>
    %16 = tpu.matmul %14, %15, %cst_10 {dimension_numbers = #tpu.dot_dimension_numbers<[1], [0], [0], [1], [0, 0, 1, 1], [], []>} : vector<8x96xf32>, vector<96x64xf32>, vector<8x64xf32> -> vector<8x64xf32>
    %c0_11 = arith.constant 0 : index
    %c0_12 = arith.constant 0 : index
    %17 = vector.load %arg5[%c0_11, %c0_12] : memref<1x64xf32, #tpu.memory_space<vmem>>, vector<1x64xf32>
    %18 = vector.broadcast %17 : vector<1x64xf32> to vector<8x64xf32>
    %19 = arith.addf %16, %18 : vector<8x64xf32>
    %cst_13 = arith.constant 0.000000e+00 : f32
    %20 = vector.broadcast %cst_13 : f32 to vector<8x64xf32>
    %21 = arith.maximumf %19, %20 : vector<8x64xf32>
    %22 = vector.extract_strided_slice %21 {offsets = [0, 0], sizes = [8, 32], strides = [1, 1]} : vector<8x64xf32> to vector<8x32xf32>
    %23 = vector.extract_strided_slice %21 {offsets = [0, 32], sizes = [8, 32], strides = [1, 1]} : vector<8x64xf32> to vector<8x32xf32>
    %24 = tpu.concatenate %22, %23 in 0 : vector<8x32xf32>, vector<8x32xf32> -> vector<16x32xf32>
    %25 = tpu.iota {dimensions = array<i32: 0>} : vector<16x16xi32>
    %26 = tpu.iota {dimensions = array<i32: 1>} : vector<16x16xi32>
    %c1_i32 = arith.constant 1 : i32
    %27 = vector.broadcast %c1_i32 : i32 to vector<16x16xi32>
    %28 = arith.shrsi %25, %27 : vector<16x16xi32>
    %c1_i32_14 = arith.constant 1 : i32
    %29 = vector.broadcast %c1_i32_14 : i32 to vector<16x16xi32>
    %30 = arith.andi %25, %29 : vector<16x16xi32>
    %c8_i32 = arith.constant 8 : i32
    %31 = vector.broadcast %c8_i32 : i32 to vector<16x16xi32>
    %32 = arith.muli %30, %31 : vector<16x16xi32>
    %33 = arith.addi %28, %32 : vector<16x16xi32>
    %34 = arith.cmpi eq, %26, %33 : vector<16x16xi32>
    %35 = arith.extui %34 : vector<16x16xi1> to vector<16x16xi32>
    %36 = arith.sitofp %35 : vector<16x16xi32> to vector<16x16xf32>
    %cst_15 = arith.constant dense<0.000000e+00> : vector<16x32xf32>
    %37 = tpu.matmul %36, %24, %cst_15 {dimension_numbers = #tpu.dot_dimension_numbers<[1], [0], [0], [1], [0, 0, 1, 1], [], []>} : vector<16x16xf32>, vector<16x32xf32>, vector<16x32xf32> -> vector<16x32xf32>
    %cst_16 = arith.constant 0.000000e+00 : f32
    %38 = vector.broadcast %cst_16 : f32 to vector<1x32xf32>
    %39 = vector.extract_strided_slice %37 {offsets = [0, 0], sizes = [15, 32], strides = [1, 1]} : vector<16x32xf32> to vector<15x32xf32>
    %40 = tpu.concatenate %38, %39 in 0 : vector<1x32xf32>, vector<15x32xf32> -> vector<16x32xf32>
    %41 = vector.extract_strided_slice %37 {offsets = [1, 0], sizes = [15, 32], strides = [1, 1]} : vector<16x32xf32> to vector<15x32xf32>
    %42 = tpu.concatenate %41, %38 in 0 : vector<15x32xf32>, vector<1x32xf32> -> vector<16x32xf32>
    %43 = tpu.concatenate %40, %37, %42 in 1 : vector<16x32xf32>, vector<16x32xf32>, vector<16x32xf32> -> vector<16x96xf32>
    %c0_17 = arith.constant 0 : index
    %c0_18 = arith.constant 0 : index
    %44 = vector.load %arg6[%c0_17, %c0_18] : memref<96x64xf32, #tpu.memory_space<vmem>>, vector<96x64xf32>
    %cst_19 = arith.constant dense<0.000000e+00> : vector<16x64xf32>
    %45 = tpu.matmul %43, %44, %cst_19 {dimension_numbers = #tpu.dot_dimension_numbers<[1], [0], [0], [1], [0, 0, 1, 1], [], []>} : vector<16x96xf32>, vector<96x64xf32>, vector<16x64xf32> -> vector<16x64xf32>
    %c0_20 = arith.constant 0 : index
    %c0_21 = arith.constant 0 : index
    %46 = vector.load %arg7[%c0_20, %c0_21] : memref<1x64xf32, #tpu.memory_space<vmem>>, vector<1x64xf32>
    %47 = vector.broadcast %46 : vector<1x64xf32> to vector<16x64xf32>
    %48 = arith.addf %45, %47 : vector<16x64xf32>
    %cst_22 = arith.constant 0.000000e+00 : f32
    %49 = vector.broadcast %cst_22 : f32 to vector<16x64xf32>
    %50 = arith.maximumf %48, %49 : vector<16x64xf32>
    %51 = vector.extract_strided_slice %50 {offsets = [0, 0], sizes = [16, 32], strides = [1, 1]} : vector<16x64xf32> to vector<16x32xf32>
    %52 = vector.extract_strided_slice %50 {offsets = [0, 32], sizes = [16, 32], strides = [1, 1]} : vector<16x64xf32> to vector<16x32xf32>
    %53 = tpu.concatenate %51, %52 in 0 : vector<16x32xf32>, vector<16x32xf32> -> vector<32x32xf32>
    %54 = tpu.iota {dimensions = array<i32: 0>} : vector<32x32xi32>
    %55 = tpu.iota {dimensions = array<i32: 1>} : vector<32x32xi32>
    %c1_i32_23 = arith.constant 1 : i32
    %56 = vector.broadcast %c1_i32_23 : i32 to vector<32x32xi32>
    %57 = arith.shrsi %54, %56 : vector<32x32xi32>
    %c1_i32_24 = arith.constant 1 : i32
    %58 = vector.broadcast %c1_i32_24 : i32 to vector<32x32xi32>
    %59 = arith.andi %54, %58 : vector<32x32xi32>
    %c16_i32 = arith.constant 16 : i32
    %60 = vector.broadcast %c16_i32 : i32 to vector<32x32xi32>
    %61 = arith.muli %59, %60 : vector<32x32xi32>
    %62 = arith.addi %57, %61 : vector<32x32xi32>
    %63 = arith.cmpi eq, %55, %62 : vector<32x32xi32>
    %64 = arith.extui %63 : vector<32x32xi1> to vector<32x32xi32>
    %65 = arith.sitofp %64 : vector<32x32xi32> to vector<32x32xf32>
    %cst_25 = arith.constant dense<0.000000e+00> : vector<32x32xf32>
    %66 = tpu.matmul %65, %53, %cst_25 {dimension_numbers = #tpu.dot_dimension_numbers<[1], [0], [0], [1], [0, 0, 1, 1], [], []>} : vector<32x32xf32>, vector<32x32xf32>, vector<32x32xf32> -> vector<32x32xf32>
    %cst_26 = arith.constant 0.000000e+00 : f32
    %67 = vector.broadcast %cst_26 : f32 to vector<1x32xf32>
    %68 = vector.extract_strided_slice %66 {offsets = [0, 0], sizes = [31, 32], strides = [1, 1]} : vector<32x32xf32> to vector<31x32xf32>
    %69 = tpu.concatenate %67, %68 in 0 : vector<1x32xf32>, vector<31x32xf32> -> vector<32x32xf32>
    %70 = vector.extract_strided_slice %66 {offsets = [1, 0], sizes = [31, 32], strides = [1, 1]} : vector<32x32xf32> to vector<31x32xf32>
    %71 = tpu.concatenate %70, %67 in 0 : vector<31x32xf32>, vector<1x32xf32> -> vector<32x32xf32>
    %72 = tpu.concatenate %69, %66, %71 in 1 : vector<32x32xf32>, vector<32x32xf32>, vector<32x32xf32> -> vector<32x96xf32>
    %c0_27 = arith.constant 0 : index
    %c0_28 = arith.constant 0 : index
    %73 = vector.load %arg8[%c0_27, %c0_28] : memref<96x64xf32, #tpu.memory_space<vmem>>, vector<96x64xf32>
    %cst_29 = arith.constant dense<0.000000e+00> : vector<32x64xf32>
    %74 = tpu.matmul %72, %73, %cst_29 {dimension_numbers = #tpu.dot_dimension_numbers<[1], [0], [0], [1], [0, 0, 1, 1], [], []>} : vector<32x96xf32>, vector<96x64xf32>, vector<32x64xf32> -> vector<32x64xf32>
    %c0_30 = arith.constant 0 : index
    %c0_31 = arith.constant 0 : index
    %75 = vector.load %arg9[%c0_30, %c0_31] : memref<1x64xf32, #tpu.memory_space<vmem>>, vector<1x64xf32>
    %76 = vector.broadcast %75 : vector<1x64xf32> to vector<32x64xf32>
    %77 = arith.addf %74, %76 : vector<32x64xf32>
    %cst_32 = arith.constant 0.000000e+00 : f32
    %78 = vector.broadcast %cst_32 : f32 to vector<32x64xf32>
    %79 = arith.maximumf %77, %78 : vector<32x64xf32>
    %80 = vector.extract_strided_slice %79 {offsets = [0, 0], sizes = [32, 32], strides = [1, 1]} : vector<32x64xf32> to vector<32x32xf32>
    %81 = vector.extract_strided_slice %79 {offsets = [0, 32], sizes = [32, 32], strides = [1, 1]} : vector<32x64xf32> to vector<32x32xf32>
    %82 = tpu.concatenate %80, %81 in 0 : vector<32x32xf32>, vector<32x32xf32> -> vector<64x32xf32>
    %83 = tpu.iota {dimensions = array<i32: 0>} : vector<64x64xi32>
    %84 = tpu.iota {dimensions = array<i32: 1>} : vector<64x64xi32>
    %c1_i32_33 = arith.constant 1 : i32
    %85 = vector.broadcast %c1_i32_33 : i32 to vector<64x64xi32>
    %86 = arith.shrsi %83, %85 : vector<64x64xi32>
    %c1_i32_34 = arith.constant 1 : i32
    %87 = vector.broadcast %c1_i32_34 : i32 to vector<64x64xi32>
    %88 = arith.andi %83, %87 : vector<64x64xi32>
    %c32_i32 = arith.constant 32 : i32
    %89 = vector.broadcast %c32_i32 : i32 to vector<64x64xi32>
    %90 = arith.muli %88, %89 : vector<64x64xi32>
    %91 = arith.addi %86, %90 : vector<64x64xi32>
    %92 = arith.cmpi eq, %84, %91 : vector<64x64xi32>
    %93 = arith.extui %92 : vector<64x64xi1> to vector<64x64xi32>
    %94 = arith.sitofp %93 : vector<64x64xi32> to vector<64x64xf32>
    %cst_35 = arith.constant dense<0.000000e+00> : vector<64x32xf32>
    %95 = tpu.matmul %94, %82, %cst_35 {dimension_numbers = #tpu.dot_dimension_numbers<[1], [0], [0], [1], [0, 0, 1, 1], [], []>} : vector<64x64xf32>, vector<64x32xf32>, vector<64x32xf32> -> vector<64x32xf32>
    %cst_36 = arith.constant 0.000000e+00 : f32
    %96 = vector.broadcast %cst_36 : f32 to vector<1x32xf32>
    %97 = vector.extract_strided_slice %95 {offsets = [0, 0], sizes = [63, 32], strides = [1, 1]} : vector<64x32xf32> to vector<63x32xf32>
    %98 = tpu.concatenate %96, %97 in 0 : vector<1x32xf32>, vector<63x32xf32> -> vector<64x32xf32>
    %99 = vector.extract_strided_slice %95 {offsets = [1, 0], sizes = [63, 32], strides = [1, 1]} : vector<64x32xf32> to vector<63x32xf32>
    %100 = tpu.concatenate %99, %96 in 0 : vector<63x32xf32>, vector<1x32xf32> -> vector<64x32xf32>
    %101 = tpu.concatenate %98, %95, %100 in 1 : vector<64x32xf32>, vector<64x32xf32>, vector<64x32xf32> -> vector<64x96xf32>
    %c0_37 = arith.constant 0 : index
    %c0_38 = arith.constant 0 : index
    %102 = vector.load %arg10[%c0_37, %c0_38] : memref<96x64xf32, #tpu.memory_space<vmem>>, vector<96x64xf32>
    %cst_39 = arith.constant dense<0.000000e+00> : vector<64x64xf32>
    %103 = tpu.matmul %101, %102, %cst_39 {dimension_numbers = #tpu.dot_dimension_numbers<[1], [0], [0], [1], [0, 0, 1, 1], [], []>} : vector<64x96xf32>, vector<96x64xf32>, vector<64x64xf32> -> vector<64x64xf32>
    %c0_40 = arith.constant 0 : index
    %c0_41 = arith.constant 0 : index
    %104 = vector.load %arg11[%c0_40, %c0_41] : memref<1x64xf32, #tpu.memory_space<vmem>>, vector<1x64xf32>
    %105 = vector.broadcast %104 : vector<1x64xf32> to vector<64x64xf32>
    %106 = arith.addf %103, %105 : vector<64x64xf32>
    %cst_42 = arith.constant 0.000000e+00 : f32
    %107 = vector.broadcast %cst_42 : f32 to vector<64x64xf32>
    %108 = arith.maximumf %106, %107 : vector<64x64xf32>
    %109 = vector.extract_strided_slice %108 {offsets = [0, 0], sizes = [64, 32], strides = [1, 1]} : vector<64x64xf32> to vector<64x32xf32>
    %110 = vector.extract_strided_slice %108 {offsets = [0, 32], sizes = [64, 32], strides = [1, 1]} : vector<64x64xf32> to vector<64x32xf32>
    %111 = tpu.concatenate %109, %110 in 0 : vector<64x32xf32>, vector<64x32xf32> -> vector<128x32xf32>
    %112 = tpu.iota {dimensions = array<i32: 0>} : vector<128x128xi32>
    %113 = tpu.iota {dimensions = array<i32: 1>} : vector<128x128xi32>
    %c1_i32_43 = arith.constant 1 : i32
    %114 = vector.broadcast %c1_i32_43 : i32 to vector<128x128xi32>
    %115 = arith.shrsi %112, %114 : vector<128x128xi32>
    %c1_i32_44 = arith.constant 1 : i32
    %116 = vector.broadcast %c1_i32_44 : i32 to vector<128x128xi32>
    %117 = arith.andi %112, %116 : vector<128x128xi32>
    %c64_i32 = arith.constant 64 : i32
    %118 = vector.broadcast %c64_i32 : i32 to vector<128x128xi32>
    %119 = arith.muli %117, %118 : vector<128x128xi32>
    %120 = arith.addi %115, %119 : vector<128x128xi32>
    %121 = arith.cmpi eq, %113, %120 : vector<128x128xi32>
    %122 = arith.extui %121 : vector<128x128xi1> to vector<128x128xi32>
    %123 = arith.sitofp %122 : vector<128x128xi32> to vector<128x128xf32>
    %cst_45 = arith.constant dense<0.000000e+00> : vector<128x32xf32>
    %124 = tpu.matmul %123, %111, %cst_45 {dimension_numbers = #tpu.dot_dimension_numbers<[1], [0], [0], [1], [0, 0, 1, 1], [], []>} : vector<128x128xf32>, vector<128x32xf32>, vector<128x32xf32> -> vector<128x32xf32>
    %cst_46 = arith.constant 0.000000e+00 : f32
    %125 = vector.broadcast %cst_46 : f32 to vector<1x32xf32>
    %126 = vector.extract_strided_slice %124 {offsets = [0, 0], sizes = [127, 32], strides = [1, 1]} : vector<128x32xf32> to vector<127x32xf32>
    %127 = tpu.concatenate %125, %126 in 0 : vector<1x32xf32>, vector<127x32xf32> -> vector<128x32xf32>
    %128 = vector.extract_strided_slice %124 {offsets = [1, 0], sizes = [127, 32], strides = [1, 1]} : vector<128x32xf32> to vector<127x32xf32>
    %129 = tpu.concatenate %128, %125 in 0 : vector<127x32xf32>, vector<1x32xf32> -> vector<128x32xf32>
    %130 = tpu.concatenate %127, %124, %129 in 1 : vector<128x32xf32>, vector<128x32xf32>, vector<128x32xf32> -> vector<128x96xf32>
    %c0_47 = arith.constant 0 : index
    %c0_48 = arith.constant 0 : index
    %131 = vector.load %arg12[%c0_47, %c0_48] : memref<96x64xf32, #tpu.memory_space<vmem>>, vector<96x64xf32>
    %cst_49 = arith.constant dense<0.000000e+00> : vector<128x64xf32>
    %132 = tpu.matmul %130, %131, %cst_49 {dimension_numbers = #tpu.dot_dimension_numbers<[1], [0], [0], [1], [0, 0, 1, 1], [], []>} : vector<128x96xf32>, vector<96x64xf32>, vector<128x64xf32> -> vector<128x64xf32>
    %c0_50 = arith.constant 0 : index
    %c0_51 = arith.constant 0 : index
    %133 = vector.load %arg13[%c0_50, %c0_51] : memref<1x64xf32, #tpu.memory_space<vmem>>, vector<1x64xf32>
    %134 = vector.broadcast %133 : vector<1x64xf32> to vector<128x64xf32>
    %135 = arith.addf %132, %134 : vector<128x64xf32>
    %cst_52 = arith.constant 0.000000e+00 : f32
    %136 = vector.broadcast %cst_52 : f32 to vector<128x64xf32>
    %137 = arith.maximumf %135, %136 : vector<128x64xf32>
    %138 = vector.extract_strided_slice %137 {offsets = [0, 0], sizes = [128, 32], strides = [1, 1]} : vector<128x64xf32> to vector<128x32xf32>
    %139 = vector.extract_strided_slice %137 {offsets = [0, 32], sizes = [128, 32], strides = [1, 1]} : vector<128x64xf32> to vector<128x32xf32>
    %140 = tpu.concatenate %138, %139 in 0 : vector<128x32xf32>, vector<128x32xf32> -> vector<256x32xf32>
    %141 = tpu.iota {dimensions = array<i32: 0>} : vector<256x256xi32>
    %142 = tpu.iota {dimensions = array<i32: 1>} : vector<256x256xi32>
    %c1_i32_53 = arith.constant 1 : i32
    %143 = vector.broadcast %c1_i32_53 : i32 to vector<256x256xi32>
    %144 = arith.shrsi %141, %143 : vector<256x256xi32>
    %c1_i32_54 = arith.constant 1 : i32
    %145 = vector.broadcast %c1_i32_54 : i32 to vector<256x256xi32>
    %146 = arith.andi %141, %145 : vector<256x256xi32>
    %c128_i32 = arith.constant 128 : i32
    %147 = vector.broadcast %c128_i32 : i32 to vector<256x256xi32>
    %148 = arith.muli %146, %147 : vector<256x256xi32>
    %149 = arith.addi %144, %148 : vector<256x256xi32>
    %150 = arith.cmpi eq, %142, %149 : vector<256x256xi32>
    %151 = arith.extui %150 : vector<256x256xi1> to vector<256x256xi32>
    %152 = arith.sitofp %151 : vector<256x256xi32> to vector<256x256xf32>
    %cst_55 = arith.constant dense<0.000000e+00> : vector<256x32xf32>
    %153 = tpu.matmul %152, %140, %cst_55 {dimension_numbers = #tpu.dot_dimension_numbers<[1], [0], [0], [1], [0, 0, 1, 1], [], []>} : vector<256x256xf32>, vector<256x32xf32>, vector<256x32xf32> -> vector<256x32xf32>
    %cst_56 = arith.constant 0.000000e+00 : f32
    %154 = vector.broadcast %cst_56 : f32 to vector<1x32xf32>
    %155 = vector.extract_strided_slice %153 {offsets = [0, 0], sizes = [255, 32], strides = [1, 1]} : vector<256x32xf32> to vector<255x32xf32>
    %156 = tpu.concatenate %154, %155 in 0 : vector<1x32xf32>, vector<255x32xf32> -> vector<256x32xf32>
    %157 = vector.extract_strided_slice %153 {offsets = [1, 0], sizes = [255, 32], strides = [1, 1]} : vector<256x32xf32> to vector<255x32xf32>
    %158 = tpu.concatenate %157, %154 in 0 : vector<255x32xf32>, vector<1x32xf32> -> vector<256x32xf32>
    %159 = tpu.concatenate %156, %153, %158 in 1 : vector<256x32xf32>, vector<256x32xf32>, vector<256x32xf32> -> vector<256x96xf32>
    %c0_57 = arith.constant 0 : index
    %c0_58 = arith.constant 0 : index
    %160 = vector.load %arg14[%c0_57, %c0_58] : memref<96x2xf32, #tpu.memory_space<vmem>>, vector<96x2xf32>
    %cst_59 = arith.constant dense<0.000000e+00> : vector<256x2xf32>
    %161 = tpu.matmul %159, %160, %cst_59 {dimension_numbers = #tpu.dot_dimension_numbers<[1], [0], [0], [1], [0, 0, 1, 1], [], []>} : vector<256x96xf32>, vector<96x2xf32>, vector<256x2xf32> -> vector<256x2xf32>
    %c0_60 = arith.constant 0 : index
    %c0_61 = arith.constant 0 : index
    %162 = vector.load %arg15[%c0_60, %c0_61] : memref<1x2xf32, #tpu.memory_space<vmem>>, vector<1x2xf32>
    %163 = vector.broadcast %162 : vector<1x2xf32> to vector<256x2xf32>
    %164 = arith.addf %161, %163 : vector<256x2xf32>
    %165 = tpu.iota {dimensions = array<i32: 0>} : vector<256x64xi32>
    %166 = tpu.iota {dimensions = array<i32: 1>} : vector<256x64xi32>
    %c31_i32 = arith.constant 31 : i32
    %167 = vector.broadcast %c31_i32 : i32 to vector<256x64xi32>
    %168 = arith.andi %165, %167 : vector<256x64xi32>
    %c1_i32_62 = arith.constant 1 : i32
    %169 = vector.broadcast %c1_i32_62 : i32 to vector<256x64xi32>
    %170 = arith.shrsi %166, %169 : vector<256x64xi32>
    %171 = arith.cmpi eq, %168, %170 : vector<256x64xi32>
    %c1_i32_63 = arith.constant 1 : i32
    %172 = vector.broadcast %c1_i32_63 : i32 to vector<256x64xi32>
    %173 = arith.andi %166, %172 : vector<256x64xi32>
    %c0_i32 = arith.constant 0 : i32
    %174 = vector.broadcast %c0_i32 : i32 to vector<256x64xi32>
    %175 = arith.cmpi eq, %173, %174 : vector<256x64xi32>
    %176 = vector.extract_strided_slice %164 {offsets = [0, 0], sizes = [256, 1], strides = [1, 1]} : vector<256x2xf32> to vector<256x1xf32>
    %177 = vector.extract_strided_slice %164 {offsets = [0, 1], sizes = [256, 1], strides = [1, 1]} : vector<256x2xf32> to vector<256x1xf32>
    %178 = vector.shape_cast %176 : vector<256x1xf32> to vector<256x1xf32>
    %179 = vector.broadcast %178 : vector<256x1xf32> to vector<256x64xf32>
    %180 = vector.shape_cast %177 : vector<256x1xf32> to vector<256x1xf32>
    %181 = vector.broadcast %180 : vector<256x1xf32> to vector<256x64xf32>
    %182 = arith.select %175, %179, %181 : vector<256x64xi1>, vector<256x64xf32>
    %cst_64 = arith.constant 0.000000e+00 : f32
    %183 = vector.broadcast %cst_64 : f32 to vector<256x64xf32>
    %184 = arith.select %171, %182, %183 : vector<256x64xi1>, vector<256x64xf32>
    %185 = tpu.iota {dimensions = array<i32: 0>} : vector<8x256xi32>
    %186 = tpu.iota {dimensions = array<i32: 1>} : vector<8x256xi32>
    %c5_i32 = arith.constant 5 : i32
    %187 = vector.broadcast %c5_i32 : i32 to vector<8x256xi32>
    %188 = arith.shrsi %186, %187 : vector<8x256xi32>
    %189 = arith.cmpi eq, %188, %185 : vector<8x256xi32>
    %190 = arith.extui %189 : vector<8x256xi1> to vector<8x256xi32>
    %191 = arith.sitofp %190 : vector<8x256xi32> to vector<8x256xf32>
    %cst_65 = arith.constant dense<0.000000e+00> : vector<8x64xf32>
    %192 = tpu.matmul %191, %184, %cst_65 {dimension_numbers = #tpu.dot_dimension_numbers<[1], [0], [0], [1], [0, 0, 1, 1], [], []>} : vector<8x256xf32>, vector<256x64xf32>, vector<8x64xf32> -> vector<8x64xf32>
    %c0_66 = arith.constant 0 : index
    %c0_67 = arith.constant 0 : index
    %c0_68 = arith.constant 0 : index
    %193 = vector.load %arg16[%c0_66, %c0_67, %c0_68] : memref<1x8x64xf32, #tpu.memory_space<vmem>>, vector<1x8x64xf32>
    %194 = vector.shape_cast %193 : vector<1x8x64xf32> to vector<8x64xf32>
    %195 = vector.shape_cast %192 : vector<8x64xf32> to vector<1x8x64xf32>
    tpu.vector_store %arg16[%c0_66, %c0_67, %c0_68], %195 {strides = array<i32>} : memref<1x8x64xf32, #tpu.memory_space<vmem>>, vector<1x8x64xf32>,
    return
  }
  func.func @transform_0(%arg0: i32) -> (i32, i32, i32) {
    %c0_i32 = arith.constant 0 : i32
    %c0_i32_0 = arith.constant 0 : i32
    %c0_i32_1 = arith.constant 0 : i32
    return %arg0, %c0_i32, %c0_i32_0 : i32, i32, i32
  }
  func.func @transform_1(%arg0: i32) -> (i32, i32) {
    %c0_i32 = arith.constant 0 : i32
    %c0_i32_0 = arith.constant 0 : i32
    %c0_i32_1 = arith.constant 0 : i32
    return %c0_i32, %c0_i32_0 : i32, i32
  }
  func.func @transform_2(%arg0: i32) -> (i32, i32) {
    %c0_i32 = arith.constant 0 : i32
    %c0_i32_0 = arith.constant 0 : i32
    %c0_i32_1 = arith.constant 0 : i32
    return %c0_i32, %c0_i32_0 : i32, i32
  }
  func.func @transform_3(%arg0: i32) -> (i32, i32) {
    %c0_i32 = arith.constant 0 : i32
    %c0_i32_0 = arith.constant 0 : i32
    %c0_i32_1 = arith.constant 0 : i32
    return %c0_i32, %c0_i32_0 : i32, i32
  }
  func.func @transform_4(%arg0: i32) -> (i32, i32) {
    %c0_i32 = arith.constant 0 : i32
    %c0_i32_0 = arith.constant 0 : i32
    %c0_i32_1 = arith.constant 0 : i32
    return %c0_i32, %c0_i32_0 : i32, i32
  }
  func.func @transform_5(%arg0: i32) -> (i32, i32) {
    %c0_i32 = arith.constant 0 : i32
    %c0_i32_0 = arith.constant 0 : i32
    %c0_i32_1 = arith.constant 0 : i32
    return %c0_i32, %c0_i32_0 : i32, i32
  }
  func.func @transform_6(%arg0: i32) -> (i32, i32) {
    %c0_i32 = arith.constant 0 : i32
    %c0_i32_0 = arith.constant 0 : i32
    %c0_i32_1 = arith.constant 0 : i32
    return %c0_i32, %c0_i32_0 : i32, i32
  }
  func.func @transform_7(%arg0: i32) -> (i32, i32) {
    %c0_i32 = arith.constant 0 : i32
    %c0_i32_0 = arith.constant 0 : i32
    %c0_i32_1 = arith.constant 0 : i32
    return %c0_i32, %c0_i32_0 : i32, i32
  }
  func.func @transform_8(%arg0: i32) -> (i32, i32) {
    %c0_i32 = arith.constant 0 : i32
    %c0_i32_0 = arith.constant 0 : i32
    %c0_i32_1 = arith.constant 0 : i32
    return %c0_i32, %c0_i32_0 : i32, i32
  }
  func.func @transform_9(%arg0: i32) -> (i32, i32) {
    %c0_i32 = arith.constant 0 : i32
    %c0_i32_0 = arith.constant 0 : i32
    %c0_i32_1 = arith.constant 0 : i32
    return %c0_i32, %c0_i32_0 : i32, i32
  }
  func.func @transform_10(%arg0: i32) -> (i32, i32) {
    %c0_i32 = arith.constant 0 : i32
    %c0_i32_0 = arith.constant 0 : i32
    %c0_i32_1 = arith.constant 0 : i32
    return %c0_i32, %c0_i32_0 : i32, i32
  }
  func.func @transform_11(%arg0: i32) -> (i32, i32) {
    %c0_i32 = arith.constant 0 : i32
    %c0_i32_0 = arith.constant 0 : i32
    %c0_i32_1 = arith.constant 0 : i32
    return %c0_i32, %c0_i32_0 : i32, i32
  }
  func.func @transform_12(%arg0: i32) -> (i32, i32) {
    %c0_i32 = arith.constant 0 : i32
    %c0_i32_0 = arith.constant 0 : i32
    %c0_i32_1 = arith.constant 0 : i32
    return %c0_i32, %c0_i32_0 : i32, i32
  }
  func.func @transform_13(%arg0: i32) -> (i32, i32) {
    %c0_i32 = arith.constant 0 : i32
    %c0_i32_0 = arith.constant 0 : i32
    %c0_i32_1 = arith.constant 0 : i32
    return %c0_i32, %c0_i32_0 : i32, i32
  }
  func.func @transform_14(%arg0: i32) -> (i32, i32) {
    %c0_i32 = arith.constant 0 : i32
    %c0_i32_0 = arith.constant 0 : i32
    %c0_i32_1 = arith.constant 0 : i32
    return %c0_i32, %c0_i32_0 : i32, i32
  }
  func.func @transform_15(%arg0: i32) -> (i32, i32, i32) {
    %c0_i32 = arith.constant 0 : i32
    %c0_i32_0 = arith.constant 0 : i32
    %c0_i32_1 = arith.constant 0 : i32
    return %arg0, %c0_i32, %c0_i32_0 : i32, i32, i32
  }
}

</mosaic_0001>

<llo_original>
// kernel: _lambda_.1
$region0: #{_lambda_.1}
  #allocation0 [shape = 'u32[]', space=smem, size = 0x4, offset = 0x4, fixed_abs, tag = 'smem constant byte address 0x4 - core index']
  #allocation1 [shape = 'u32[144,128]{1,0:T(1,128)}', space=vmem, size = 0x12000, scoped, tag = 'internal scratch']
  %s0 = inlined_call_operand.vmem [shape: f32[2,8,4], index: 0, kind: input, shape index: {}]
  %s1 = inlined_call_operand.vmem [shape: f32[4,32], index: 1, kind: input, shape index: {}]
  %s2 = inlined_call_operand.vmem [shape: f32[1,32], index: 2, kind: input, shape index: {}]
  %s3 = inlined_call_operand.hbm [shape: f32[96,64], index: 3, kind: input, shape index: {}]
  %s4 = inlined_call_operand.vmem [shape: f32[1,64], index: 4, kind: input, shape index: {}]
  %s5 = inlined_call_operand.hbm [shape: f32[96,64], index: 5, kind: input, shape index: {}]
  %s6 = inlined_call_operand.vmem [shape: f32[1,64], index: 6, kind: input, shape index: {}]
  %s7 = inlined_call_operand.hbm [shape: f32[96,64], index: 7, kind: input, shape index: {}]
  %s8 = inlined_call_operand.vmem [shape: f32[1,64], index: 8, kind: input, shape index: {}]
  %s9 = inlined_call_operand.hbm [shape: f32[96,64], index: 9, kind: input, shape index: {}]
  %s10 = inlined_call_operand.vmem [shape: f32[1,64], index: 10, kind: input, shape index: {}]
  %s11 = inlined_call_operand.hbm [shape: f32[96,64], index: 11, kind: input, shape index: {}]
  %s12 = inlined_call_operand.vmem [shape: f32[1,64], index: 12, kind: input, shape index: {}]
  %s13 = inlined_call_operand.hbm [shape: f32[96,2], index: 13, kind: input, shape index: {}]
  %s14 = inlined_call_operand.vmem [shape: f32[1,2], index: 14, kind: input, shape index: {}]
  %s15 = inlined_call_operand.vmem [shape: f32[2,8,64], index: 15, kind: output, shape index: {}]
  %s16 = sld [smem:[#allocation0]]
  $region117: #{_lambda_.1} parent=0
    _
  %s18 = ssub.s32 1, %s16
  %s19 = scalar_select 0, %s18, %s16
  $region1: #{_lambda_.1} parent=0
    #allocation2 [shape = 'u8[49152]{0}', space=vmem, size = 0xc000, scoped, tag = 'input window, operand 3, single buffered']
    #allocation3 [shape = 's32[2]{0}', space=sflag, size = 0x8, scoped, tag = 'scoped memory for _lambda_.1']
    #allocation4 [shape = 'u8[49152]{0}', space=vmem, size = 0xc000, scoped, tag = 'input window, operand 5, single buffered']
    #allocation5 [shape = 's32[1]{0}', space=sflag, size = 0x4, scoped, tag = 'scoped memory for _lambda_.1']
    #allocation6 [shape = 'u8[49152]{0}', space=vmem, size = 0xc000, scoped, tag = 'input window, operand 7, single buffered']
    #allocation7 [shape = 'u8[49152]{0}', space=vmem, size = 0xc000, scoped, tag = 'input window, operand 9, single buffered']
    #allocation8 [shape = 's32[1]{0}', space=sflag, size = 0x4, scoped, tag = 'scoped memory for _lambda_.1']
    #allocation9 [shape = 'u8[49152]{0}', space=vmem, size = 0xc000, scoped, tag = 'input window, operand 11, single buffered']
    #allocation10 [shape = 'u8[49152]{0}', space=vmem, size = 0xc000, scoped, tag = 'input window, operand 13, single buffered']
    #allocation11 [shape = 's32[1]{0}', space=sflag, size = 0x4, scoped, tag = 'scoped memory for _lambda_.1']
    %20 = vsyncpa [#allocation3], 0
    %21 = vsyncpa [#allocation5], 0
    %22 = vsyncpa [#allocation8], 0
    %23 = vsyncpa [#allocation11], 0
    loop: start=0, step=1, limit=4
    $region2: #{_lambda_.1} parent=1 // loop_pre_header
      _
    $region3: #{_lambda_.1} parent=1 // loop_header
      %s25 = sphi 0, %s29
      %p26 = scmp.ge.s32.totalorder %s25, 4
      %s35 = sphi 0, %s37
      %s38 = sphi 0, %s35
      %s39 = sphi 0, %s38
      %s55 = sphi 0, %s39
      %s59 = sphi 0, %s59
      %s61 = sphi 0, %s59
      %s62 = sphi 0, %s61
      %s76 = sphi 0, %s62
      %s80 = sphi 0, %s80
      %s82 = sphi 0, %s80
      %s83 = sphi 0, %s82
      %s97 = sphi 0, %s83
      %s101 = sphi 0, %s101
      %s103 = sphi 0, %s101
      %s104 = sphi 0, %s103
      %s118 = sphi 0, %s104
      %s122 = sphi 0, %s122
      %s124 = sphi 0, %s122
      %s125 = sphi 0, %s124
      %s139 = sphi 0, %s125
      %s143 = sphi 0, %s143
      %s145 = sphi 0, %s143
      %s146 = sphi 0, %s145
      %s160 = sphi 0, %s146
      %s164 = sphi 0, %s164
      %s166 = sphi 0, %s164
      %s167 = sphi 0, %s166
      %s181 = sphi 0, %s167
      %s185 = sphi 0, %s185
      %s187 = sphi 0, %s185
      %s188 = sphi 0, %s187
      %s202 = sphi 0, %s188
      %s206 = sphi 0, %s206
      %s208 = sphi 0, %s206
      %s209 = sphi 0, %s208
      %s223 = sphi 0, %s209
      %s227 = sphi 0, %s227
      %s229 = sphi 0, %s227
      %s230 = sphi 0, %s229
      %s244 = sphi 0, %s230
      %s248 = sphi 0, %s248
      %s250 = sphi 0, %s248
      %s251 = sphi 0, %s250
      %s265 = sphi 0, %s251
      %s269 = sphi 0, %s269
      %s271 = sphi 0, %s269
      %s272 = sphi 0, %s271
      %s286 = sphi 0, %s272
      %s290 = sphi 0, %s290
      %s292 = sphi 0, %s290
      %s293 = sphi 0, %s292
      %s307 = sphi 0, %s293
      %s311 = sphi 0, %s311
      %s313 = sphi 0, %s311
      %s314 = sphi 0, %s313
      %s328 = sphi 0, %s314
      %s332 = sphi 0, %s332
      %s334 = sphi 0, %s332
      %s335 = sphi 0, %s334
      %s349 = sphi 0, %s335
      %s355 = sphi 0, %s357
      %s358 = sphi 0, %s355
      %s359 = sphi 0, %s358
      %s375 = sphi 0, %s359
    $region4: #{_lambda_.1} parent=1 // loop_header_branch
      %28 = sbr.rel (%p26) target = $region8
    $region5: #{_lambda_.1} parent=1 // loop_body
      %s30 = ssub.s32 %s25, 1
      %s31 = ssub.s32 %s25, 2
      %s32 = sadd.s32 %s25, 1
      %s33 = ssub.s32 %s25, %s32
      %p34 = scmp.eq.s32.totalorder %s33, 0
      %s36 = sadd.s32 %s35, 1
      %s37 = scalar_select %p34, %s35, %s36
      %p40 = pneg %p34
      %p41 = scmp.eq.s32.totalorder %s25, 1
      %p42 = por %p40, %p41
      %p43 = scmp.ne.s32.totalorder %s35, %s38
      %p44 = scmp.eq.s32.totalorder %s25, 0
      %p45 = por %p43, %p44
      %p46 = scmp.ne.s32.totalorder %s35, %s38
      %p47 = scmp.eq.s32.totalorder %s30, 1
      %p48 = por %p46, %p47
      %p49 = scmp.ne.s32.totalorder %s38, %s39
      %p50 = scmp.eq.s32.totalorder %s30, 0
      %p51 = por %p49, %p50
      %p52 = scmp.ne.s32.totalorder %s38, %s39
      %p53 = scmp.eq.s32.totalorder %s31, 1
      %p54 = por %p52, %p53
      %p56 = scmp.ne.s32.totalorder %s39, %s55
      %p57 = scmp.eq.s32.totalorder %s31, 0
      %p58 = por %p56, %p57
      %s60 = sadd.s32 %s59, 1
      %p63 = scmp.eq.s32.totalorder %s25, 1
      %p64 = scmp.ne.s32.totalorder %s59, %s61
      %p65 = scmp.eq.s32.totalorder %s25, 0
      %p66 = por %p64, %p65
      %p67 = scmp.ne.s32.totalorder %s59, %s61
      %p68 = scmp.eq.s32.totalorder %s30, 1
      %p69 = por %p67, %p68
      %p70 = scmp.ne.s32.totalorder %s61, %s62
      %p71 = scmp.eq.s32.totalorder %s30, 0
      %p72 = por %p70, %p71
      %p73 = scmp.ne.s32.totalorder %s61, %s62
      %p74 = scmp.eq.s32.totalorder %s31, 1
      %p75 = por %p73, %p74
      %p77 = scmp.ne.s32.totalorder %s62, %s76
      %p78 = scmp.eq.s32.totalorder %s31, 0
      %p79 = por %p77, %p78
      %s81 = sadd.s32 %s80, 1
      %p84 = scmp.eq.s32.totalorder %s25, 1
      %p85 = scmp.ne.s32.totalorder %s80, %s82
      %p86 = scmp.eq.s32.totalorder %s25, 0
      %p87 = por %p85, %p86
      %p88 = scmp.ne.s32.totalorder %s80, %s82
      %p89 = scmp.eq.s32.totalorder %s30, 1
      %p90 = por %p88, %p89
      %p91 = scmp.ne.s32.totalorder %s82, %s83
      %p92 = scmp.eq.s32.totalorder %s30, 0
      %p93 = por %p91, %p92
      %p94 = scmp.ne.s32.totalorder %s82, %s83
      %p95 = scmp.eq.s32.totalorder %s31, 1
      %p96 = por %p94, %p95
      %p98 = scmp.ne.s32.totalorder %s83, %s97
      %p99 = scmp.eq.s32.totalorder %s31, 0
      %p100 = por %p98, %p99
      %s102 = sadd.s32 %s101, 1
      %p105 = scmp.eq.s32.totalorder %s25, 1
      %p106 = scmp.ne.s32.totalorder %s101, %s103
      %p107 = scmp.eq.s32.totalorder %s25, 0
      %p108 = por %p106, %p107
      %p109 = scmp.ne.s32.totalorder %s101, %s103
      %p110 = scmp.eq.s32.totalorder %s30, 1
      %p111 = por %p109, %p110
      %p112 = scmp.ne.s32.totalorder %s103, %s104
      %p113 = scmp.eq.s32.totalorder %s30, 0
      %p114 = por %p112, %p113
      %p115 = scmp.ne.s32.totalorder %s103, %s104
      %p116 = scmp.eq.s32.totalorder %s31, 1
      %p117 = por %p115, %p116
      %p119 = scmp.ne.s32.totalorder %s104, %s118
      %p120 = scmp.eq.s32.totalorder %s31, 0
      %p121 = por %p119, %p120
      %s123 = sadd.s32 %s122, 1
      %p126 = scmp.eq.s32.totalorder %s25, 1
      %p127 = scmp.ne.s32.totalorder %s122, %s124
      %p128 = scmp.eq.s32.totalorder %s25, 0
      %p129 = por %p127, %p128
      %p130 = scmp.ne.s32.totalorder %s122, %s124
      %p131 = scmp.eq.s32.totalorder %s30, 1
      %p132 = por %p130, %p131
      %p133 = scmp.ne.s32.totalorder %s124, %s125
      %p134 = scmp.eq.s32.totalorder %s30, 0
      %p135 = por %p133, %p134
      %p136 = scmp.ne.s32.totalorder %s124, %s125
      %p137 = scmp.eq.s32.totalorder %s31, 1
      %p138 = por %p136, %p137
      %p140 = scmp.ne.s32.totalorder %s125, %s139
      %p141 = scmp.eq.s32.totalorder %s31, 0
      %p142 = por %p140, %p141
      %s144 = sadd.s32 %s143, 1
      %p147 = scmp.eq.s32.totalorder %s25, 1
      %p148 = scmp.ne.s32.totalorder %s143, %s145
      %p149 = scmp.eq.s32.totalorder %s25, 0
      %p150 = por %p148, %p149
      %p151 = scmp.ne.s32.totalorder %s143, %s145
      %p152 = scmp.eq.s32.totalorder %s30, 1
      %p153 = por %p151, %p152
      %p154 = scmp.ne.s32.totalorder %s145, %s146
      %p155 = scmp.eq.s32.totalorder %s30, 0
      %p156 = por %p154, %p155
      %p157 = scmp.ne.s32.totalorder %s145, %s146
      %p158 = scmp.eq.s32.totalorder %s31, 1
      %p159 = por %p157, %p158
      %p161 = scmp.ne.s32.totalorder %s146, %s160
      %p162 = scmp.eq.s32.totalorder %s31, 0
      %p163 = por %p161, %p162
      %s165 = sadd.s32 %s164, 1
      %p168 = scmp.eq.s32.totalorder %s25, 1
      %p169 = scmp.ne.s32.totalorder %s164, %s166
      %p170 = scmp.eq.s32.totalorder %s25, 0
      %p171 = por %p169, %p170
      %p172 = scmp.ne.s32.totalorder %s164, %s166
      %p173 = scmp.eq.s32.totalorder %s30, 1
      %p174 = por %p172, %p173
      %p175 = scmp.ne.s32.totalorder %s166, %s167
      %p176 = scmp.eq.s32.totalorder %s30, 0
      %p177 = por %p175, %p176
      %p178 = scmp.ne.s32.totalorder %s166, %s167
      %p179 = scmp.eq.s32.totalorder %s31, 1
      %p180 = por %p178, %p179
      %p182 = scmp.ne.s32.totalorder %s167, %s181
      %p183 = scmp.eq.s32.totalorder %s31, 0
      %p184 = por %p182, %p183
      %s186 = sadd.s32 %s185, 1
      %p189 = scmp.eq.s32.totalorder %s25, 1
      %p190 = scmp.ne.s32.totalorder %s185, %s187
      %p191 = scmp.eq.s32.totalorder %s25, 0
      %p192 = por %p190, %p191
      %p193 = scmp.ne.s32.totalorder %s185, %s187
      %p194 = scmp.eq.s32.totalorder %s30, 1
      %p195 = por %p193, %p194
      %p196 = scmp.ne.s32.totalorder %s187, %s188
      %p197 = scmp.eq.s32.totalorder %s30, 0
      %p198 = por %p196, %p197
      %p199 = scmp.ne.s32.totalorder %s187, %s188
      %p200 = scmp.eq.s32.totalorder %s31, 1
      %p201 = por %p199, %p200
      %p203 = scmp.ne.s32.totalorder %s188, %s202
      %p204 = scmp.eq.s32.totalorder %s31, 0
      %p205 = por %p203, %p204
      %s207 = sadd.s32 %s206, 1
      %p210 = scmp.eq.s32.totalorder %s25, 1
      %p211 = scmp.ne.s32.totalorder %s206, %s208
      %p212 = scmp.eq.s32.totalorder %s25, 0
      %p213 = por %p211, %p212
      %p214 = scmp.ne.s32.totalorder %s206, %s208
      %p215 = scmp.eq.s32.totalorder %s30, 1
      %p216 = por %p214, %p215
      %p217 = scmp.ne.s32.totalorder %s208, %s209
      %p218 = scmp.eq.s32.totalorder %s30, 0
      %p219 = por %p217, %p218
      %p220 = scmp.ne.s32.totalorder %s208, %s209
      %p221 = scmp.eq.s32.totalorder %s31, 1
      %p222 = por %p220, %p221
      %p224 = scmp.ne.s32.totalorder %s209, %s223
      %p225 = scmp.eq.s32.totalorder %s31, 0
      %p226 = por %p224, %p225
      %s228 = sadd.s32 %s227, 1
      %p231 = scmp.eq.s32.totalorder %s25, 1
      %p232 = scmp.ne.s32.totalorder %s227, %s229
      %p233 = scmp.eq.s32.totalorder %s25, 0
      %p234 = por %p232, %p233
      %p235 = scmp.ne.s32.totalorder %s227, %s229
      %p236 = scmp.eq.s32.totalorder %s30, 1
      %p237 = por %p235, %p236
      %p238 = scmp.ne.s32.totalorder %s229, %s230
      %p239 = scmp.eq.s32.totalorder %s30, 0
      %p240 = por %p238, %p239
      %p241 = scmp.ne.s32.totalorder %s229, %s230
      %p242 = scmp.eq.s32.totalorder %s31, 1
      %p243 = por %p241, %p242
      %p245 = scmp.ne.s32.totalorder %s230, %s244
      %p246 = scmp.eq.s32.totalorder %s31, 0
      %p247 = por %p245, %p246
      %s249 = sadd.s32 %s248, 1
      %p252 = scmp.eq.s32.totalorder %s25, 1
      %p253 = scmp.ne.s32.totalorder %s248, %s250
      %p254 = scmp.eq.s32.totalorder %s25, 0
      %p255 = por %p253, %p254
      %p256 = scmp.ne.s32.totalorder %s248, %s250
      %p257 = scmp.eq.s32.totalorder %s30, 1
      %p258 = por %p256, %p257
      %p259 = scmp.ne.s32.totalorder %s250, %s251
      %p260 = scmp.eq.s32.totalorder %s30, 0
      %p261 = por %p259, %p260
      %p262 = scmp.ne.s32.totalorder %s250, %s251
      %p263 = scmp.eq.s32.totalorder %s31, 1
      %p264 = por %p262, %p263
      %p266 = scmp.ne.s32.totalorder %s251, %s265
      %p267 = scmp.eq.s32.totalorder %s31, 0
      %p268 = por %p266, %p267
      %s270 = sadd.s32 %s269, 1
      %p273 = scmp.eq.s32.totalorder %s25, 1
      %p274 = scmp.ne.s32.totalorder %s269, %s271
      %p275 = scmp.eq.s32.totalorder %s25, 0
      %p276 = por %p274, %p275
      %p277 = scmp.ne.s32.totalorder %s269, %s271
      %p278 = scmp.eq.s32.totalorder %s30, 1
      %p279 = por %p277, %p278
      %p280 = scmp.ne.s32.totalorder %s271, %s272
      %p281 = scmp.eq.s32.totalorder %s30, 0
      %p282 = por %p280, %p281
      %p283 = scmp.ne.s32.totalorder %s271, %s272
      %p284 = scmp.eq.s32.totalorder %s31, 1
      %p285 = por %p283, %p284
      %p287 = scmp.ne.s32.totalorder %s272, %s286
      %p288 = scmp.eq.s32.totalorder %s31, 0
      %p289 = por %p287, %p288
      %s291 = sadd.s32 %s290, 1
      %p294 = scmp.eq.s32.totalorder %s25, 1
      %p295 = scmp.ne.s32.totalorder %s290, %s292
      %p296 = scmp.eq.s32.totalorder %s25, 0
      %p297 = por %p295, %p296
      %p298 = scmp.ne.s32.totalorder %s290, %s292
      %p299 = scmp.eq.s32.totalorder %s30, 1
      %p300 = por %p298, %p299
      %p301 = scmp.ne.s32.totalorder %s292, %s293
      %p302 = scmp.eq.s32.totalorder %s30, 0
      %p303 = por %p301, %p302
      %p304 = scmp.ne.s32.totalorder %s292, %s293
      %p305 = scmp.eq.s32.totalorder %s31, 1
      %p306 = por %p304, %p305
      %p308 = scmp.ne.s32.totalorder %s293, %s307
      %p309 = scmp.eq.s32.totalorder %s31, 0
      %p310 = por %p308, %p309
      %s312 = sadd.s32 %s311, 1
      %p315 = scmp.eq.s32.totalorder %s25, 1
      %p316 = scmp.ne.s32.totalorder %s311, %s313
      %p317 = scmp.eq.s32.totalorder %s25, 0
      %p318 = por %p316, %p317
      %p319 = scmp.ne.s32.totalorder %s311, %s313
      %p320 = scmp.eq.s32.totalorder %s30, 1
      %p321 = por %p319, %p320
      %p322 = scmp.ne.s32.totalorder %s313, %s314
      %p323 = scmp.eq.s32.totalorder %s30, 0
      %p324 = por %p322, %p323
      %p325 = scmp.ne.s32.totalorder %s313, %s314
      %p326 = scmp.eq.s32.totalorder %s31, 1
      %p327 = por %p325, %p326
      %p329 = scmp.ne.s32.totalorder %s314, %s328
      %p330 = scmp.eq.s32.totalorder %s31, 0
      %p331 = por %p329, %p330
      %s333 = sadd.s32 %s332, 1
      %p336 = scmp.eq.s32.totalorder %s25, 1
      %p337 = scmp.ne.s32.totalorder %s332, %s334
      %p338 = scmp.eq.s32.totalorder %s25, 0
      %p339 = por %p337, %p338
      %p340 = scmp.ne.s32.totalorder %s332, %s334
      %p341 = scmp.eq.s32.totalorder %s30, 1
      %p342 = por %p340, %p341
      %p343 = scmp.ne.s32.totalorder %s334, %s335
      %p344 = scmp.eq.s32.totalorder %s30, 0
      %p345 = por %p343, %p344
      %p346 = scmp.ne.s32.totalorder %s334, %s335
      %p347 = scmp.eq.s32.totalorder %s31, 1
      %p348 = por %p346, %p347
      %p350 = scmp.ne.s32.totalorder %s335, %s349
      %p351 = scmp.eq.s32.totalorder %s31, 0
      %p352 = por %p350, %p351
      %s353 = ssub.s32 %s25, %s32
      %p354 = scmp.eq.s32.totalorder %s353, 0
      %s356 = sadd.s32 %s355, 1
      %s357 = scalar_select %p354, %s355, %s356
      %p360 = pneg %p354
      %p361 = scmp.eq.s32.totalorder %s25, 1
      %p362 = por %p360, %p361
      %p363 = scmp.ne.s32.totalorder %s355, %s358
      %p364 = scmp.eq.s32.totalorder %s25, 0
      %p365 = por %p363, %p364
      %p366 = scmp.ne.s32.totalorder %s355, %s358
      %p367 = scmp.eq.s32.totalorder %s30, 1
      %p368 = por %p366, %p367
      %p369 = scmp.ne.s32.totalorder %s358, %s359
      %p370 = scmp.eq.s32.totalorder %s30, 0
      %p371 = por %p369, %p370
      %p372 = scmp.ne.s32.totalorder %s358, %s359
      %p373 = scmp.eq.s32.totalorder %s31, 1
      %p374 = por %p372, %p373
      %p376 = scmp.ne.s32.totalorder %s359, %s375
      %p377 = scmp.eq.s32.totalorder %s31, 0
      %p378 = por %p376, %p377
      %p379 = scmp.le.s32.totalorder 1, %s25
      %p380 = scmp.lt.s32.totalorder %s25, 3
      %p381 = pnand %p379, %p380
      %p382 = pneg %p381
      // Predicated region
      $region9: #{_lambda_.1} parent=5 // pred_check
        _
      $region10: #{_lambda_.1} parent=5 // pred_check_branch
        %384 = sbr.rel (%p381) target = $region12
      $region11: #{_lambda_.1} parent=5 // pred_region
        %s385 = ssub.s32 %s25, 1
        // Predicated region
        $region13: #{_lambda_.1} parent=11 // pred_check
          %p386 = pneg %p72
        $region14: #{_lambda_.1} parent=11 // pred_check_branch
          %388 = sbr.rel (%p386) target = $region16
        $region15: #{_lambda_.1} parent=11 // pred_region
          _
        $region16: #{_lambda_.1} parent=11 // pred_fallthru
          _
        // Predicated region
        $region17: #{_lambda_.1} parent=11 // pred_check
          %p389 = pneg %p93
        $region18: #{_lambda_.1} parent=11 // pred_check_branch
          %391 = sbr.rel (%p389) target = $region20
        $region19: #{_lambda_.1} parent=11 // pred_region
          _
        $region20: #{_lambda_.1} parent=11 // pred_fallthru
          _
        // Predicated region
        $region21: #{_lambda_.1} parent=11 // pred_check
          %p392 = pneg %p114
        $region22: #{_lambda_.1} parent=11 // pred_check_branch
          %394 = sbr.rel (%p392) target = $region24
        $region23: #{_lambda_.1} parent=11 // pred_region
          %s396 = ssub.s32 1536, 1536
          %397 = vsyncadd [#allocation3], %s396
          %s398 = sshll.u32 [#allocation2], 4
          %s399 = int_to_ptr.vmem [resolvable:$true] %s398
          %404 = dma.hbm_to_vmem [thread:$0]  %s3, 1536, %s399, [#allocation3], 128, 128, 8
        $region24: #{_lambda_.1} parent=11 // pred_fallthru
          _
        // Predicated region
        $region25: #{_lambda_.1} parent=11 // pred_check
          %p405 = pneg %p135
        $region26: #{_lambda_.1} parent=11 // pred_check_branch
          %407 = sbr.rel (%p405) target = $region28
        $region27: #{_lambda_.1} parent=11 // pred_region
          _
        $region28: #{_lambda_.1} parent=11 // pred_fallthru
          _
        // Predicated region
        $region29: #{_lambda_.1} parent=11 // pred_check
          %p408 = pneg %p156
        $region30: #{_lambda_.1} parent=11 // pred_check_branch
          %410 = sbr.rel (%p408) target = $region32
        $region31: #{_lambda_.1} parent=11 // pred_region
          %s412 = ssub.s32 1536, 1536
          %413 = vsyncadd [#allocation5], %s412
          %s414 = sshll.u32 [#allocation4], 4
          %s415 = int_to_ptr.vmem [resolvable:$true] %s414
          %420 = dma.hbm_to_vmem [thread:$0]  %s5, 1536, %s415, [#allocation5], 128, 128, 8
        $region32: #{_lambda_.1} parent=11 // pred_fallthru
          _
        // Predicated region
        $region33: #{_lambda_.1} parent=11 // pred_check
          %p421 = pneg %p177
        $region34: #{_lambda_.1} parent=11 // pred_check_branch
          %423 = sbr.rel (%p421) target = $region36
        $region35: #{_lambda_.1} parent=11 // pred_region
          _
        $region36: #{_lambda_.1} parent=11 // pred_fallthru
          _
        // Predicated region
        $region37: #{_lambda_.1} parent=11 // pred_check
          %p424 = pneg %p198
        $region38: #{_lambda_.1} parent=11 // pred_check_branch
          %426 = sbr.rel (%p424) target = $region40
        $region39: #{_lambda_.1} parent=11 // pred_region
          %s428 = ssub.s32 1536, 1536
          %429 = vsyncadd [#allocation5], %s428
          %s430 = sshll.u32 [#allocation6], 4
          %s431 = int_to_ptr.vmem [resolvable:$true] %s430
          %436 = dma.hbm_to_vmem [thread:$0]  %s7, 1536, %s431, [#allocation5], 128, 128, 8
        $region40: #{_lambda_.1} parent=11 // pred_fallthru
          _
        // Predicated region
        $region41: #{_lambda_.1} parent=11 // pred_check
          %p437 = pneg %p219
        $region42: #{_lambda_.1} parent=11 // pred_check_branch
          %439 = sbr.rel (%p437) target = $region44
        $region43: #{_lambda_.1} parent=11 // pred_region
          _
        $region44: #{_lambda_.1} parent=11 // pred_fallthru
          _
        // Predicated region
        $region45: #{_lambda_.1} parent=11 // pred_check
          %p440 = pneg %p240
        $region46: #{_lambda_.1} parent=11 // pred_check_branch
          %442 = sbr.rel (%p440) target = $region48
        $region47: #{_lambda_.1} parent=11 // pred_region
          %s444 = ssub.s32 1536, 1536
          %445 = vsyncadd [#allocation8], %s444
          %s446 = sshll.u32 [#allocation7], 4
          %s447 = int_to_ptr.vmem [resolvable:$true] %s446
          %452 = dma.hbm_to_vmem [thread:$0]  %s9, 1536, %s447, [#allocation8], 128, 128, 8
        $region48: #{_lambda_.1} parent=11 // pred_fallthru
          _
        // Predicated region
        $region49: #{_lambda_.1} parent=11 // pred_check
          %p453 = pneg %p261
        $region50: #{_lambda_.1} parent=11 // pred_check_branch
          %455 = sbr.rel (%p453) target = $region52
        $region51: #{_lambda_.1} parent=11 // pred_region
          _
        $region52: #{_lambda_.1} parent=11 // pred_fallthru
          _
        // Predicated region
        $region53: #{_lambda_.1} parent=11 // pred_check
          %p456 = pneg %p282
        $region54: #{_lambda_.1} parent=11 // pred_check_branch
          %458 = sbr.rel (%p456) target = $region56
        $region55: #{_lambda_.1} parent=11 // pred_region
          %s460 = ssub.s32 1536, 1536
          %461 = vsyncadd [#allocation8], %s460
          %s462 = sshll.u32 [#allocation9], 4
          %s463 = int_to_ptr.vmem [resolvable:$true] %s462
          %468 = dma.hbm_to_vmem [thread:$0]  %s11, 1536, %s463, [#allocation8], 128, 128, 8
        $region56: #{_lambda_.1} parent=11 // pred_fallthru
          _
        // Predicated region
        $region57: #{_lambda_.1} parent=11 // pred_check
          %p469 = pneg %p303
        $region58: #{_lambda_.1} parent=11 // pred_check_branch
          %471 = sbr.rel (%p469) target = $region60
        $region59: #{_lambda_.1} parent=11 // pred_region
          _
        $region60: #{_lambda_.1} parent=11 // pred_fallthru
          _
        // Predicated region
        $region61: #{_lambda_.1} parent=11 // pred_check
          %p472 = pneg %p324
        $region62: #{_lambda_.1} parent=11 // pred_check_branch
          %474 = sbr.rel (%p472) target = $region64
        $region63: #{_lambda_.1} parent=11 // pred_region
          %s476 = ssub.s32 1536, 1536
          %477 = vsyncadd [#allocation11], %s476
          %s478 = sshll.u32 [#allocation10], 4
          %s479 = int_to_ptr.vmem [resolvable:$true] %s478
          %484 = dma.hbm_to_vmem [thread:$0]  %s13, 1536, %s479, [#allocation11], 128, 128, 8
        $region64: #{_lambda_.1} parent=11 // pred_fallthru
          _
        // Predicated region
        $region65: #{_lambda_.1} parent=11 // pred_check
          %p485 = pneg %p345
        $region66: #{_lambda_.1} parent=11 // pred_check_branch
          %487 = sbr.rel (%p485) target = $region68
        $region67: #{_lambda_.1} parent=11 // pred_region
          _
        $region68: #{_lambda_.1} parent=11 // pred_fallthru
          _
      $region12: #{_lambda_.1} parent=5 // pred_fallthru
        _
      %p488 = scmp.lt.s32.totalorder %s25, 2
      // Predicated region
      $region69: #{_lambda_.1} parent=5 // pred_check
        %p489 = pneg %p488
      $region70: #{_lambda_.1} parent=5 // pred_check_branch
        %491 = sbr.rel (%p489) target = $region72
      $region71: #{_lambda_.1} parent=5 // pred_region
        // Predicated region
        $region73: #{_lambda_.1} parent=71 // pred_check
          %p492 = pneg %p45
        $region74: #{_lambda_.1} parent=71 // pred_check_branch
          %494 = sbr.rel (%p492) target = $region76
        $region75: #{_lambda_.1} parent=71 // pred_region
          %p495 = scmp.lt.s32.totalorder %s25, 1
          %s496 = scalar_select %p495, %s25, 1
          %s497 = smul.addr %s496, 8
          %s498 = scalar_lea.vmem %s0, %s497
        $region76: #{_lambda_.1} parent=71 // pred_fallthru
          _
      $region72: #{_lambda_.1} parent=5 // pred_fallthru
        _
      %p499 = scmp.le.s32.totalorder 1, %s25
      %p500 = scmp.lt.s32.totalorder %s25, 3
      %p501 = pnand %p499, %p500
      %p502 = pneg %p501
      // Predicated region
      $region77: #{_lambda_.1} parent=5 // pred_check
        _
      $region78: #{_lambda_.1} parent=5 // pred_check_branch
        %504 = sbr.rel (%p501) target = $region80
      $region79: #{_lambda_.1} parent=5 // pred_region
        %s505 = ssub.s32 %s25, 1
        // Predicated region
        $region81: #{_lambda_.1} parent=79 // pred_check
          %p506 = pneg %p114
        $region82: #{_lambda_.1} parent=79 // pred_check_branch
          %508 = sbr.rel (%p506) target = $region84
        $region83: #{_lambda_.1} parent=79 // pred_region
          %509 = dma.done [#allocation3], 1536
        $region84: #{_lambda_.1} parent=79 // pred_fallthru
          _
        // Predicated region
        $region85: #{_lambda_.1} parent=79 // pred_check
          %p510 = pneg %p156
        $region86: #{_lambda_.1} parent=79 // pred_check_branch
          %512 = sbr.rel (%p510) target = $region88
        $region87: #{_lambda_.1} parent=79 // pred_region
          %513 = dma.done [#allocation5], 1536
        $region88: #{_lambda_.1} parent=79 // pred_fallthru
          _
        // Predicated region
        $region89: #{_lambda_.1} parent=79 // pred_check
          %p514 = pneg %p198
        $region90: #{_lambda_.1} parent=79 // pred_check_branch
          %516 = sbr.rel (%p514) target = $region92
        $region91: #{_lambda_.1} parent=79 // pred_region
          %517 = dma.done [#allocation5], 1536
        $region92: #{_lambda_.1} parent=79 // pred_fallthru
          _
        // Predicated region
        $region93: #{_lambda_.1} parent=79 // pred_check
          %p518 = pneg %p240
        $region94: #{_lambda_.1} parent=79 // pred_check_branch
          %520 = sbr.rel (%p518) target = $region96
        $region95: #{_lambda_.1} parent=79 // pred_region
          %521 = dma.done [#allocation8], 1536
        $region96: #{_lambda_.1} parent=79 // pred_fallthru
          _
        // Predicated region
        $region97: #{_lambda_.1} parent=79 // pred_check
          %p522 = pneg %p282
        $region98: #{_lambda_.1} parent=79 // pred_check_branch
          %524 = sbr.rel (%p522) target = $region100
        $region99: #{_lambda_.1} parent=79 // pred_region
          %525 = dma.done [#allocation8], 1536
        $region100: #{_lambda_.1} parent=79 // pred_fallthru
          _
        // Predicated region
        $region101: #{_lambda_.1} parent=79 // pred_check
          %p526 = pneg %p324
        $region102: #{_lambda_.1} parent=79 // pred_check_branch
          %528 = sbr.rel (%p526) target = $region104
        $region103: #{_lambda_.1} parent=79 // pred_region
          %529 = dma.done [#allocation11], 1536
        $region104: #{_lambda_.1} parent=79 // pred_fallthru
          _
        %p530 = scmp.lt.s32.totalorder %s30, 1
        %s531 = scalar_select %p530, %s30, 1
        %s532 = smul.addr %s531, 8
        %s533 = scalar_lea.vmem %s0, %s532
        %p534 = pneg %p51
        %p535 = pneg %p48
        %p536 = pneg %p72
        %p537 = pneg %p69
        %p538 = pneg %p93
        %p539 = pneg %p90
        %p540 = pneg %p114
        %p541 = pneg %p111
        %p542 = pneg %p135
        %p543 = pneg %p132
        %p544 = pneg %p156
        %p545 = pneg %p153
        %p546 = pneg %p177
        %p547 = pneg %p174
        %p548 = pneg %p198
        %p549 = pneg %p195
        %p550 = pneg %p219
        %p551 = pneg %p216
        %p552 = pneg %p240
        %p553 = pneg %p237
        %p554 = pneg %p261
        %p555 = pneg %p258
        %p556 = pneg %p282
        %p557 = pneg %p279
        %p558 = pneg %p303
        %p559 = pneg %p300
        %p560 = pneg %p324
        %p561 = pneg %p321
        %p562 = pneg %p345
        %p563 = pneg %p342
        %p564 = pneg %p371
        %p565 = pneg %p368
        %p566 = scmp.lt.s32.totalorder %s30, 1
        %s567 = scalar_select %p566, %s30, 1
        %s568 = smul.addr %s567, 8
        %s569 = scalar_lea.vmem %s15, %s568
        %p570 = scmp.lt.s32.totalorder %s30, 1
        %s571 = scalar_select %p570, %s30, 1
        %s572 = smul.addr %s571, 8
        %s573 = scalar_lea.vmem %s0, %s572
        %p574 = scmp.lt.s32.totalorder %s30, 1
        %s575 = scalar_select %p574, %s30, 1
        %s576 = smul.addr %s575, 8
        %s577 = scalar_lea.vmem %s15, %s576
        %v578 = vld [vmem:[%s573] sm:$0xff]
        %v579 = vld [vmem:[%s1] sm:$0xf]
        %v580 = vld [vmem:[%s2] sm:$0x1]
        %v582 = vlaneseq
        %v583 = vshrl.u32 %v582, 7
        %v584 = vsub.s32 0, %v583
        %v585 = vrot.slane %v580, %v584
        %vm587 = vcmask 31744
        %v589 = vsel %vm587, %v578, 0
        %vm591 = vcmask 1043456
        %v593 = vsel %vm591, %v579, 0
        %595 = vmatprep.subr.mxu0 0.0
        %596 = vmatpush1.msra.mxu0 0.0
        %597 = vmatprep.subr.mxu0 0.0
        %598 = vmatpush1.msra.mxu0 0.0
        %599 = vmatprep.subr.mxu0 0.0
        %600 = vmatpush1.msra.mxu0 0.0
        %601 = vmatprep.subr.mxu0 0.0
        %602 = vmatpush1.msra.mxu0 0.0
        %603 = vmatprep.subr.mxu0 0.0
        %604 = vmatpush1.msra.mxu0 0.0
        %605 = vmatprep.subr.mxu0 0.0
        %606 = vmatpush1.msra.mxu0 0.0
        %607 = vmatprep.subr.mxu0 0.0
        %608 = vmatpush1.msra.mxu0 0.0
        %609 = vmatprep.subr.mxu0 0.0
        %610 = vmatpush1.msra.mxu0 0.0
        %611 = vmatprep.subr.mxu0 0.0
        %612 = vmatpush1.msra.mxu0 0.0
        %613 = vmatprep.subr.mxu0 0.0
        %614 = vmatpush1.msra.mxu0 0.0
        %615 = vmatprep.subr.mxu0 0.0
        %616 = vmatpush1.msra.mxu0 0.0
        %617 = vmatprep.subr.mxu0 0.0
        %618 = vmatpush1.msra.mxu0 0.0
        %619 = vmatprep.subr.mxu0 0.0
        %620 = vmatpush1.msra.mxu0 0.0
        %621 = vmatprep.subr.mxu0 0.0
        %622 = vmatpush1.msra.mxu0 0.0
        %623 = vmatprep.subr.mxu0 0.0
        %624 = vmatpush1.msra.mxu0 0.0
        %625 = vmatprep.subr.mxu0 0.0
        %626 = vmatpush1.msra.mxu0 %v593
        %627 = vmatprep.subr.mxu0 0.0
        %628 = vmatpush2.msra.mxu0 0.0
        %629 = vmatprep.subr.mxu0 0.0
        %630 = vmatpush2.msra.mxu0 0.0
        %631 = vmatprep.subr.mxu0 0.0
        %632 = vmatpush2.msra.mxu0 0.0
        %633 = vmatprep.subr.mxu0 0.0
        %634 = vmatpush2.msra.mxu0 0.0
        %635 = vmatprep.subr.mxu0 0.0
        %636 = vmatpush2.msra.mxu0 0.0
        %637 = vmatprep.subr.mxu0 0.0
        %638 = vmatpush2.msra.mxu0 0.0
        %639 = vmatprep.subr.mxu0 0.0
        %640 = vmatpush2.msra.mxu0 0.0
        %641 = vmatprep.subr.mxu0 0.0
        %642 = vmatpush2.msra.mxu0 0.0
        %643 = vmatprep.subr.mxu0 0.0
        %644 = vmatpush2.msra.mxu0 0.0
        %645 = vmatprep.subr.mxu0 0.0
        %646 = vmatpush2.msra.mxu0 0.0
        %647 = vmatprep.subr.mxu0 0.0
        %648 = vmatpush2.msra.mxu0 0.0
        %649 = vmatprep.subr.mxu0 0.0
        %650 = vmatpush2.msra.mxu0 0.0
        %651 = vmatprep.subr.mxu0 0.0
        %652 = vmatpush2.msra.mxu0 0.0
        %653 = vmatprep.subr.mxu0 0.0
        %654 = vmatpush2.msra.mxu0 0.0
        %655 = vmatprep.subr.mxu0 0.0
        %656 = vmatpush2.msra.mxu0 0.0
        %657 = vmatprep.subr.mxu0 0.0
        %658 = vmatpush2.msra.mxu0 0.0
        %659 = vmatprep.mubr.f32.mxu0 0.0
        %660 = vmatmul.mubr.f32.gmra.mxu0 %v589
        %v661 = vpop.f32.mrf.mxu0
        %v662 = vadd.f32 %v585, %v661
        %v663 = vpop.f32.mrf.mxu0
        %664 = vdwg.mxu0
        %v665 = vmax.f32 %v662, 0.0
        %v667 = vrot.slane %v665, 7
        %vm669 = vcmask 1040384
        %v670 = vsel %vm669, 0.0, %v667
        %v671 = vrot.slane %v665, 1
        %vm673 = vcmask 1046528
        %v674 = vsel %vm673, %v671, 0.0
        %675 = vrot.lane.b32.xlu0 %v665, 32
        %v676 = vpop.permute.xlu0 %675
        %679 = vrot.lane.b32.xlu0 %v674, 64
        %v680 = vpop.permute.xlu0 %679
        %vm682 = vcmask 261120
        %v683 = vsel %vm682, %v670, %v676
        %vm684 = vcmask 523264
        %v685 = vsel %vm684, %v683, %v680
        %v686 = vld [vmem:[#allocation2] sm:$0xff]
        %v687 = vld [vmem:[#allocation2 + $0x8] sm:$0xff]
        %v688 = vld [vmem:[#allocation2 + $0x10] sm:$0xff]
        %v689 = vld [vmem:[#allocation2 + $0x18] sm:$0xff]
        %v690 = vld [vmem:[#allocation2 + $0x20] sm:$0xff]
        %v691 = vld [vmem:[#allocation2 + $0x28] sm:$0xff]
        %v692 = vld [vmem:[#allocation2 + $0x30] sm:$0xff]
        %v693 = vld [vmem:[#allocation2 + $0x38] sm:$0xff]
        %v694 = vld [vmem:[#allocation2 + $0x40] sm:$0xff]
        %v695 = vld [vmem:[#allocation2 + $0x48] sm:$0xff]
        %v696 = vld [vmem:[#allocation2 + $0x50] sm:$0xff]
        %v697 = vld [vmem:[#allocation2 + $0x58] sm:$0xff]
        %v698 = vld [vmem:[%s4] sm:$0x1]
        %v700 = vlaneseq
        %v701 = vshrl.u32 %v700, 7
        %v702 = vsub.s32 0, %v701
        %v703 = vrot.slane %v698, %v702
        %vm705 = vcmask 785408
        %v707 = vsel %vm705, %v685, 0
        %709 = vmatprep.subr.mxu0 0.0
        %710 = vmatpush1.msra.mxu0 0.0
        %711 = vmatprep.subr.mxu0 0.0
        %712 = vmatpush1.msra.mxu0 0.0
        %713 = vmatprep.subr.mxu0 0.0
        %714 = vmatpush1.msra.mxu0 0.0
        %715 = vmatprep.subr.mxu0 0.0
        %716 = vmatpush1.msra.mxu0 0.0
        %717 = vmatprep.subr.mxu0 0.0
        %718 = vmatpush1.msra.mxu0 %v697
        %719 = vmatprep.subr.mxu0 0.0
        %720 = vmatpush1.msra.mxu0 %v696
        %721 = vmatprep.subr.mxu0 0.0
        %722 = vmatpush1.msra.mxu0 %v695
        %723 = vmatprep.subr.mxu0 0.0
        %724 = vmatpush1.msra.mxu0 %v694
        %725 = vmatprep.subr.mxu0 0.0
        %726 = vmatpush1.msra.mxu0 %v693
        %727 = vmatprep.subr.mxu0 0.0
        %728 = vmatpush1.msra.mxu0 %v692
        %729 = vmatprep.subr.mxu0 0.0
        %730 = vmatpush1.msra.mxu0 %v691
        %731 = vmatprep.subr.mxu0 0.0
        %732 = vmatpush1.msra.mxu0 %v690
        %733 = vmatprep.subr.mxu0 0.0
        %734 = vmatpush1.msra.mxu0 %v689
        %735 = vmatprep.subr.mxu0 0.0
        %736 = vmatpush1.msra.mxu0 %v688
        %737 = vmatprep.subr.mxu0 0.0
        %738 = vmatpush1.msra.mxu0 %v687
        %739 = vmatprep.subr.mxu0 0.0
        %740 = vmatpush1.msra.mxu0 %v686
        %741 = vmatprep.subr.mxu0 0.0
        %742 = vmatpush2.msra.mxu0 0.0
        %743 = vmatprep.subr.mxu0 0.0
        %744 = vmatpush2.msra.mxu0 0.0
        %745 = vmatprep.subr.mxu0 0.0
        %746 = vmatpush2.msra.mxu0 0.0
        %747 = vmatprep.subr.mxu0 0.0
        %748 = vmatpush2.msra.mxu0 0.0
        %749 = vmatprep.subr.mxu0 0.0
        %750 = vmatpush2.msra.mxu0 0.0
        %751 = vmatprep.subr.mxu0 0.0
        %752 = vmatpush2.msra.mxu0 0.0
        %753 = vmatprep.subr.mxu0 0.0
        %754 = vmatpush2.msra.mxu0 0.0
        %755 = vmatprep.subr.mxu0 0.0
        %756 = vmatpush2.msra.mxu0 0.0
        %757 = vmatprep.subr.mxu0 0.0
        %758 = vmatpush2.msra.mxu0 0.0
        %759 = vmatprep.subr.mxu0 0.0
        %760 = vmatpush2.msra.mxu0 0.0
        %761 = vmatprep.subr.mxu0 0.0
        %762 = vmatpush2.msra.mxu0 0.0
        %763 = vmatprep.subr.mxu0 0.0
        %764 = vmatpush2.msra.mxu0 0.0
        %765 = vmatprep.subr.mxu0 0.0
        %766 = vmatpush2.msra.mxu0 0.0
        %767 = vmatprep.subr.mxu0 0.0
        %768 = vmatpush2.msra.mxu0 0.0
        %769 = vmatprep.subr.mxu0 0.0
        %770 = vmatpush2.msra.mxu0 0.0
        %771 = vmatprep.subr.mxu0 0.0
        %772 = vmatpush2.msra.mxu0 0.0
        %773 = vmatprep.mubr.f32.mxu0 0.0
        %774 = vmatmul.mubr.f32.gmra.mxu0 %v707
        %v775 = vpop.f32.mrf.mxu0
        %v776 = vadd.f32 %v703, %v775
        %v777 = vpop.f32.mrf.mxu0
        %778 = vdwg.mxu0
        %v779 = vmax.f32 %v776, 0.0
        %781 = vrot.lane.b32.xlu0 %v779, 96
        %v782 = vpop.permute.xlu0 %781
        %v784 = vlaneseq
        %v785 = vshrl.u32 %v784, 7
        %v786 = vadd.s32 %v785, 8
        %v787 = vlaneseq
        %v788 = vand.u32 %v787, 127
        %v789 = vshra.s32 %v785, 1
        %v790 = vshra.s32 %v786, 1
        %v791 = vand.u32 %v785, 1
        %v792 = vand.u32 %v786, 1
        %v793 = vmul.u32 %v791, 8
        %v794 = vmul.u32 %v792, 8
        %v795 = vadd.s32 %v789, %v793
        %v796 = vadd.s32 %v790, %v794
        %vm797 = vcmp.eq.s32.totalorder %v788, %v795
        %vm798 = vcmp.eq.s32.totalorder %v788, %v796
        %v799 = vsel %vm797, 1, 0
        %v800 = vsel %vm798, 1, 0
        %v801 = vcvt.s32.f32 %v799
        %v802 = vcvt.s32.f32 %v800
        %vm803 = vcmask 130048
        %v805 = vsel %vm803, %v801, 0
        %v808 = vsel %vm803, %v802, 0
        %810 = vmatprep.subr.mxu0 0.0
        %811 = vmatpush1.msra.mxu0 0.0
        %812 = vmatprep.subr.mxu0 0.0
        %813 = vmatpush1.msra.mxu0 0.0
        %814 = vmatprep.subr.mxu0 0.0
        %815 = vmatpush1.msra.mxu0 0.0
        %816 = vmatprep.subr.mxu0 0.0
        %817 = vmatpush1.msra.mxu0 0.0
        %818 = vmatprep.subr.mxu0 0.0
        %819 = vmatpush1.msra.mxu0 0.0
        %820 = vmatprep.subr.mxu0 0.0
        %821 = vmatpush1.msra.mxu0 0.0
        %822 = vmatprep.subr.mxu0 0.0
        %823 = vmatpush1.msra.mxu0 0.0
        %824 = vmatprep.subr.mxu0 0.0
        %825 = vmatpush1.msra.mxu0 0.0
        %826 = vmatprep.subr.mxu0 0.0
        %827 = vmatpush1.msra.mxu0 0.0
        %828 = vmatprep.subr.mxu0 0.0
        %829 = vmatpush1.msra.mxu0 0.0
        %830 = vmatprep.subr.mxu0 0.0
        %831 = vmatpush1.msra.mxu0 0.0
        %832 = vmatprep.subr.mxu0 0.0
        %833 = vmatpush1.msra.mxu0 0.0
        %834 = vmatprep.subr.mxu0 0.0
        %835 = vmatpush1.msra.mxu0 0.0
        %836 = vmatprep.subr.mxu0 0.0
        %837 = vmatpush1.msra.mxu0 0.0
        %838 = vmatprep.subr.mxu0 0.0
        %839 = vmatpush1.msra.mxu0 %v782
        %840 = vmatprep.subr.mxu0 0.0
        %841 = vmatpush1.msra.mxu0 %v779
        %842 = vmatprep.subr.mxu0 0.0
        %843 = vmatpush2.msra.mxu0 0.0
        %844 = vmatprep.subr.mxu0 0.0
        %845 = vmatpush2.msra.mxu0 0.0
        %846 = vmatprep.subr.mxu0 0.0
        %847 = vmatpush2.msra.mxu0 0.0
        %848 = vmatprep.subr.mxu0 0.0
        %849 = vmatpush2.msra.mxu0 0.0
        %850 = vmatprep.subr.mxu0 0.0
        %851 = vmatpush2.msra.mxu0 0.0
        %852 = vmatprep.subr.mxu0 0.0
        %853 = vmatpush2.msra.mxu0 0.0
        %854 = vmatprep.subr.mxu0 0.0
        %855 = vmatpush2.msra.mxu0 0.0
        %856 = vmatprep.subr.mxu0 0.0
        %857 = vmatpush2.msra.mxu0 0.0
        %858 = vmatprep.subr.mxu0 0.0
        %859 = vmatpush2.msra.mxu0 0.0
        %860 = vmatprep.subr.mxu0 0.0
        %861 = vmatpush2.msra.mxu0 0.0
        %862 = vmatprep.subr.mxu0 0.0
        %863 = vmatpush2.msra.mxu0 0.0
        %864 = vmatprep.subr.mxu0 0.0
        %865 = vmatpush2.msra.mxu0 0.0
        %866 = vmatprep.subr.mxu0 0.0
        %867 = vmatpush2.msra.mxu0 0.0
        %868 = vmatprep.subr.mxu0 0.0
        %869 = vmatpush2.msra.mxu0 0.0
        %870 = vmatprep.subr.mxu0 0.0
        %871 = vmatpush2.msra.mxu0 0.0
        %872 = vmatprep.subr.mxu0 0.0
        %873 = vmatpush2.msra.mxu0 0.0
        %874 = vmatprep.mubr.f32.mxu0 0.0
        %875 = vmatmul.mubr.f32.gmra.mxu0 %v805
        %v876 = vpop.f32.mrf.mxu0
        %v877 = vadd.f32 0.0, %v876
        %v878 = vpop.f32.mrf.mxu0
        %879 = vmatprep.mubr.f32.mxu0 0.0
        %880 = vmatmul.mubr.f32.gmra.mxu0 %v808
        %v881 = vpop.f32.mrf.mxu0
        %v882 = vadd.f32 0.0, %v881
        %v883 = vpop.f32.mrf.mxu0
        %884 = vdwg.mxu0
        %v887 = vrot.slane %v877, 7
        %v888 = vrot.slane %v882, 7
        %v889 = vsel %vm669, %v887, %v888
        %v892 = vsel %vm669, 0.0, %v887
        %v893 = vrot.slane %v877, 1
        %v894 = vrot.slane %v882, 1
        %v895 = vsel %vm673, %v893, %v894
        %v897 = vsel %vm673, %v894, 0.0
        %898 = vrot.lane.b32.xlu0 %v877, 32
        %v899 = vpop.permute.xlu0 %898
        %900 = vrot.lane.b32.xlu0 %v882, 32
        %v901 = vpop.permute.xlu0 %900
        %905 = vrot.lane.b32.xlu0 %v895, 64
        %v906 = vpop.permute.xlu0 %905
        %907 = vrot.lane.b32.xlu0 %v897, 64
        %v908 = vpop.permute.xlu0 %907
        %v911 = vsel %vm682, %v892, %v899
        %v912 = vsel %vm682, %v889, %v901
        %v913 = vsel %vm684, %v911, %v906
        %v914 = vsel %vm684, %v912, %v908
        %v915 = vld [vmem:[#allocation4] sm:$0xff]
        %v916 = vld [vmem:[#allocation4 + $0x8] sm:$0xff]
        %v917 = vld [vmem:[#allocation4 + $0x10] sm:$0xff]
        %v918 = vld [vmem:[#allocation4 + $0x18] sm:$0xff]
        %v919 = vld [vmem:[#allocation4 + $0x20] sm:$0xff]
        %v920 = vld [vmem:[#allocation4 + $0x28] sm:$0xff]
        %v921 = vld [vmem:[#allocation4 + $0x30] sm:$0xff]
        %v922 = vld [vmem:[#allocation4 + $0x38] sm:$0xff]
        %v923 = vld [vmem:[#allocation4 + $0x40] sm:$0xff]
        %v924 = vld [vmem:[#allocation4 + $0x48] sm:$0xff]
        %v925 = vld [vmem:[#allocation4 + $0x50] sm:$0xff]
        %v926 = vld [vmem:[#allocation4 + $0x58] sm:$0xff]
        %v927 = vld [vmem:[%s6] sm:$0x1]
        %v929 = vlaneseq
        %v930 = vshrl.u32 %v929, 7
        %v931 = vsub.s32 0, %v930
        %v932 = vrot.slane %v927, %v931
        %v935 = vsel %vm705, %v913, 0
        %v938 = vsel %vm705, %v914, 0
        %940 = vmatprep.subr.mxu0 0.0
        %941 = vmatpush1.msra.mxu0 0.0
        %942 = vmatprep.subr.mxu0 0.0
        %943 = vmatpush1.msra.mxu0 0.0
        %944 = vmatprep.subr.mxu0 0.0
        %945 = vmatpush1.msra.mxu0 0.0
        %946 = vmatprep.subr.mxu0 0.0
        %947 = vmatpush1.msra.mxu0 0.0
        %948 = vmatprep.subr.mxu0 0.0
        %949 = vmatpush1.msra.mxu0 %v926
        %950 = vmatprep.subr.mxu0 0.0
        %951 = vmatpush1.msra.mxu0 %v925
        %952 = vmatprep.subr.mxu0 0.0
        %953 = vmatpush1.msra.mxu0 %v924
        %954 = vmatprep.subr.mxu0 0.0
        %955 = vmatpush1.msra.mxu0 %v923
        %956 = vmatprep.subr.mxu0 0.0
        %957 = vmatpush1.msra.mxu0 %v922
        %958 = vmatprep.subr.mxu0 0.0
        %959 = vmatpush1.msra.mxu0 %v921
        %960 = vmatprep.subr.mxu0 0.0
        %961 = vmatpush1.msra.mxu0 %v920
        %962 = vmatprep.subr.mxu0 0.0
        %963 = vmatpush1.msra.mxu0 %v919
        %964 = vmatprep.subr.mxu0 0.0
        %965 = vmatpush1.msra.mxu0 %v918
        %966 = vmatprep.subr.mxu0 0.0
        %967 = vmatpush1.msra.mxu0 %v917
        %968 = vmatprep.subr.mxu0 0.0
        %969 = vmatpush1.msra.mxu0 %v916
        %970 = vmatprep.subr.mxu0 0.0
        %971 = vmatpush1.msra.mxu0 %v915
        %972 = vmatprep.subr.mxu0 0.0
        %973 = vmatpush2.msra.mxu0 0.0
        %974 = vmatprep.subr.mxu0 0.0
        %975 = vmatpush2.msra.mxu0 0.0
        %976 = vmatprep.subr.mxu0 0.0
        %977 = vmatpush2.msra.mxu0 0.0
        %978 = vmatprep.subr.mxu0 0.0
        %979 = vmatpush2.msra.mxu0 0.0
        %980 = vmatprep.subr.mxu0 0.0
        %981 = vmatpush2.msra.mxu0 0.0
        %982 = vmatprep.subr.mxu0 0.0
        %983 = vmatpush2.msra.mxu0 0.0
        %984 = vmatprep.subr.mxu0 0.0
        %985 = vmatpush2.msra.mxu0 0.0
        %986 = vmatprep.subr.mxu0 0.0
        %987 = vmatpush2.msra.mxu0 0.0
        %988 = vmatprep.subr.mxu0 0.0
        %989 = vmatpush2.msra.mxu0 0.0
        %990 = vmatprep.subr.mxu0 0.0
        %991 = vmatpush2.msra.mxu0 0.0
        %992 = vmatprep.subr.mxu0 0.0
        %993 = vmatpush2.msra.mxu0 0.0
        %994 = vmatprep.subr.mxu0 0.0
        %995 = vmatpush2.msra.mxu0 0.0
        %996 = vmatprep.subr.mxu0 0.0
        %997 = vmatpush2.msra.mxu0 0.0
        %998 = vmatprep.subr.mxu0 0.0
        %999 = vmatpush2.msra.mxu0 0.0
        %1000 = vmatprep.subr.mxu0 0.0
        %1001 = vmatpush2.msra.mxu0 0.0
        %1002 = vmatprep.subr.mxu0 0.0
        %1003 = vmatpush2.msra.mxu0 0.0
        %1004 = vmatprep.mubr.f32.mxu0 0.0
        %1005 = vmatmul.mubr.f32.gmra.mxu0 %v935
        %v1006 = vpop.f32.mrf.mxu0
        %v1007 = vadd.f32 %v932, %v1006
        %v1008 = vpop.f32.mrf.mxu0
        %1009 = vmatprep.mubr.f32.mxu0 0.0
        %1010 = vmatmul.mubr.f32.gmra.mxu0 %v938
        %v1011 = vpop.f32.mrf.mxu0
        %v1012 = vadd.f32 %v932, %v1011
        %v1013 = vpop.f32.mrf.mxu0
        %1014 = vdwg.mxu0
        %v1015 = vmax.f32 %v1007, 0.0
        %v1016 = vmax.f32 %v1012, 0.0
        %1019 = vrot.lane.b32.xlu0 %v1015, 96
        %v1020 = vpop.permute.xlu0 %1019
        %1021 = vrot.lane.b32.xlu0 %v1016, 96
        %v1022 = vpop.permute.xlu0 %1021
        %v1025 = vadd.s32 %v785, 16
        %v1026 = vadd.s32 %v785, 24
        %v1027 = vshra.s32 %v1025, 1
        %v1028 = vshra.s32 %v1026, 1
        %v1029 = vand.u32 %v1025, 1
        %v1030 = vand.u32 %v1026, 1
        %v1031 = vmul.u32 %v791, 16
        %v1032 = vmul.u32 %v792, 16
        %v1033 = vmul.u32 %v1029, 16
        %v1034 = vmul.u32 %v1030, 16
        %v1035 = vadd.s32 %v789, %v1031
        %v1036 = vadd.s32 %v790, %v1032
        %v1037 = vadd.s32 %v1027, %v1033
        %v1038 = vadd.s32 %v1028, %v1034
        %vm1039 = vcmp.eq.s32.totalorder %v788, %v1035
        %vm1040 = vcmp.eq.s32.totalorder %v788, %v1036
        %vm1041 = vcmp.eq.s32.totalorder %v788, %v1037
        %vm1042 = vcmp.eq.s32.totalorder %v788, %v1038
        %v1043 = vsel %vm1039, 1, 0
        %v1044 = vsel %vm1040, 1, 0
        %v1045 = vsel %vm1041, 1, 0
        %v1046 = vsel %vm1042, 1, 0
        %v1047 = vcvt.s32.f32 %v1043
        %v1048 = vcvt.s32.f32 %v1044
        %v1049 = vcvt.s32.f32 %v1045
        %v1050 = vcvt.s32.f32 %v1046
        %v1052 = vsel %vm682, %v1047, 0
        %v1055 = vsel %vm682, %v1048, 0
        %v1058 = vsel %vm682, %v1049, 0
        %v1061 = vsel %vm682, %v1050, 0
        %1063 = vmatprep.subr.mxu0 0.0
        %1064 = vmatpush1.msra.mxu0 0.0
        %1065 = vmatprep.subr.mxu0 0.0
        %1066 = vmatpush1.msra.mxu0 0.0
        %1067 = vmatprep.subr.mxu0 0.0
        %1068 = vmatpush1.msra.mxu0 0.0
        %1069 = vmatprep.subr.mxu0 0.0
        %1070 = vmatpush1.msra.mxu0 0.0
        %1071 = vmatprep.subr.mxu0 0.0
        %1072 = vmatpush1.msra.mxu0 0.0
        %1073 = vmatprep.subr.mxu0 0.0
        %1074 = vmatpush1.msra.mxu0 0.0
        %1075 = vmatprep.subr.mxu0 0.0
        %1076 = vmatpush1.msra.mxu0 0.0
        %1077 = vmatprep.subr.mxu0 0.0
        %1078 = vmatpush1.msra.mxu0 0.0
        %1079 = vmatprep.subr.mxu0 0.0
        %1080 = vmatpush1.msra.mxu0 0.0
        %1081 = vmatprep.subr.mxu0 0.0
        %1082 = vmatpush1.msra.mxu0 0.0
        %1083 = vmatprep.subr.mxu0 0.0
        %1084 = vmatpush1.msra.mxu0 0.0
        %1085 = vmatprep.subr.mxu0 0.0
        %1086 = vmatpush1.msra.mxu0 0.0
        %1087 = vmatprep.subr.mxu0 0.0
        %1088 = vmatpush1.msra.mxu0 %v1022
        %1089 = vmatprep.subr.mxu0 0.0
        %1090 = vmatpush1.msra.mxu0 %v1020
        %1091 = vmatprep.subr.mxu0 0.0
        %1092 = vmatpush1.msra.mxu0 %v1016
        %1093 = vmatprep.subr.mxu0 0.0
        %1094 = vmatpush1.msra.mxu0 %v1015
        %1095 = vmatprep.subr.mxu0 0.0
        %1096 = vmatpush2.msra.mxu0 0.0
        %1097 = vmatprep.subr.mxu0 0.0
        %1098 = vmatpush2.msra.mxu0 0.0
        %1099 = vmatprep.subr.mxu0 0.0
        %1100 = vmatpush2.msra.mxu0 0.0
        %1101 = vmatprep.subr.mxu0 0.0
        %1102 = vmatpush2.msra.mxu0 0.0
        %1103 = vmatprep.subr.mxu0 0.0
        %1104 = vmatpush2.msra.mxu0 0.0
        %1105 = vmatprep.subr.mxu0 0.0
        %1106 = vmatpush2.msra.mxu0 0.0
        %1107 = vmatprep.subr.mxu0 0.0
        %1108 = vmatpush2.msra.mxu0 0.0
        %1109 = vmatprep.subr.mxu0 0.0
        %1110 = vmatpush2.msra.mxu0 0.0
        %1111 = vmatprep.subr.mxu0 0.0
        %1112 = vmatpush2.msra.mxu0 0.0
        %1113 = vmatprep.subr.mxu0 0.0
        %1114 = vmatpush2.msra.mxu0 0.0
        %1115 = vmatprep.subr.mxu0 0.0
        %1116 = vmatpush2.msra.mxu0 0.0
        %1117 = vmatprep.subr.mxu0 0.0
        %1118 = vmatpush2.msra.mxu0 0.0
        %1119 = vmatprep.subr.mxu0 0.0
        %1120 = vmatpush2.msra.mxu0 0.0
        %1121 = vmatprep.subr.mxu0 0.0
        %1122 = vmatpush2.msra.mxu0 0.0
        %1123 = vmatprep.subr.mxu0 0.0
        %1124 = vmatpush2.msra.mxu0 0.0
        %1125 = vmatprep.subr.mxu0 0.0
        %1126 = vmatpush2.msra.mxu0 0.0
        %1127 = vmatprep.mubr.f32.mxu0 0.0
        %1128 = vmatmul.mubr.f32.gmra.mxu0 %v1052
        %v1129 = vpop.f32.mrf.mxu0
        %v1130 = vadd.f32 0.0, %v1129
        %v1131 = vpop.f32.mrf.mxu0
        %1132 = vmatprep.mubr.f32.mxu0 0.0
        %1133 = vmatmul.mubr.f32.gmra.mxu0 %v1055
        %v1134 = vpop.f32.mrf.mxu0
        %v1135 = vadd.f32 0.0, %v1134
        %v1136 = vpop.f32.mrf.mxu0
        %1137 = vmatprep.mubr.f32.mxu0 0.0
        %1138 = vmatmul.mubr.f32.gmra.mxu0 %v1058
        %v1139 = vpop.f32.mrf.mxu0
        %v1140 = vadd.f32 0.0, %v1139
        %v1141 = vpop.f32.mrf.mxu0
        %1142 = vmatprep.mubr.f32.mxu0 0.0
        %1143 = vmatmul.mubr.f32.gmra.mxu0 %v1061
        %v1144 = vpop.f32.mrf.mxu0
        %v1145 = vadd.f32 0.0, %v1144
        %v1146 = vpop.f32.mrf.mxu0
        %1147 = vdwg.mxu0
        %v1152 = vrot.slane %v1130, 7
        %v1153 = vrot.slane %v1135, 7
        %v1154 = vsel %vm669, %v1152, %v1153
        %v1155 = vrot.slane %v1140, 7
        %v1156 = vsel %vm669, %v1153, %v1155
        %v1157 = vrot.slane %v1145, 7
        %v1158 = vsel %vm669, %v1155, %v1157
        %v1163 = vsel %vm669, 0.0, %v1152
        %v1164 = vrot.slane %v1130, 1
        %v1165 = vrot.slane %v1135, 1
        %v1166 = vsel %vm673, %v1164, %v1165
        %v1167 = vrot.slane %v1140, 1
        %v1168 = vsel %vm673, %v1165, %v1167
        %v1169 = vrot.slane %v1145, 1
        %v1170 = vsel %vm673, %v1167, %v1169
        %v1172 = vsel %vm673, %v1169, 0.0
        %1173 = vrot.lane.b32.xlu0 %v1130, 32
        %v1174 = vpop.permute.xlu0 %1173
        %1175 = vrot.lane.b32.xlu0 %v1135, 32
        %v1176 = vpop.permute.xlu0 %1175
        %1177 = vrot.lane.b32.xlu0 %v1140, 32
        %v1178 = vpop.permute.xlu0 %1177
        %1179 = vrot.lane.b32.xlu0 %v1145, 32
        %v1180 = vpop.permute.xlu0 %1179
        %1186 = vrot.lane.b32.xlu0 %v1166, 64
        %v1187 = vpop.permute.xlu0 %1186
        %1188 = vrot.lane.b32.xlu0 %v1168, 64
        %v1189 = vpop.permute.xlu0 %1188
        %1190 = vrot.lane.b32.xlu0 %v1170, 64
        %v1191 = vpop.permute.xlu0 %1190
        %1192 = vrot.lane.b32.xlu0 %v1172, 64
        %v1193 = vpop.permute.xlu0 %1192
        %v1198 = vsel %vm682, %v1163, %v1174
        %v1199 = vsel %vm682, %v1154, %v1176
        %v1200 = vsel %vm682, %v1156, %v1178
        %v1201 = vsel %vm682, %v1158, %v1180
        %v1202 = vsel %vm684, %v1198, %v1187
        %v1203 = vsel %vm684, %v1199, %v1189
        %v1204 = vsel %vm684, %v1200, %v1191
        %v1205 = vsel %vm684, %v1201, %v1193
        %v1206 = vld [vmem:[#allocation6] sm:$0xff]
        %v1207 = vld [vmem:[#allocation6 + $0x8] sm:$0xff]
        %v1208 = vld [vmem:[#allocation6 + $0x10] sm:$0xff]
        %v1209 = vld [vmem:[#allocation6 + $0x18] sm:$0xff]
        %v1210 = vld [vmem:[#allocation6 + $0x20] sm:$0xff]
        %v1211 = vld [vmem:[#allocation6 + $0x28] sm:$0xff]
        %v1212 = vld [vmem:[#allocation6 + $0x30] sm:$0xff]
        %v1213 = vld [vmem:[#allocation6 + $0x38] sm:$0xff]
        %v1214 = vld [vmem:[#allocation6 + $0x40] sm:$0xff]
        %v1215 = vld [vmem:[#allocation6 + $0x48] sm:$0xff]
        %v1216 = vld [vmem:[#allocation6 + $0x50] sm:$0xff]
        %v1217 = vld [vmem:[#allocation6 + $0x58] sm:$0xff]
        %v1218 = vld [vmem:[%s8] sm:$0x1]
        %v1220 = vlaneseq
        %v1221 = vshrl.u32 %v1220, 7
        %v1222 = vsub.s32 0, %v1221
        %v1223 = vrot.slane %v1218, %v1222
        %v1226 = vsel %vm705, %v1202, 0
        %v1229 = vsel %vm705, %v1203, 0
        %v1232 = vsel %vm705, %v1204, 0
        %v1235 = vsel %vm705, %v1205, 0
        %1237 = vmatprep.subr.mxu0 0.0
        %1238 = vmatpush1.msra.mxu0 0.0
        %1239 = vmatprep.subr.mxu0 0.0
        %1240 = vmatpush1.msra.mxu0 0.0
        %1241 = vmatprep.subr.mxu0 0.0
        %1242 = vmatpush1.msra.mxu0 0.0
        %1243 = vmatprep.subr.mxu0 0.0
        %1244 = vmatpush1.msra.mxu0 0.0
        %1245 = vmatprep.subr.mxu0 0.0
        %1246 = vmatpush1.msra.mxu0 %v1217
        %1247 = vmatprep.subr.mxu0 0.0
        %1248 = vmatpush1.msra.mxu0 %v1216
        %1249 = vmatprep.subr.mxu0 0.0
        %1250 = vmatpush1.msra.mxu0 %v1215
        %1251 = vmatprep.subr.mxu0 0.0
        %1252 = vmatpush1.msra.mxu0 %v1214
        %1253 = vmatprep.subr.mxu0 0.0
        %1254 = vmatpush1.msra.mxu0 %v1213
        %1255 = vmatprep.subr.mxu0 0.0
        %1256 = vmatpush1.msra.mxu0 %v1212
        %1257 = vmatprep.subr.mxu0 0.0
        %1258 = vmatpush1.msra.mxu0 %v1211
        %1259 = vmatprep.subr.mxu0 0.0
        %1260 = vmatpush1.msra.mxu0 %v1210
        %1261 = vmatprep.subr.mxu0 0.0
        %1262 = vmatpush1.msra.mxu0 %v1209
        %1263 = vmatprep.subr.mxu0 0.0
        %1264 = vmatpush1.msra.mxu0 %v1208
        %1265 = vmatprep.subr.mxu0 0.0
        %1266 = vmatpush1.msra.mxu0 %v1207
        %1267 = vmatprep.subr.mxu0 0.0
        %1268 = vmatpush1.msra.mxu0 %v1206
        %1269 = vmatprep.subr.mxu0 0.0
        %1270 = vmatpush2.msra.mxu0 0.0
        %1271 = vmatprep.subr.mxu0 0.0
        %1272 = vmatpush2.msra.mxu0 0.0
        %1273 = vmatprep.subr.mxu0 0.0
        %1274 = vmatpush2.msra.mxu0 0.0
        %1275 = vmatprep.subr.mxu0 0.0
        %1276 = vmatpush2.msra.mxu0 0.0
        %1277 = vmatprep.subr.mxu0 0.0
        %1278 = vmatpush2.msra.mxu0 0.0
        %1279 = vmatprep.subr.mxu0 0.0
        %1280 = vmatpush2.msra.mxu0 0.0
        %1281 = vmatprep.subr.mxu0 0.0
        %1282 = vmatpush2.msra.mxu0 0.0
        %1283 = vmatprep.subr.mxu0 0.0
        %1284 = vmatpush2.msra.mxu0 0.0
        %1285 = vmatprep.subr.mxu0 0.0
        %1286 = vmatpush2.msra.mxu0 0.0
        %1287 = vmatprep.subr.mxu0 0.0
        %1288 = vmatpush2.msra.mxu0 0.0
        %1289 = vmatprep.subr.mxu0 0.0
        %1290 = vmatpush2.msra.mxu0 0.0
        %1291 = vmatprep.subr.mxu0 0.0
        %1292 = vmatpush2.msra.mxu0 0.0
        %1293 = vmatprep.subr.mxu0 0.0
        %1294 = vmatpush2.msra.mxu0 0.0
        %1295 = vmatprep.subr.mxu0 0.0
        %1296 = vmatpush2.msra.mxu0 0.0
        %1297 = vmatprep.subr.mxu0 0.0
        %1298 = vmatpush2.msra.mxu0 0.0
        %1299 = vmatprep.subr.mxu0 0.0
        %1300 = vmatpush2.msra.mxu0 0.0
        %1301 = vmatprep.mubr.f32.mxu0 0.0
        %1302 = vmatmul.mubr.f32.gmra.mxu0 %v1226
        %v1303 = vpop.f32.mrf.mxu0
        %v1304 = vadd.f32 %v1223, %v1303
        %v1305 = vpop.f32.mrf.mxu0
        %1306 = vmatprep.mubr.f32.mxu0 0.0
        %1307 = vmatmul.mubr.f32.gmra.mxu0 %v1229
        %v1308 = vpop.f32.mrf.mxu0
        %v1309 = vadd.f32 %v1223, %v1308
        %v1310 = vpop.f32.mrf.mxu0
        %1311 = vmatprep.mubr.f32.mxu0 0.0
        %1312 = vmatmul.mubr.f32.gmra.mxu0 %v1232
        %v1313 = vpop.f32.mrf.mxu0
        %v1314 = vadd.f32 %v1223, %v1313
        %v1315 = vpop.f32.mrf.mxu0
        %1316 = vmatprep.mubr.f32.mxu0 0.0
        %1317 = vmatmul.mubr.f32.gmra.mxu0 %v1235
        %v1318 = vpop.f32.mrf.mxu0
        %v1319 = vadd.f32 %v1223, %v1318
        %v1320 = vpop.f32.mrf.mxu0
        %1321 = vdwg.mxu0
        %v1322 = vmax.f32 %v1304, 0.0
        %v1323 = vmax.f32 %v1309, 0.0
        %v1324 = vmax.f32 %v1314, 0.0
        %v1325 = vmax.f32 %v1319, 0.0
        %1330 = vrot.lane.b32.xlu0 %v1322, 96
        %v1331 = vpop.permute.xlu0 %1330
        %1332 = vrot.lane.b32.xlu0 %v1323, 96
        %v1333 = vpop.permute.xlu0 %1332
        %1334 = vrot.lane.b32.xlu0 %v1324, 96
        %v1335 = vpop.permute.xlu0 %1334
        %1336 = vrot.lane.b32.xlu0 %v1325, 96
        %v1337 = vpop.permute.xlu0 %1336
        %v1342 = vadd.s32 %v785, 32
        %v1343 = vadd.s32 %v785, 40
        %v1344 = vadd.s32 %v785, 48
        %v1345 = vadd.s32 %v785, 56
        %v1346 = vshra.s32 %v1342, 1
        %v1347 = vshra.s32 %v1343, 1
        %v1348 = vshra.s32 %v1344, 1
        %v1349 = vshra.s32 %v1345, 1
        %v1350 = vand.u32 %v1342, 1
        %v1351 = vand.u32 %v1343, 1
        %v1352 = vand.u32 %v1344, 1
        %v1353 = vand.u32 %v1345, 1
        %v1354 = vmul.u32 %v791, 32
        %v1355 = vmul.u32 %v792, 32
        %v1356 = vmul.u32 %v1029, 32
        %v1357 = vmul.u32 %v1030, 32
        %v1358 = vmul.u32 %v1350, 32
        %v1359 = vmul.u32 %v1351, 32
        %v1360 = vmul.u32 %v1352, 32
        %v1361 = vmul.u32 %v1353, 32
        %v1362 = vadd.s32 %v789, %v1354
        %v1363 = vadd.s32 %v790, %v1355
        %v1364 = vadd.s32 %v1027, %v1356
        %v1365 = vadd.s32 %v1028, %v1357
        %v1366 = vadd.s32 %v1346, %v1358
        %v1367 = vadd.s32 %v1347, %v1359
        %v1368 = vadd.s32 %v1348, %v1360
        %v1369 = vadd.s32 %v1349, %v1361
        %vm1370 = vcmp.eq.s32.totalorder %v788, %v1362
        %vm1371 = vcmp.eq.s32.totalorder %v788, %v1363
        %vm1372 = vcmp.eq.s32.totalorder %v788, %v1364
        %vm1373 = vcmp.eq.s32.totalorder %v788, %v1365
        %vm1374 = vcmp.eq.s32.totalorder %v788, %v1366
        %vm1375 = vcmp.eq.s32.totalorder %v788, %v1367
        %vm1376 = vcmp.eq.s32.totalorder %v788, %v1368
        %vm1377 = vcmp.eq.s32.totalorder %v788, %v1369
        %v1378 = vsel %vm1370, 1, 0
        %v1379 = vsel %vm1371, 1, 0
        %v1380 = vsel %vm1372, 1, 0
        %v1381 = vsel %vm1373, 1, 0
        %v1382 = vsel %vm1374, 1, 0
        %v1383 = vsel %vm1375, 1, 0
        %v1384 = vsel %vm1376, 1, 0
        %v1385 = vsel %vm1377, 1, 0
        %v1386 = vcvt.s32.f32 %v1378
        %v1387 = vcvt.s32.f32 %v1379
        %v1388 = vcvt.s32.f32 %v1380
        %v1389 = vcvt.s32.f32 %v1381
        %v1390 = vcvt.s32.f32 %v1382
        %v1391 = vcvt.s32.f32 %v1383
        %v1392 = vcvt.s32.f32 %v1384
        %v1393 = vcvt.s32.f32 %v1385
        %v1395 = vsel %vm684, %v1386, 0
        %v1398 = vsel %vm684, %v1387, 0
        %v1401 = vsel %vm684, %v1388, 0
        %v1404 = vsel %vm684, %v1389, 0
        %v1407 = vsel %vm684, %v1390, 0
        %v1410 = vsel %vm684, %v1391, 0
        %v1413 = vsel %vm684, %v1392, 0
        %v1416 = vsel %vm684, %v1393, 0
        %1418 = vmatprep.subr.mxu0 0.0
        %1419 = vmatpush1.msra.mxu0 0.0
        %1420 = vmatprep.subr.mxu0 0.0
        %1421 = vmatpush1.msra.mxu0 0.0
        %1422 = vmatprep.subr.mxu0 0.0
        %1423 = vmatpush1.msra.mxu0 0.0
        %1424 = vmatprep.subr.mxu0 0.0
        %1425 = vmatpush1.msra.mxu0 0.0
        %1426 = vmatprep.subr.mxu0 0.0
        %1427 = vmatpush1.msra.mxu0 0.0
        %1428 = vmatprep.subr.mxu0 0.0
        %1429 = vmatpush1.msra.mxu0 0.0
        %1430 = vmatprep.subr.mxu0 0.0
        %1431 = vmatpush1.msra.mxu0 0.0
        %1432 = vmatprep.subr.mxu0 0.0
        %1433 = vmatpush1.msra.mxu0 0.0
        %1434 = vmatprep.subr.mxu0 0.0
        %1435 = vmatpush1.msra.mxu0 %v1337
        %1436 = vmatprep.subr.mxu0 0.0
        %1437 = vmatpush1.msra.mxu0 %v1335
        %1438 = vmatprep.subr.mxu0 0.0
        %1439 = vmatpush1.msra.mxu0 %v1333
        %1440 = vmatprep.subr.mxu0 0.0
        %1441 = vmatpush1.msra.mxu0 %v1331
        %1442 = vmatprep.subr.mxu0 0.0
        %1443 = vmatpush1.msra.mxu0 %v1325
        %1444 = vmatprep.subr.mxu0 0.0
        %1445 = vmatpush1.msra.mxu0 %v1324
        %1446 = vmatprep.subr.mxu0 0.0
        %1447 = vmatpush1.msra.mxu0 %v1323
        %1448 = vmatprep.subr.mxu0 0.0
        %1449 = vmatpush1.msra.mxu0 %v1322
        %1450 = vmatprep.subr.mxu0 0.0
        %1451 = vmatpush2.msra.mxu0 0.0
        %1452 = vmatprep.subr.mxu0 0.0
        %1453 = vmatpush2.msra.mxu0 0.0
        %1454 = vmatprep.subr.mxu0 0.0
        %1455 = vmatpush2.msra.mxu0 0.0
        %1456 = vmatprep.subr.mxu0 0.0
        %1457 = vmatpush2.msra.mxu0 0.0
        %1458 = vmatprep.subr.mxu0 0.0
        %1459 = vmatpush2.msra.mxu0 0.0
        %1460 = vmatprep.subr.mxu0 0.0
        %1461 = vmatpush2.msra.mxu0 0.0
        %1462 = vmatprep.subr.mxu0 0.0
        %1463 = vmatpush2.msra.mxu0 0.0
        %1464 = vmatprep.subr.mxu0 0.0
        %1465 = vmatpush2.msra.mxu0 0.0
        %1466 = vmatprep.subr.mxu0 0.0
        %1467 = vmatpush2.msra.mxu0 0.0
        %1468 = vmatprep.subr.mxu0 0.0
        %1469 = vmatpush2.msra.mxu0 0.0
        %1470 = vmatprep.subr.mxu0 0.0
        %1471 = vmatpush2.msra.mxu0 0.0
        %1472 = vmatprep.subr.mxu0 0.0
        %1473 = vmatpush2.msra.mxu0 0.0
        %1474 = vmatprep.subr.mxu0 0.0
        %1475 = vmatpush2.msra.mxu0 0.0
        %1476 = vmatprep.subr.mxu0 0.0
        %1477 = vmatpush2.msra.mxu0 0.0
        %1478 = vmatprep.subr.mxu0 0.0
        %1479 = vmatpush2.msra.mxu0 0.0
        %1480 = vmatprep.subr.mxu0 0.0
        %1481 = vmatpush2.msra.mxu0 0.0
        %1482 = vmatprep.mubr.f32.mxu0 0.0
        %1483 = vmatmul.mubr.f32.gmra.mxu0 %v1395
        %v1484 = vpop.f32.mrf.mxu0
        %v1485 = vadd.f32 0.0, %v1484
        %v1486 = vpop.f32.mrf.mxu0
        %1487 = vmatprep.mubr.f32.mxu0 0.0
        %1488 = vmatmul.mubr.f32.gmra.mxu0 %v1398
        %v1489 = vpop.f32.mrf.mxu0
        %v1490 = vadd.f32 0.0, %v1489
        %v1491 = vpop.f32.mrf.mxu0
        %1492 = vmatprep.mubr.f32.mxu0 0.0
        %1493 = vmatmul.mubr.f32.gmra.mxu0 %v1401
        %v1494 = vpop.f32.mrf.mxu0
        %v1495 = vadd.f32 0.0, %v1494
        %v1496 = vpop.f32.mrf.mxu0
        %1497 = vmatprep.mubr.f32.mxu0 0.0
        %1498 = vmatmul.mubr.f32.gmra.mxu0 %v1404
        %v1499 = vpop.f32.mrf.mxu0
        %v1500 = vadd.f32 0.0, %v1499
        %v1501 = vpop.f32.mrf.mxu0
        %1502 = vmatprep.mubr.f32.mxu0 0.0
        %1503 = vmatmul.mubr.f32.gmra.mxu0 %v1407
        %v1504 = vpop.f32.mrf.mxu0
        %v1505 = vadd.f32 0.0, %v1504
        %v1506 = vpop.f32.mrf.mxu0
        %1507 = vmatprep.mubr.f32.mxu0 0.0
        %1508 = vmatmul.mubr.f32.gmra.mxu0 %v1410
        %v1509 = vpop.f32.mrf.mxu0
        %v1510 = vadd.f32 0.0, %v1509
        %v1511 = vpop.f32.mrf.mxu0
        %1512 = vmatprep.mubr.f32.mxu0 0.0
        %1513 = vmatmul.mubr.f32.gmra.mxu0 %v1413
        %v1514 = vpop.f32.mrf.mxu0
        %v1515 = vadd.f32 0.0, %v1514
        %v1516 = vpop.f32.mrf.mxu0
        %1517 = vmatprep.mubr.f32.mxu0 0.0
        %1518 = vmatmul.mubr.f32.gmra.mxu0 %v1416
        %v1519 = vpop.f32.mrf.mxu0
        %v1520 = vadd.f32 0.0, %v1519
        %v1521 = vpop.f32.mrf.mxu0
        %1522 = vdwg.mxu0
        %v1531 = vrot.slane %v1485, 7
        %v1532 = vrot.slane %v1490, 7
        %v1533 = vsel %vm669, %v1531, %v1532
        %v1534 = vrot.slane %v1495, 7
        %v1535 = vsel %vm669, %v1532, %v1534
        %v1536 = vrot.slane %v1500, 7
        %v1537 = vsel %vm669, %v1534, %v1536
        %v1538 = vrot.slane %v1505, 7
        %v1539 = vsel %vm669, %v1536, %v1538
        %v1540 = vrot.slane %v1510, 7
        %v1541 = vsel %vm669, %v1538, %v1540
        %v1542 = vrot.slane %v1515, 7
        %v1543 = vsel %vm669, %v1540, %v1542
        %v1544 = vrot.slane %v1520, 7
        %v1545 = vsel %vm669, %v1542, %v1544
        %v1554 = vsel %vm669, 0.0, %v1531
        %v1555 = vrot.slane %v1485, 1
        %v1556 = vrot.slane %v1490, 1
        %v1557 = vsel %vm673, %v1555, %v1556
        %v1558 = vrot.slane %v1495, 1
        %v1559 = vsel %vm673, %v1556, %v1558
        %v1560 = vrot.slane %v1500, 1
        %v1561 = vsel %vm673, %v1558, %v1560
        %v1562 = vrot.slane %v1505, 1
        %v1563 = vsel %vm673, %v1560, %v1562
        %v1564 = vrot.slane %v1510, 1
        %v1565 = vsel %vm673, %v1562, %v1564
        %v1566 = vrot.slane %v1515, 1
        %v1567 = vsel %vm673, %v1564, %v1566
        %v1568 = vrot.slane %v1520, 1
        %v1569 = vsel %vm673, %v1566, %v1568
        %v1571 = vsel %vm673, %v1568, 0.0
        %1572 = vrot.lane.b32.xlu0 %v1485, 32
        %v1573 = vpop.permute.xlu0 %1572
        %1574 = vrot.lane.b32.xlu0 %v1490, 32
        %v1575 = vpop.permute.xlu0 %1574
        %1576 = vrot.lane.b32.xlu0 %v1495, 32
        %v1577 = vpop.permute.xlu0 %1576
        %1578 = vrot.lane.b32.xlu0 %v1500, 32
        %v1579 = vpop.permute.xlu0 %1578
        %1580 = vrot.lane.b32.xlu0 %v1505, 32
        %v1581 = vpop.permute.xlu0 %1580
        %1582 = vrot.lane.b32.xlu0 %v1510, 32
        %v1583 = vpop.permute.xlu0 %1582
        %1584 = vrot.lane.b32.xlu0 %v1515, 32
        %v1585 = vpop.permute.xlu0 %1584
        %1586 = vrot.lane.b32.xlu0 %v1520, 32
        %v1587 = vpop.permute.xlu0 %1586
        %1597 = vrot.lane.b32.xlu0 %v1557, 64
        %v1598 = vpop.permute.xlu0 %1597
        %1599 = vrot.lane.b32.xlu0 %v1559, 64
        %v1600 = vpop.permute.xlu0 %1599
        %1601 = vrot.lane.b32.xlu0 %v1561, 64
        %v1602 = vpop.permute.xlu0 %1601
        %1603 = vrot.lane.b32.xlu0 %v1563, 64
        %v1604 = vpop.permute.xlu0 %1603
        %1605 = vrot.lane.b32.xlu0 %v1565, 64
        %v1606 = vpop.permute.xlu0 %1605
        %1607 = vrot.lane.b32.xlu0 %v1567, 64
        %v1608 = vpop.permute.xlu0 %1607
        %1609 = vrot.lane.b32.xlu0 %v1569, 64
        %v1610 = vpop.permute.xlu0 %1609
        %1611 = vrot.lane.b32.xlu0 %v1571, 64
        %v1612 = vpop.permute.xlu0 %1611
        %v1621 = vsel %vm682, %v1554, %v1573
        %v1622 = vsel %vm682, %v1533, %v1575
        %v1623 = vsel %vm682, %v1535, %v1577
        %v1624 = vsel %vm682, %v1537, %v1579
        %v1625 = vsel %vm682, %v1539, %v1581
        %v1626 = vsel %vm682, %v1541, %v1583
        %v1627 = vsel %vm682, %v1543, %v1585
        %v1628 = vsel %vm682, %v1545, %v1587
        %v1629 = vsel %vm684, %v1621, %v1598
        %v1630 = vsel %vm684, %v1622, %v1600
        %v1631 = vsel %vm684, %v1623, %v1602
        %v1632 = vsel %vm684, %v1624, %v1604
        %v1633 = vsel %vm684, %v1625, %v1606
        %v1634 = vsel %vm684, %v1626, %v1608
        %v1635 = vsel %vm684, %v1627, %v1610
        %v1636 = vsel %vm684, %v1628, %v1612
        %v1637 = vld [vmem:[#allocation7] sm:$0xff]
        %v1638 = vld [vmem:[#allocation7 + $0x8] sm:$0xff]
        %v1639 = vld [vmem:[#allocation7 + $0x10] sm:$0xff]
        %v1640 = vld [vmem:[#allocation7 + $0x18] sm:$0xff]
        %v1641 = vld [vmem:[#allocation7 + $0x20] sm:$0xff]
        %v1642 = vld [vmem:[#allocation7 + $0x28] sm:$0xff]
        %v1643 = vld [vmem:[#allocation7 + $0x30] sm:$0xff]
        %v1644 = vld [vmem:[#allocation7 + $0x38] sm:$0xff]
        %v1645 = vld [vmem:[#allocation7 + $0x40] sm:$0xff]
        %v1646 = vld [vmem:[#allocation7 + $0x48] sm:$0xff]
        %v1647 = vld [vmem:[#allocation7 + $0x50] sm:$0xff]
        %v1648 = vld [vmem:[#allocation7 + $0x58] sm:$0xff]
        %v1649 = vld [vmem:[%s10] sm:$0x1]
        %v1651 = vlaneseq
        %v1652 = vshrl.u32 %v1651, 7
        %v1653 = vsub.s32 0, %v1652
        %v1654 = vrot.slane %v1649, %v1653
        %v1657 = vsel %vm705, %v1629, 0
        %v1660 = vsel %vm705, %v1630, 0
        %v1663 = vsel %vm705, %v1631, 0
        %v1666 = vsel %vm705, %v1632, 0
        %v1669 = vsel %vm705, %v1633, 0
        %v1672 = vsel %vm705, %v1634, 0
        %v1675 = vsel %vm705, %v1635, 0
        %v1678 = vsel %vm705, %v1636, 0
        %1680 = vmatprep.subr.mxu0 0.0
        %1681 = vmatpush1.msra.mxu0 0.0
        %1682 = vmatprep.subr.mxu0 0.0
        %1683 = vmatpush1.msra.mxu0 0.0
        %1684 = vmatprep.subr.mxu0 0.0
        %1685 = vmatpush1.msra.mxu0 0.0
        %1686 = vmatprep.subr.mxu0 0.0
        %1687 = vmatpush1.msra.mxu0 0.0
        %1688 = vmatprep.subr.mxu0 0.0
        %1689 = vmatpush1.msra.mxu0 %v1648
        %1690 = vmatprep.subr.mxu0 0.0
        %1691 = vmatpush1.msra.mxu0 %v1647
        %1692 = vmatprep.subr.mxu0 0.0
        %1693 = vmatpush1.msra.mxu0 %v1646
        %1694 = vmatprep.subr.mxu0 0.0
        %1695 = vmatpush1.msra.mxu0 %v1645
        %1696 = vmatprep.subr.mxu0 0.0
        %1697 = vmatpush1.msra.mxu0 %v1644
        %1698 = vmatprep.subr.mxu0 0.0
        %1699 = vmatpush1.msra.mxu0 %v1643
        %1700 = vmatprep.subr.mxu0 0.0
        %1701 = vmatpush1.msra.mxu0 %v1642
        %1702 = vmatprep.subr.mxu0 0.0
        %1703 = vmatpush1.msra.mxu0 %v1641
        %1704 = vmatprep.subr.mxu0 0.0
        %1705 = vmatpush1.msra.mxu0 %v1640
        %1706 = vmatprep.subr.mxu0 0.0
        %1707 = vmatpush1.msra.mxu0 %v1639
        %1708 = vmatprep.subr.mxu0 0.0
        %1709 = vmatpush1.msra.mxu0 %v1638
        %1710 = vmatprep.subr.mxu0 0.0
        %1711 = vmatpush1.msra.mxu0 %v1637
        %1712 = vmatprep.subr.mxu0 0.0
        %1713 = vmatpush2.msra.mxu0 0.0
        %1714 = vmatprep.subr.mxu0 0.0
        %1715 = vmatpush2.msra.mxu0 0.0
        %1716 = vmatprep.subr.mxu0 0.0
        %1717 = vmatpush2.msra.mxu0 0.0
        %1718 = vmatprep.subr.mxu0 0.0
        %1719 = vmatpush2.msra.mxu0 0.0
        %1720 = vmatprep.subr.mxu0 0.0
        %1721 = vmatpush2.msra.mxu0 0.0
        %1722 = vmatprep.subr.mxu0 0.0
        %1723 = vmatpush2.msra.mxu0 0.0
        %1724 = vmatprep.subr.mxu0 0.0
        %1725 = vmatpush2.msra.mxu0 0.0
        %1726 = vmatprep.subr.mxu0 0.0
        %1727 = vmatpush2.msra.mxu0 0.0
        %1728 = vmatprep.subr.mxu0 0.0
        %1729 = vmatpush2.msra.mxu0 0.0
        %1730 = vmatprep.subr.mxu0 0.0
        %1731 = vmatpush2.msra.mxu0 0.0
        %1732 = vmatprep.subr.mxu0 0.0
        %1733 = vmatpush2.msra.mxu0 0.0
        %1734 = vmatprep.subr.mxu0 0.0
        %1735 = vmatpush2.msra.mxu0 0.0
        %1736 = vmatprep.subr.mxu0 0.0
        %1737 = vmatpush2.msra.mxu0 0.0
        %1738 = vmatprep.subr.mxu0 0.0
        %1739 = vmatpush2.msra.mxu0 0.0
        %1740 = vmatprep.subr.mxu0 0.0
        %1741 = vmatpush2.msra.mxu0 0.0
        %1742 = vmatprep.subr.mxu0 0.0
        %1743 = vmatpush2.msra.mxu0 0.0
        %1744 = vmatprep.mubr.f32.mxu0 0.0
        %1745 = vmatmul.mubr.f32.gmra.mxu0 %v1657
        %v1746 = vpop.f32.mrf.mxu0
        %v1747 = vadd.f32 %v1654, %v1746
        %v1748 = vpop.f32.mrf.mxu0
        %1749 = vmatprep.mubr.f32.mxu0 0.0
        %1750 = vmatmul.mubr.f32.gmra.mxu0 %v1660
        %v1751 = vpop.f32.mrf.mxu0
        %v1752 = vadd.f32 %v1654, %v1751
        %v1753 = vpop.f32.mrf.mxu0
        %1754 = vmatprep.mubr.f32.mxu0 0.0
        %1755 = vmatmul.mubr.f32.gmra.mxu0 %v1663
        %v1756 = vpop.f32.mrf.mxu0
        %v1757 = vadd.f32 %v1654, %v1756
        %v1758 = vpop.f32.mrf.mxu0
        %1759 = vmatprep.mubr.f32.mxu0 0.0
        %1760 = vmatmul.mubr.f32.gmra.mxu0 %v1666
        %v1761 = vpop.f32.mrf.mxu0
        %v1762 = vadd.f32 %v1654, %v1761
        %v1763 = vpop.f32.mrf.mxu0
        %1764 = vmatprep.mubr.f32.mxu0 0.0
        %1765 = vmatmul.mubr.f32.gmra.mxu0 %v1669
        %v1766 = vpop.f32.mrf.mxu0
        %v1767 = vadd.f32 %v1654, %v1766
        %v1768 = vpop.f32.mrf.mxu0
        %1769 = vmatprep.mubr.f32.mxu0 0.0
        %1770 = vmatmul.mubr.f32.gmra.mxu0 %v1672
        %v1771 = vpop.f32.mrf.mxu0
        %v1772 = vadd.f32 %v1654, %v1771
        %v1773 = vpop.f32.mrf.mxu0
        %1774 = vmatprep.mubr.f32.mxu0 0.0
        %1775 = vmatmul.mubr.f32.gmra.mxu0 %v1675
        %v1776 = vpop.f32.mrf.mxu0
        %v1777 = vadd.f32 %v1654, %v1776
        %v1778 = vpop.f32.mrf.mxu0
        %1779 = vmatprep.mubr.f32.mxu0 0.0
        %1780 = vmatmul.mubr.f32.gmra.mxu0 %v1678
        %v1781 = vpop.f32.mrf.mxu0
        %v1782 = vadd.f32 %v1654, %v1781
        %v1783 = vpop.f32.mrf.mxu0
        %1784 = vdwg.mxu0
        %v1785 = vmax.f32 %v1747, 0.0
        %v1786 = vmax.f32 %v1752, 0.0
        %v1787 = vmax.f32 %v1757, 0.0
        %v1788 = vmax.f32 %v1762, 0.0
        %v1789 = vmax.f32 %v1767, 0.0
        %v1790 = vmax.f32 %v1772, 0.0
        %v1791 = vmax.f32 %v1777, 0.0
        %v1792 = vmax.f32 %v1782, 0.0
        %1801 = vrot.lane.b32.xlu0 %v1785, 96
        %v1802 = vpop.permute.xlu0 %1801
        %1803 = vrot.lane.b32.xlu0 %v1786, 96
        %v1804 = vpop.permute.xlu0 %1803
        %1805 = vrot.lane.b32.xlu0 %v1787, 96
        %v1806 = vpop.permute.xlu0 %1805
        %1807 = vrot.lane.b32.xlu0 %v1788, 96
        %v1808 = vpop.permute.xlu0 %1807
        %1809 = vrot.lane.b32.xlu0 %v1789, 96
        %v1810 = vpop.permute.xlu0 %1809
        %1811 = vrot.lane.b32.xlu0 %v1790, 96
        %v1812 = vpop.permute.xlu0 %1811
        %1813 = vrot.lane.b32.xlu0 %v1791, 96
        %v1814 = vpop.permute.xlu0 %1813
        %1815 = vrot.lane.b32.xlu0 %v1792, 96
        %v1816 = vpop.permute.xlu0 %1815
        %v1825 = vadd.s32 %v785, 64
        %v1826 = vadd.s32 %v785, 72
        %v1827 = vadd.s32 %v785, 80
        %v1828 = vadd.s32 %v785, 88
        %v1829 = vadd.s32 %v785, 96
        %v1830 = vadd.s32 %v785, 104
        %v1831 = vadd.s32 %v785, 112
        %v1832 = vadd.s32 %v785, 120
        %v1833 = vshra.s32 %v1825, 1
        %v1834 = vshra.s32 %v1826, 1
        %v1835 = vshra.s32 %v1827, 1
        %v1836 = vshra.s32 %v1828, 1
        %v1837 = vshra.s32 %v1829, 1
        %v1838 = vshra.s32 %v1830, 1
        %v1839 = vshra.s32 %v1831, 1
        %v1840 = vshra.s32 %v1832, 1
        %v1841 = vand.u32 %v1825, 1
        %v1842 = vand.u32 %v1826, 1
        %v1843 = vand.u32 %v1827, 1
        %v1844 = vand.u32 %v1828, 1
        %v1845 = vand.u32 %v1829, 1
        %v1846 = vand.u32 %v1830, 1
        %v1847 = vand.u32 %v1831, 1
        %v1848 = vand.u32 %v1832, 1
        %v1849 = vmul.u32 %v791, 64
        %v1850 = vmul.u32 %v792, 64
        %v1851 = vmul.u32 %v1029, 64
        %v1852 = vmul.u32 %v1030, 64
        %v1853 = vmul.u32 %v1350, 64
        %v1854 = vmul.u32 %v1351, 64
        %v1855 = vmul.u32 %v1352, 64
        %v1856 = vmul.u32 %v1353, 64
        %v1857 = vmul.u32 %v1841, 64
        %v1858 = vmul.u32 %v1842, 64
        %v1859 = vmul.u32 %v1843, 64
        %v1860 = vmul.u32 %v1844, 64
        %v1861 = vmul.u32 %v1845, 64
        %v1862 = vmul.u32 %v1846, 64
        %v1863 = vmul.u32 %v1847, 64
        %v1864 = vmul.u32 %v1848, 64
        %v1865 = vadd.s32 %v789, %v1849
        %v1866 = vadd.s32 %v790, %v1850
        %v1867 = vadd.s32 %v1027, %v1851
        %v1868 = vadd.s32 %v1028, %v1852
        %v1869 = vadd.s32 %v1346, %v1853
        %v1870 = vadd.s32 %v1347, %v1854
        %v1871 = vadd.s32 %v1348, %v1855
        %v1872 = vadd.s32 %v1349, %v1856
        %v1873 = vadd.s32 %v1833, %v1857
        %v1874 = vadd.s32 %v1834, %v1858
        %v1875 = vadd.s32 %v1835, %v1859
        %v1876 = vadd.s32 %v1836, %v1860
        %v1877 = vadd.s32 %v1837, %v1861
        %v1878 = vadd.s32 %v1838, %v1862
        %v1879 = vadd.s32 %v1839, %v1863
        %v1880 = vadd.s32 %v1840, %v1864
        %vm1881 = vcmp.eq.s32.totalorder %v788, %v1865
        %vm1882 = vcmp.eq.s32.totalorder %v788, %v1866
        %vm1883 = vcmp.eq.s32.totalorder %v788, %v1867
        %vm1884 = vcmp.eq.s32.totalorder %v788, %v1868
        %vm1885 = vcmp.eq.s32.totalorder %v788, %v1869
        %vm1886 = vcmp.eq.s32.totalorder %v788, %v1870
        %vm1887 = vcmp.eq.s32.totalorder %v788, %v1871
        %vm1888 = vcmp.eq.s32.totalorder %v788, %v1872
        %vm1889 = vcmp.eq.s32.totalorder %v788, %v1873
        %vm1890 = vcmp.eq.s32.totalorder %v788, %v1874
        %vm1891 = vcmp.eq.s32.totalorder %v788, %v1875
        %vm1892 = vcmp.eq.s32.totalorder %v788, %v1876
        %vm1893 = vcmp.eq.s32.totalorder %v788, %v1877
        %vm1894 = vcmp.eq.s32.totalorder %v788, %v1878
        %vm1895 = vcmp.eq.s32.totalorder %v788, %v1879
        %vm1896 = vcmp.eq.s32.totalorder %v788, %v1880
        %v1897 = vsel %vm1881, 1, 0
        %v1898 = vsel %vm1882, 1, 0
        %v1899 = vsel %vm1883, 1, 0
        %v1900 = vsel %vm1884, 1, 0
        %v1901 = vsel %vm1885, 1, 0
        %v1902 = vsel %vm1886, 1, 0
        %v1903 = vsel %vm1887, 1, 0
        %v1904 = vsel %vm1888, 1, 0
        %v1905 = vsel %vm1889, 1, 0
        %v1906 = vsel %vm1890, 1, 0
        %v1907 = vsel %vm1891, 1, 0
        %v1908 = vsel %vm1892, 1, 0
        %v1909 = vsel %vm1893, 1, 0
        %v1910 = vsel %vm1894, 1, 0
        %v1911 = vsel %vm1895, 1, 0
        %v1912 = vsel %vm1896, 1, 0
        %v1913 = vcvt.s32.f32 %v1897
        %v1914 = vcvt.s32.f32 %v1898
        %v1915 = vcvt.s32.f32 %v1899
        %v1916 = vcvt.s32.f32 %v1900
        %v1917 = vcvt.s32.f32 %v1901
        %v1918 = vcvt.s32.f32 %v1902
        %v1919 = vcvt.s32.f32 %v1903
        %v1920 = vcvt.s32.f32 %v1904
        %v1921 = vcvt.s32.f32 %v1905
        %v1922 = vcvt.s32.f32 %v1906
        %v1923 = vcvt.s32.f32 %v1907
        %v1924 = vcvt.s32.f32 %v1908
        %v1925 = vcvt.s32.f32 %v1909
        %v1926 = vcvt.s32.f32 %v1910
        %v1927 = vcvt.s32.f32 %v1911
        %v1928 = vcvt.s32.f32 %v1912
        %1929 = vmatprep.subr.mxu0 0.0
        %1930 = vmatpush1.msra.mxu0 %v1816
        %1931 = vmatprep.subr.mxu0 0.0
        %1932 = vmatpush1.msra.mxu0 %v1814
        %1933 = vmatprep.subr.mxu0 0.0
        %1934 = vmatpush1.msra.mxu0 %v1812
        %1935 = vmatprep.subr.mxu0 0.0
        %1936 = vmatpush1.msra.mxu0 %v1810
        %1937 = vmatprep.subr.mxu0 0.0
        %1938 = vmatpush1.msra.mxu0 %v1808
        %1939 = vmatprep.subr.mxu0 0.0
        %1940 = vmatpush1.msra.mxu0 %v1806
        %1941 = vmatprep.subr.mxu0 0.0
        %1942 = vmatpush1.msra.mxu0 %v1804
        %1943 = vmatprep.subr.mxu0 0.0
        %1944 = vmatpush1.msra.mxu0 %v1802
        %1945 = vmatprep.subr.mxu0 0.0
        %1946 = vmatpush1.msra.mxu0 %v1792
        %1947 = vmatprep.subr.mxu0 0.0
        %1948 = vmatpush1.msra.mxu0 %v1791
        %1949 = vmatprep.subr.mxu0 0.0
        %1950 = vmatpush1.msra.mxu0 %v1790
        %1951 = vmatprep.subr.mxu0 0.0
        %1952 = vmatpush1.msra.mxu0 %v1789
        %1953 = vmatprep.subr.mxu0 0.0
        %1954 = vmatpush1.msra.mxu0 %v1788
        %1955 = vmatprep.subr.mxu0 0.0
        %1956 = vmatpush1.msra.mxu0 %v1787
        %1957 = vmatprep.subr.mxu0 0.0
        %1958 = vmatpush1.msra.mxu0 %v1786
        %1959 = vmatprep.subr.mxu0 0.0
        %1960 = vmatpush1.msra.mxu0 %v1785
        %1961 = vmatprep.subr.mxu0 0.0
        %1962 = vmatpush2.msra.mxu0 0.0
        %1963 = vmatprep.subr.mxu0 0.0
        %1964 = vmatpush2.msra.mxu0 0.0
        %1965 = vmatprep.subr.mxu0 0.0
        %1966 = vmatpush2.msra.mxu0 0.0
        %1967 = vmatprep.subr.mxu0 0.0
        %1968 = vmatpush2.msra.mxu0 0.0
        %1969 = vmatprep.subr.mxu0 0.0
        %1970 = vmatpush2.msra.mxu0 0.0
        %1971 = vmatprep.subr.mxu0 0.0
        %1972 = vmatpush2.msra.mxu0 0.0
        %1973 = vmatprep.subr.mxu0 0.0
        %1974 = vmatpush2.msra.mxu0 0.0
        %1975 = vmatprep.subr.mxu0 0.0
        %1976 = vmatpush2.msra.mxu0 0.0
        %1977 = vmatprep.subr.mxu0 0.0
        %1978 = vmatpush2.msra.mxu0 0.0
        %1979 = vmatprep.subr.mxu0 0.0
        %1980 = vmatpush2.msra.mxu0 0.0
        %1981 = vmatprep.subr.mxu0 0.0
        %1982 = vmatpush2.msra.mxu0 0.0
        %1983 = vmatprep.subr.mxu0 0.0
        %1984 = vmatpush2.msra.mxu0 0.0
        %1985 = vmatprep.subr.mxu0 0.0
        %1986 = vmatpush2.msra.mxu0 0.0
        %1987 = vmatprep.subr.mxu0 0.0
        %1988 = vmatpush2.msra.mxu0 0.0
        %1989 = vmatprep.subr.mxu0 0.0
        %1990 = vmatpush2.msra.mxu0 0.0
        %1991 = vmatprep.subr.mxu0 0.0
        %1992 = vmatpush2.msra.mxu0 0.0
        %1993 = vmatprep.mubr.f32.mxu0 0.0
        %1994 = vmatmul.mubr.f32.gmra.mxu0 %v1913
        %v1995 = vpop.f32.mrf.mxu0
        %v1996 = vadd.f32 0.0, %v1995
        %v1997 = vpop.f32.mrf.mxu0
        %1998 = vmatprep.mubr.f32.mxu0 0.0
        %1999 = vmatmul.mubr.f32.gmra.mxu0 %v1914
        %v2000 = vpop.f32.mrf.mxu0
        %v2001 = vadd.f32 0.0, %v2000
        %v2002 = vpop.f32.mrf.mxu0
        %2003 = vmatprep.mubr.f32.mxu0 0.0
        %2004 = vmatmul.mubr.f32.gmra.mxu0 %v1915
        %v2005 = vpop.f32.mrf.mxu0
        %v2006 = vadd.f32 0.0, %v2005
        %v2007 = vpop.f32.mrf.mxu0
        %2008 = vmatprep.mubr.f32.mxu0 0.0
        %2009 = vmatmul.mubr.f32.gmra.mxu0 %v1916
        %v2010 = vpop.f32.mrf.mxu0
        %v2011 = vadd.f32 0.0, %v2010
        %v2012 = vpop.f32.mrf.mxu0
        %2013 = vmatprep.mubr.f32.mxu0 0.0
        %2014 = vmatmul.mubr.f32.gmra.mxu0 %v1917
        %v2015 = vpop.f32.mrf.mxu0
        %v2016 = vadd.f32 0.0, %v2015
        %v2017 = vpop.f32.mrf.mxu0
        %2018 = vmatprep.mubr.f32.mxu0 0.0
        %2019 = vmatmul.mubr.f32.gmra.mxu0 %v1918
        %v2020 = vpop.f32.mrf.mxu0
        %v2021 = vadd.f32 0.0, %v2020
        %v2022 = vpop.f32.mrf.mxu0
        %2023 = vmatprep.mubr.f32.mxu0 0.0
        %2024 = vmatmul.mubr.f32.gmra.mxu0 %v1919
        %v2025 = vpop.f32.mrf.mxu0
        %v2026 = vadd.f32 0.0, %v2025
        %v2027 = vpop.f32.mrf.mxu0
        %2028 = vmatprep.mubr.f32.mxu0 0.0
        %2029 = vmatmul.mubr.f32.gmra.mxu0 %v1920
        %v2030 = vpop.f32.mrf.mxu0
        %v2031 = vadd.f32 0.0, %v2030
        %v2032 = vpop.f32.mrf.mxu0
        %2033 = vmatprep.mubr.f32.mxu0 0.0
        %2034 = vmatmul.mubr.f32.gmra.mxu0 %v1921
        %v2035 = vpop.f32.mrf.mxu0
        %v2036 = vadd.f32 0.0, %v2035
        %v2037 = vpop.f32.mrf.mxu0
        %2038 = vmatprep.mubr.f32.mxu0 0.0
        %2039 = vmatmul.mubr.f32.gmra.mxu0 %v1922
        %v2040 = vpop.f32.mrf.mxu0
        %v2041 = vadd.f32 0.0, %v2040
        %v2042 = vpop.f32.mrf.mxu0
        %2043 = vmatprep.mubr.f32.mxu0 0.0
        %2044 = vmatmul.mubr.f32.gmra.mxu0 %v1923
        %v2045 = vpop.f32.mrf.mxu0
        %v2046 = vadd.f32 0.0, %v2045
        %v2047 = vpop.f32.mrf.mxu0
        %2048 = vmatprep.mubr.f32.mxu0 0.0
        %2049 = vmatmul.mubr.f32.gmra.mxu0 %v1924
        %v2050 = vpop.f32.mrf.mxu0
        %v2051 = vadd.f32 0.0, %v2050
        %v2052 = vpop.f32.mrf.mxu0
        %2053 = vmatprep.mubr.f32.mxu0 0.0
        %2054 = vmatmul.mubr.f32.gmra.mxu0 %v1925
        %v2055 = vpop.f32.mrf.mxu0
        %v2056 = vadd.f32 0.0, %v2055
        %v2057 = vpop.f32.mrf.mxu0
        %2058 = vmatprep.mubr.f32.mxu0 0.0
        %2059 = vmatmul.mubr.f32.gmra.mxu0 %v1926
        %v2060 = vpop.f32.mrf.mxu0
        %v2061 = vadd.f32 0.0, %v2060
        %v2062 = vpop.f32.mrf.mxu0
        %2063 = vmatprep.mubr.f32.mxu0 0.0
        %2064 = vmatmul.mubr.f32.gmra.mxu0 %v1927
        %v2065 = vpop.f32.mrf.mxu0
        %v2066 = vadd.f32 0.0, %v2065
        %v2067 = vpop.f32.mrf.mxu0
        %2068 = vmatprep.mubr.f32.mxu0 0.0
        %2069 = vmatmul.mubr.f32.gmra.mxu0 %v1928
        %v2070 = vpop.f32.mrf.mxu0
        %v2071 = vadd.f32 0.0, %v2070
        %v2072 = vpop.f32.mrf.mxu0
        %2073 = vdwg.mxu0
        %v2090 = vrot.slane %v1996, 7
        %v2091 = vrot.slane %v2001, 7
        %v2092 = vsel %vm669, %v2090, %v2091
        %v2093 = vrot.slane %v2006, 7
        %v2094 = vsel %vm669, %v2091, %v2093
        %v2095 = vrot.slane %v2011, 7
        %v2096 = vsel %vm669, %v2093, %v2095
        %v2097 = vrot.slane %v2016, 7
        %v2098 = vsel %vm669, %v2095, %v2097
        %v2099 = vrot.slane %v2021, 7
        %v2100 = vsel %vm669, %v2097, %v2099
        %v2101 = vrot.slane %v2026, 7
        %v2102 = vsel %vm669, %v2099, %v2101
        %v2103 = vrot.slane %v2031, 7
        %v2104 = vsel %vm669, %v2101, %v2103
        %v2105 = vrot.slane %v2036, 7
        %v2106 = vsel %vm669, %v2103, %v2105
        %v2107 = vrot.slane %v2041, 7
        %v2108 = vsel %vm669, %v2105, %v2107
        %v2109 = vrot.slane %v2046, 7
        %v2110 = vsel %vm669, %v2107, %v2109
        %v2111 = vrot.slane %v2051, 7
        %v2112 = vsel %vm669, %v2109, %v2111
        %v2113 = vrot.slane %v2056, 7
        %v2114 = vsel %vm669, %v2111, %v2113
        %v2115 = vrot.slane %v2061, 7
        %v2116 = vsel %vm669, %v2113, %v2115
        %v2117 = vrot.slane %v2066, 7
        %v2118 = vsel %vm669, %v2115, %v2117
        %v2119 = vrot.slane %v2071, 7
        %v2120 = vsel %vm669, %v2117, %v2119
        %v2137 = vsel %vm669, 0.0, %v2090
        %v2138 = vrot.slane %v1996, 1
        %v2139 = vrot.slane %v2001, 1
        %v2140 = vsel %vm673, %v2138, %v2139
        %v2141 = vrot.slane %v2006, 1
        %v2142 = vsel %vm673, %v2139, %v2141
        %v2143 = vrot.slane %v2011, 1
        %v2144 = vsel %vm673, %v2141, %v2143
        %v2145 = vrot.slane %v2016, 1
        %v2146 = vsel %vm673, %v2143, %v2145
        %v2147 = vrot.slane %v2021, 1
        %v2148 = vsel %vm673, %v2145, %v2147
        %v2149 = vrot.slane %v2026, 1
        %v2150 = vsel %vm673, %v2147, %v2149
        %v2151 = vrot.slane %v2031, 1
        %v2152 = vsel %vm673, %v2149, %v2151
        %v2153 = vrot.slane %v2036, 1
        %v2154 = vsel %vm673, %v2151, %v2153
        %v2155 = vrot.slane %v2041, 1
        %v2156 = vsel %vm673, %v2153, %v2155
        %v2157 = vrot.slane %v2046, 1
        %v2158 = vsel %vm673, %v2155, %v2157
        %v2159 = vrot.slane %v2051, 1
        %v2160 = vsel %vm673, %v2157, %v2159
        %v2161 = vrot.slane %v2056, 1
        %v2162 = vsel %vm673, %v2159, %v2161
        %v2163 = vrot.slane %v2061, 1
        %v2164 = vsel %vm673, %v2161, %v2163
        %v2165 = vrot.slane %v2066, 1
        %v2166 = vsel %vm673, %v2163, %v2165
        %v2167 = vrot.slane %v2071, 1
        %v2168 = vsel %vm673, %v2165, %v2167
        %v2170 = vsel %vm673, %v2167, 0.0
        %2171 = vrot.lane.b32.xlu0 %v1996, 32
        %v2172 = vpop.permute.xlu0 %2171
        %2173 = vrot.lane.b32.xlu0 %v2001, 32
        %v2174 = vpop.permute.xlu0 %2173
        %2175 = vrot.lane.b32.xlu0 %v2006, 32
        %v2176 = vpop.permute.xlu0 %2175
        %2177 = vrot.lane.b32.xlu0 %v2011, 32
        %v2178 = vpop.permute.xlu0 %2177
        %2179 = vrot.lane.b32.xlu0 %v2016, 32
        %v2180 = vpop.permute.xlu0 %2179
        %2181 = vrot.lane.b32.xlu0 %v2021, 32
        %v2182 = vpop.permute.xlu0 %2181
        %2183 = vrot.lane.b32.xlu0 %v2026, 32
        %v2184 = vpop.permute.xlu0 %2183
        %2185 = vrot.lane.b32.xlu0 %v2031, 32
        %v2186 = vpop.permute.xlu0 %2185
        %2187 = vrot.lane.b32.xlu0 %v2036, 32
        %v2188 = vpop.permute.xlu0 %2187
        %2189 = vrot.lane.b32.xlu0 %v2041, 32
        %v2190 = vpop.permute.xlu0 %2189
        %2191 = vrot.lane.b32.xlu0 %v2046, 32
        %v2192 = vpop.permute.xlu0 %2191
        %2193 = vrot.lane.b32.xlu0 %v2051, 32
        %v2194 = vpop.permute.xlu0 %2193
        %2195 = vrot.lane.b32.xlu0 %v2056, 32
        %v2196 = vpop.permute.xlu0 %2195
        %2197 = vrot.lane.b32.xlu0 %v2061, 32
        %v2198 = vpop.permute.xlu0 %2197
        %2199 = vrot.lane.b32.xlu0 %v2066, 32
        %v2200 = vpop.permute.xlu0 %2199
        %2201 = vrot.lane.b32.xlu0 %v2071, 32
        %v2202 = vpop.permute.xlu0 %2201
        %2220 = vrot.lane.b32.xlu0 %v2140, 64
        %v2221 = vpop.permute.xlu0 %2220
        %2222 = vrot.lane.b32.xlu0 %v2142, 64
        %v2223 = vpop.permute.xlu0 %2222
        %2224 = vrot.lane.b32.xlu0 %v2144, 64
        %v2225 = vpop.permute.xlu0 %2224
        %2226 = vrot.lane.b32.xlu0 %v2146, 64
        %v2227 = vpop.permute.xlu0 %2226
        %2228 = vrot.lane.b32.xlu0 %v2148, 64
        %v2229 = vpop.permute.xlu0 %2228
        %2230 = vrot.lane.b32.xlu0 %v2150, 64
        %v2231 = vpop.permute.xlu0 %2230
        %2232 = vrot.lane.b32.xlu0 %v2152, 64
        %v2233 = vpop.permute.xlu0 %2232
        %2234 = vrot.lane.b32.xlu0 %v2154, 64
        %v2235 = vpop.permute.xlu0 %2234
        %2236 = vrot.lane.b32.xlu0 %v2156, 64
        %v2237 = vpop.permute.xlu0 %2236
        %2238 = vrot.lane.b32.xlu0 %v2158, 64
        %v2239 = vpop.permute.xlu0 %2238
        %2240 = vrot.lane.b32.xlu0 %v2160, 64
        %v2241 = vpop.permute.xlu0 %2240
        %2242 = vrot.lane.b32.xlu0 %v2162, 64
        %v2243 = vpop.permute.xlu0 %2242
        %2244 = vrot.lane.b32.xlu0 %v2164, 64
        %v2245 = vpop.permute.xlu0 %2244
        %2246 = vrot.lane.b32.xlu0 %v2166, 64
        %v2247 = vpop.permute.xlu0 %2246
        %2248 = vrot.lane.b32.xlu0 %v2168, 64
        %v2249 = vpop.permute.xlu0 %2248
        %2250 = vrot.lane.b32.xlu0 %v2170, 64
        %v2251 = vpop.permute.xlu0 %2250
        %v2268 = vsel %vm682, %v2137, %v2172
        %v2269 = vsel %vm682, %v2092, %v2174
        %v2270 = vsel %vm682, %v2094, %v2176
        %v2271 = vsel %vm682, %v2096, %v2178
        %v2272 = vsel %vm682, %v2098, %v2180
        %v2273 = vsel %vm682, %v2100, %v2182
        %v2274 = vsel %vm682, %v2102, %v2184
        %v2275 = vsel %vm682, %v2104, %v2186
        %v2276 = vsel %vm682, %v2106, %v2188
        %v2277 = vsel %vm682, %v2108, %v2190
        %v2278 = vsel %vm682, %v2110, %v2192
        %v2279 = vsel %vm682, %v2112, %v2194
        %v2280 = vsel %vm682, %v2114, %v2196
        %v2281 = vsel %vm682, %v2116, %v2198
        %v2282 = vsel %vm682, %v2118, %v2200
        %v2283 = vsel %vm682, %v2120, %v2202
        %v2284 = vsel %vm684, %v2268, %v2221
        %v2285 = vsel %vm684, %v2269, %v2223
        %v2286 = vsel %vm684, %v2270, %v2225
        %v2287 = vsel %vm684, %v2271, %v2227
        %v2288 = vsel %vm684, %v2272, %v2229
        %v2289 = vsel %vm684, %v2273, %v2231
        %v2290 = vsel %vm684, %v2274, %v2233
        %v2291 = vsel %vm684, %v2275, %v2235
        %v2292 = vsel %vm684, %v2276, %v2237
        %v2293 = vsel %vm684, %v2277, %v2239
        %v2294 = vsel %vm684, %v2278, %v2241
        %v2295 = vsel %vm684, %v2279, %v2243
        %v2296 = vsel %vm684, %v2280, %v2245
        %v2297 = vsel %vm684, %v2281, %v2247
        %v2298 = vsel %vm684, %v2282, %v2249
        %v2299 = vsel %vm684, %v2283, %v2251
        %v2300 = vld [vmem:[#allocation9] sm:$0xff]
        %v2301 = vld [vmem:[#allocation9 + $0x8] sm:$0xff]
        %v2302 = vld [vmem:[#allocation9 + $0x10] sm:$0xff]
        %v2303 = vld [vmem:[#allocation9 + $0x18] sm:$0xff]
        %v2304 = vld [vmem:[#allocation9 + $0x20] sm:$0xff]
        %v2305 = vld [vmem:[#allocation9 + $0x28] sm:$0xff]
        %v2306 = vld [vmem:[#allocation9 + $0x30] sm:$0xff]
        %v2307 = vld [vmem:[#allocation9 + $0x38] sm:$0xff]
        %v2308 = vld [vmem:[#allocation9 + $0x40] sm:$0xff]
        %v2309 = vld [vmem:[#allocation9 + $0x48] sm:$0xff]
        %v2310 = vld [vmem:[#allocation9 + $0x50] sm:$0xff]
        %v2311 = vld [vmem:[#allocation9 + $0x58] sm:$0xff]
        %v2312 = vld [vmem:[%s12] sm:$0x1]
        %v2314 = vlaneseq
        %v2315 = vshrl.u32 %v2314, 7
        %v2316 = vsub.s32 0, %v2315
        %v2317 = vrot.slane %v2312, %v2316
        %v2320 = vsel %vm705, %v2284, 0
        %v2323 = vsel %vm705, %v2285, 0
        %v2326 = vsel %vm705, %v2286, 0
        %v2329 = vsel %vm705, %v2287, 0
        %v2332 = vsel %vm705, %v2288, 0
        %v2335 = vsel %vm705, %v2289, 0
        %v2338 = vsel %vm705, %v2290, 0
        %v2341 = vsel %vm705, %v2291, 0
        %v2344 = vsel %vm705, %v2292, 0
        %v2347 = vsel %vm705, %v2293, 0
        %v2350 = vsel %vm705, %v2294, 0
        %v2353 = vsel %vm705, %v2295, 0
        %v2356 = vsel %vm705, %v2296, 0
        %v2359 = vsel %vm705, %v2297, 0
        %v2362 = vsel %vm705, %v2298, 0
        %v2365 = vsel %vm705, %v2299, 0
        %2367 = vmatprep.subr.mxu0 0.0
        %2368 = vmatpush1.msra.mxu0 0.0
        %2369 = vmatprep.subr.mxu0 0.0
        %2370 = vmatpush1.msra.mxu0 0.0
        %2371 = vmatprep.subr.mxu0 0.0
        %2372 = vmatpush1.msra.mxu0 0.0
        %2373 = vmatprep.subr.mxu0 0.0
        %2374 = vmatpush1.msra.mxu0 0.0
        %2375 = vmatprep.subr.mxu0 0.0
        %2376 = vmatpush1.msra.mxu0 %v2311
        %2377 = vmatprep.subr.mxu0 0.0
        %2378 = vmatpush1.msra.mxu0 %v2310
        %2379 = vmatprep.subr.mxu0 0.0
        %2380 = vmatpush1.msra.mxu0 %v2309
        %2381 = vmatprep.subr.mxu0 0.0
        %2382 = vmatpush1.msra.mxu0 %v2308
        %2383 = vmatprep.subr.mxu0 0.0
        %2384 = vmatpush1.msra.mxu0 %v2307
        %2385 = vmatprep.subr.mxu0 0.0
        %2386 = vmatpush1.msra.mxu0 %v2306
        %2387 = vmatprep.subr.mxu0 0.0
        %2388 = vmatpush1.msra.mxu0 %v2305
        %2389 = vmatprep.subr.mxu0 0.0
        %2390 = vmatpush1.msra.mxu0 %v2304
        %2391 = vmatprep.subr.mxu0 0.0
        %2392 = vmatpush1.msra.mxu0 %v2303
        %2393 = vmatprep.subr.mxu0 0.0
        %2394 = vmatpush1.msra.mxu0 %v2302
        %2395 = vmatprep.subr.mxu0 0.0
        %2396 = vmatpush1.msra.mxu0 %v2301
        %2397 = vmatprep.subr.mxu0 0.0
        %2398 = vmatpush1.msra.mxu0 %v2300
        %2399 = vmatprep.subr.mxu0 0.0
        %2400 = vmatpush2.msra.mxu0 0.0
        %2401 = vmatprep.subr.mxu0 0.0
        %2402 = vmatpush2.msra.mxu0 0.0
        %2403 = vmatprep.subr.mxu0 0.0
        %2404 = vmatpush2.msra.mxu0 0.0
        %2405 = vmatprep.subr.mxu0 0.0
        %2406 = vmatpush2.msra.mxu0 0.0
        %2407 = vmatprep.subr.mxu0 0.0
        %2408 = vmatpush2.msra.mxu0 0.0
        %2409 = vmatprep.subr.mxu0 0.0
        %2410 = vmatpush2.msra.mxu0 0.0
        %2411 = vmatprep.subr.mxu0 0.0
        %2412 = vmatpush2.msra.mxu0 0.0
        %2413 = vmatprep.subr.mxu0 0.0
        %2414 = vmatpush2.msra.mxu0 0.0
        %2415 = vmatprep.subr.mxu0 0.0
        %2416 = vmatpush2.msra.mxu0 0.0
        %2417 = vmatprep.subr.mxu0 0.0
        %2418 = vmatpush2.msra.mxu0 0.0
        %2419 = vmatprep.subr.mxu0 0.0
        %2420 = vmatpush2.msra.mxu0 0.0
        %2421 = vmatprep.subr.mxu0 0.0
        %2422 = vmatpush2.msra.mxu0 0.0
        %2423 = vmatprep.subr.mxu0 0.0
        %2424 = vmatpush2.msra.mxu0 0.0
        %2425 = vmatprep.subr.mxu0 0.0
        %2426 = vmatpush2.msra.mxu0 0.0
        %2427 = vmatprep.subr.mxu0 0.0
        %2428 = vmatpush2.msra.mxu0 0.0
        %2429 = vmatprep.subr.mxu0 0.0
        %2430 = vmatpush2.msra.mxu0 0.0
        %2431 = vmatprep.mubr.f32.mxu0 0.0
        %2432 = vmatmul.mubr.f32.gmra.mxu0 %v2320
        %v2433 = vpop.f32.mrf.mxu0
        %v2434 = vadd.f32 %v2317, %v2433
        %v2435 = vpop.f32.mrf.mxu0
        %2436 = vmatprep.mubr.f32.mxu0 0.0
        %2437 = vmatmul.mubr.f32.gmra.mxu0 %v2323
        %v2438 = vpop.f32.mrf.mxu0
        %v2439 = vadd.f32 %v2317, %v2438
        %v2440 = vpop.f32.mrf.mxu0
        %2441 = vmatprep.mubr.f32.mxu0 0.0
        %2442 = vmatmul.mubr.f32.gmra.mxu0 %v2326
        %v2443 = vpop.f32.mrf.mxu0
        %v2444 = vadd.f32 %v2317, %v2443
        %v2445 = vpop.f32.mrf.mxu0
        %2446 = vmatprep.mubr.f32.mxu0 0.0
        %2447 = vmatmul.mubr.f32.gmra.mxu0 %v2329
        %v2448 = vpop.f32.mrf.mxu0
        %v2449 = vadd.f32 %v2317, %v2448
        %v2450 = vpop.f32.mrf.mxu0
        %2451 = vmatprep.mubr.f32.mxu0 0.0
        %2452 = vmatmul.mubr.f32.gmra.mxu0 %v2332
        %v2453 = vpop.f32.mrf.mxu0
        %v2454 = vadd.f32 %v2317, %v2453
        %v2455 = vpop.f32.mrf.mxu0
        %2456 = vmatprep.mubr.f32.mxu0 0.0
        %2457 = vmatmul.mubr.f32.gmra.mxu0 %v2335
        %v2458 = vpop.f32.mrf.mxu0
        %v2459 = vadd.f32 %v2317, %v2458
        %v2460 = vpop.f32.mrf.mxu0
        %2461 = vmatprep.mubr.f32.mxu0 0.0
        %2462 = vmatmul.mubr.f32.gmra.mxu0 %v2338
        %v2463 = vpop.f32.mrf.mxu0
        %v2464 = vadd.f32 %v2317, %v2463
        %v2465 = vpop.f32.mrf.mxu0
        %2466 = vmatprep.mubr.f32.mxu0 0.0
        %2467 = vmatmul.mubr.f32.gmra.mxu0 %v2341
        %v2468 = vpop.f32.mrf.mxu0
        %v2469 = vadd.f32 %v2317, %v2468
        %v2470 = vpop.f32.mrf.mxu0
        %2471 = vmatprep.mubr.f32.mxu0 0.0
        %2472 = vmatmul.mubr.f32.gmra.mxu0 %v2344
        %v2473 = vpop.f32.mrf.mxu0
        %v2474 = vadd.f32 %v2317, %v2473
        %v2475 = vpop.f32.mrf.mxu0
        %2476 = vmatprep.mubr.f32.mxu0 0.0
        %2477 = vmatmul.mubr.f32.gmra.mxu0 %v2347
        %v2478 = vpop.f32.mrf.mxu0
        %v2479 = vadd.f32 %v2317, %v2478
        %v2480 = vpop.f32.mrf.mxu0
        %2481 = vmatprep.mubr.f32.mxu0 0.0
        %2482 = vmatmul.mubr.f32.gmra.mxu0 %v2350
        %v2483 = vpop.f32.mrf.mxu0
        %v2484 = vadd.f32 %v2317, %v2483
        %v2485 = vpop.f32.mrf.mxu0
        %2486 = vmatprep.mubr.f32.mxu0 0.0
        %2487 = vmatmul.mubr.f32.gmra.mxu0 %v2353
        %v2488 = vpop.f32.mrf.mxu0
        %v2489 = vadd.f32 %v2317, %v2488
        %v2490 = vpop.f32.mrf.mxu0
        %2491 = vmatprep.mubr.f32.mxu0 0.0
        %2492 = vmatmul.mubr.f32.gmra.mxu0 %v2356
        %v2493 = vpop.f32.mrf.mxu0
        %v2494 = vadd.f32 %v2317, %v2493
        %v2495 = vpop.f32.mrf.mxu0
        %2496 = vmatprep.mubr.f32.mxu0 0.0
        %2497 = vmatmul.mubr.f32.gmra.mxu0 %v2359
        %v2498 = vpop.f32.mrf.mxu0
        %v2499 = vadd.f32 %v2317, %v2498
        %v2500 = vpop.f32.mrf.mxu0
        %2501 = vmatprep.mubr.f32.mxu0 0.0
        %2502 = vmatmul.mubr.f32.gmra.mxu0 %v2362
        %v2503 = vpop.f32.mrf.mxu0
        %v2504 = vadd.f32 %v2317, %v2503
        %v2505 = vpop.f32.mrf.mxu0
        %2506 = vmatprep.mubr.f32.mxu0 0.0
        %2507 = vmatmul.mubr.f32.gmra.mxu0 %v2365
        %v2508 = vpop.f32.mrf.mxu0
        %v2509 = vadd.f32 %v2317, %v2508
        %v2510 = vpop.f32.mrf.mxu0
        %2511 = vdwg.mxu0
        %v2512 = vmax.f32 %v2434, 0.0
        %v2513 = vmax.f32 %v2439, 0.0
        %v2514 = vmax.f32 %v2444, 0.0
        %v2515 = vmax.f32 %v2449, 0.0
        %v2516 = vmax.f32 %v2454, 0.0
        %v2517 = vmax.f32 %v2459, 0.0
        %v2518 = vmax.f32 %v2464, 0.0
        %v2519 = vmax.f32 %v2469, 0.0
        %v2520 = vmax.f32 %v2474, 0.0
        %v2521 = vmax.f32 %v2479, 0.0
        %v2522 = vmax.f32 %v2484, 0.0
        %v2523 = vmax.f32 %v2489, 0.0
        %v2524 = vmax.f32 %v2494, 0.0
        %v2525 = vmax.f32 %v2499, 0.0
        %v2526 = vmax.f32 %v2504, 0.0
        %v2527 = vmax.f32 %v2509, 0.0
        %2544 = vrot.lane.b32.xlu0 %v2512, 96
        %v2545 = vpop.permute.xlu0 %2544
        %2546 = vrot.lane.b32.xlu0 %v2513, 96
        %v2547 = vpop.permute.xlu0 %2546
        %2548 = vrot.lane.b32.xlu0 %v2514, 96
        %v2549 = vpop.permute.xlu0 %2548
        %2550 = vrot.lane.b32.xlu0 %v2515, 96
        %v2551 = vpop.permute.xlu0 %2550
        %2552 = vrot.lane.b32.xlu0 %v2516, 96
        %v2553 = vpop.permute.xlu0 %2552
        %2554 = vrot.lane.b32.xlu0 %v2517, 96
        %v2555 = vpop.permute.xlu0 %2554
        %2556 = vrot.lane.b32.xlu0 %v2518, 96
        %v2557 = vpop.permute.xlu0 %2556
        %2558 = vrot.lane.b32.xlu0 %v2519, 96
        %v2559 = vpop.permute.xlu0 %2558
        %2560 = vrot.lane.b32.xlu0 %v2520, 96
        %v2561 = vpop.permute.xlu0 %2560
        %2562 = vrot.lane.b32.xlu0 %v2521, 96
        %v2563 = vpop.permute.xlu0 %2562
        %2564 = vrot.lane.b32.xlu0 %v2522, 96
        %v2565 = vpop.permute.xlu0 %2564
        %2566 = vrot.lane.b32.xlu0 %v2523, 96
        %v2567 = vpop.permute.xlu0 %2566
        %2568 = vrot.lane.b32.xlu0 %v2524, 96
        %v2569 = vpop.permute.xlu0 %2568
        %2570 = vrot.lane.b32.xlu0 %v2525, 96
        %v2571 = vpop.permute.xlu0 %2570
        %2572 = vrot.lane.b32.xlu0 %v2526, 96
        %v2573 = vpop.permute.xlu0 %2572
        %2574 = vrot.lane.b32.xlu0 %v2527, 96
        %v2575 = vpop.permute.xlu0 %2574
        %v2592 = vadd.s32 %v785, 128
        %v2593 = vadd.s32 %v785, 136
        %v2594 = vadd.s32 %v785, 144
        %v2595 = vadd.s32 %v785, 152
        %v2596 = vadd.s32 %v785, 160
        %v2597 = vadd.s32 %v785, 168
        %v2598 = vadd.s32 %v785, 176
        %v2599 = vadd.s32 %v785, 184
        %v2600 = vadd.s32 %v785, 192
        %v2601 = vadd.s32 %v785, 200
        %v2602 = vadd.s32 %v785, 208
        %v2603 = vadd.s32 %v785, 216
        %v2604 = vadd.s32 %v785, 224
        %v2605 = vadd.s32 %v785, 232
        %v2606 = vadd.s32 %v785, 240
        %v2607 = vadd.s32 %v785, 248
        %v2608 = vadd.s32 %v788, 128
        %v2609 = vshra.s32 %v2592, 1
        %v2610 = vshra.s32 %v2593, 1
        %v2611 = vshra.s32 %v2594, 1
        %v2612 = vshra.s32 %v2595, 1
        %v2613 = vshra.s32 %v2596, 1
        %v2614 = vshra.s32 %v2597, 1
        %v2615 = vshra.s32 %v2598, 1
        %v2616 = vshra.s32 %v2599, 1
        %v2617 = vshra.s32 %v2600, 1
        %v2618 = vshra.s32 %v2601, 1
        %v2619 = vshra.s32 %v2602, 1
        %v2620 = vshra.s32 %v2603, 1
        %v2621 = vshra.s32 %v2604, 1
        %v2622 = vshra.s32 %v2605, 1
        %v2623 = vshra.s32 %v2606, 1
        %v2624 = vshra.s32 %v2607, 1
        %v2625 = vand.u32 %v2592, 1
        %v2626 = vand.u32 %v2593, 1
        %v2627 = vand.u32 %v2594, 1
        %v2628 = vand.u32 %v2595, 1
        %v2629 = vand.u32 %v2596, 1
        %v2630 = vand.u32 %v2597, 1
        %v2631 = vand.u32 %v2598, 1
        %v2632 = vand.u32 %v2599, 1
        %v2633 = vand.u32 %v2600, 1
        %v2634 = vand.u32 %v2601, 1
        %v2635 = vand.u32 %v2602, 1
        %v2636 = vand.u32 %v2603, 1
        %v2637 = vand.u32 %v2604, 1
        %v2638 = vand.u32 %v2605, 1
        %v2639 = vand.u32 %v2606, 1
        %v2640 = vand.u32 %v2607, 1
        %v2641 = vmul.u32 %v791, 128
        %v2642 = vmul.u32 %v792, 128
        %v2643 = vmul.u32 %v1029, 128
        %v2644 = vmul.u32 %v1030, 128
        %v2645 = vmul.u32 %v1350, 128
        %v2646 = vmul.u32 %v1351, 128
        %v2647 = vmul.u32 %v1352, 128
        %v2648 = vmul.u32 %v1353, 128
        %v2649 = vmul.u32 %v1841, 128
        %v2650 = vmul.u32 %v1842, 128
        %v2651 = vmul.u32 %v1843, 128
        %v2652 = vmul.u32 %v1844, 128
        %v2653 = vmul.u32 %v1845, 128
        %v2654 = vmul.u32 %v1846, 128
        %v2655 = vmul.u32 %v1847, 128
        %v2656 = vmul.u32 %v1848, 128
        %v2657 = vmul.u32 %v2625, 128
        %v2658 = vmul.u32 %v2626, 128
        %v2659 = vmul.u32 %v2627, 128
        %v2660 = vmul.u32 %v2628, 128
        %v2661 = vmul.u32 %v2629, 128
        %v2662 = vmul.u32 %v2630, 128
        %v2663 = vmul.u32 %v2631, 128
        %v2664 = vmul.u32 %v2632, 128
        %v2665 = vmul.u32 %v2633, 128
        %v2666 = vmul.u32 %v2634, 128
        %v2667 = vmul.u32 %v2635, 128
        %v2668 = vmul.u32 %v2636, 128
        %v2669 = vmul.u32 %v2637, 128
        %v2670 = vmul.u32 %v2638, 128
        %v2671 = vmul.u32 %v2639, 128
        %v2672 = vmul.u32 %v2640, 128
        %v2673 = vadd.s32 %v789, %v2641
        %v2674 = vadd.s32 %v790, %v2642
        %v2675 = vadd.s32 %v1027, %v2643
        %v2676 = vadd.s32 %v1028, %v2644
        %v2677 = vadd.s32 %v1346, %v2645
        %v2678 = vadd.s32 %v1347, %v2646
        %v2679 = vadd.s32 %v1348, %v2647
        %v2680 = vadd.s32 %v1349, %v2648
        %v2681 = vadd.s32 %v1833, %v2649
        %v2682 = vadd.s32 %v1834, %v2650
        %v2683 = vadd.s32 %v1835, %v2651
        %v2684 = vadd.s32 %v1836, %v2652
        %v2685 = vadd.s32 %v1837, %v2653
        %v2686 = vadd.s32 %v1838, %v2654
        %v2687 = vadd.s32 %v1839, %v2655
        %v2688 = vadd.s32 %v1840, %v2656
        %v2689 = vadd.s32 %v2609, %v2657
        %v2690 = vadd.s32 %v2610, %v2658
        %v2691 = vadd.s32 %v2611, %v2659
        %v2692 = vadd.s32 %v2612, %v2660
        %v2693 = vadd.s32 %v2613, %v2661
        %v2694 = vadd.s32 %v2614, %v2662
        %v2695 = vadd.s32 %v2615, %v2663
        %v2696 = vadd.s32 %v2616, %v2664
        %v2697 = vadd.s32 %v2617, %v2665
        %v2698 = vadd.s32 %v2618, %v2666
        %v2699 = vadd.s32 %v2619, %v2667
        %v2700 = vadd.s32 %v2620, %v2668
        %v2701 = vadd.s32 %v2621, %v2669
        %v2702 = vadd.s32 %v2622, %v2670
        %v2703 = vadd.s32 %v2623, %v2671
        %v2704 = vadd.s32 %v2624, %v2672
        %vm2705 = vcmp.eq.s32.totalorder %v788, %v2673
        %vm2706 = vcmp.eq.s32.totalorder %v2608, %v2673
        %vm2707 = vcmp.eq.s32.totalorder %v788, %v2674
        %vm2708 = vcmp.eq.s32.totalorder %v2608, %v2674
        %vm2709 = vcmp.eq.s32.totalorder %v788, %v2675
        %vm2710 = vcmp.eq.s32.totalorder %v2608, %v2675
        %vm2711 = vcmp.eq.s32.totalorder %v788, %v2676
        %vm2712 = vcmp.eq.s32.totalorder %v2608, %v2676
        %vm2713 = vcmp.eq.s32.totalorder %v788, %v2677
        %vm2714 = vcmp.eq.s32.totalorder %v2608, %v2677
        %vm2715 = vcmp.eq.s32.totalorder %v788, %v2678
        %vm2716 = vcmp.eq.s32.totalorder %v2608, %v2678
        %vm2717 = vcmp.eq.s32.totalorder %v788, %v2679
        %vm2718 = vcmp.eq.s32.totalorder %v2608, %v2679
        %vm2719 = vcmp.eq.s32.totalorder %v788, %v2680
        %vm2720 = vcmp.eq.s32.totalorder %v2608, %v2680
        %vm2721 = vcmp.eq.s32.totalorder %v788, %v2681
        %vm2722 = vcmp.eq.s32.totalorder %v2608, %v2681
        %vm2723 = vcmp.eq.s32.totalorder %v788, %v2682
        %vm2724 = vcmp.eq.s32.totalorder %v2608, %v2682
        %vm2725 = vcmp.eq.s32.totalorder %v788, %v2683
        %vm2726 = vcmp.eq.s32.totalorder %v2608, %v2683
        %vm2727 = vcmp.eq.s32.totalorder %v788, %v2684
        %vm2728 = vcmp.eq.s32.totalorder %v2608, %v2684
        %vm2729 = vcmp.eq.s32.totalorder %v788, %v2685
        %vm2730 = vcmp.eq.s32.totalorder %v2608, %v2685
        %vm2731 = vcmp.eq.s32.totalorder %v788, %v2686
        %vm2732 = vcmp.eq.s32.totalorder %v2608, %v2686
        %vm2733 = vcmp.eq.s32.totalorder %v788, %v2687
        %vm2734 = vcmp.eq.s32.totalorder %v2608, %v2687
        %vm2735 = vcmp.eq.s32.totalorder %v788, %v2688
        %vm2736 = vcmp.eq.s32.totalorder %v2608, %v2688
        %vm2737 = vcmp.eq.s32.totalorder %v788, %v2689
        %vm2738 = vcmp.eq.s32.totalorder %v2608, %v2689
        %vm2739 = vcmp.eq.s32.totalorder %v788, %v2690
        %vm2740 = vcmp.eq.s32.totalorder %v2608, %v2690
        %vm2741 = vcmp.eq.s32.totalorder %v788, %v2691
        %vm2742 = vcmp.eq.s32.totalorder %v2608, %v2691
        %vm2743 = vcmp.eq.s32.totalorder %v788, %v2692
        %vm2744 = vcmp.eq.s32.totalorder %v2608, %v2692
        %vm2745 = vcmp.eq.s32.totalorder %v788, %v2693
        %vm2746 = vcmp.eq.s32.totalorder %v2608, %v2693
        %vm2747 = vcmp.eq.s32.totalorder %v788, %v2694
        %vm2748 = vcmp.eq.s32.totalorder %v2608, %v2694
        %vm2749 = vcmp.eq.s32.totalorder %v788, %v2695
        %vm2750 = vcmp.eq.s32.totalorder %v2608, %v2695
        %vm2751 = vcmp.eq.s32.totalorder %v788, %v2696
        %vm2752 = vcmp.eq.s32.totalorder %v2608, %v2696
        %vm2753 = vcmp.eq.s32.totalorder %v788, %v2697
        %vm2754 = vcmp.eq.s32.totalorder %v2608, %v2697
        %vm2755 = vcmp.eq.s32.totalorder %v788, %v2698
        %vm2756 = vcmp.eq.s32.totalorder %v2608, %v2698
        %vm2757 = vcmp.eq.s32.totalorder %v788, %v2699
        %vm2758 = vcmp.eq.s32.totalorder %v2608, %v2699
        %vm2759 = vcmp.eq.s32.totalorder %v788, %v2700
        %vm2760 = vcmp.eq.s32.totalorder %v2608, %v2700
        %vm2761 = vcmp.eq.s32.totalorder %v788, %v2701
        %vm2762 = vcmp.eq.s32.totalorder %v2608, %v2701
        %vm2763 = vcmp.eq.s32.totalorder %v788, %v2702
        %vm2764 = vcmp.eq.s32.totalorder %v2608, %v2702
        %vm2765 = vcmp.eq.s32.totalorder %v788, %v2703
        %vm2766 = vcmp.eq.s32.totalorder %v2608, %v2703
        %vm2767 = vcmp.eq.s32.totalorder %v788, %v2704
        %vm2768 = vcmp.eq.s32.totalorder %v2608, %v2704
        %v2769 = vsel %vm2705, 1, 0
        %v2770 = vsel %vm2706, 1, 0
        %v2771 = vsel %vm2707, 1, 0
        %v2772 = vsel %vm2708, 1, 0
        %v2773 = vsel %vm2709, 1, 0
        %v2774 = vsel %vm2710, 1, 0
        %v2775 = vsel %vm2711, 1, 0
        %v2776 = vsel %vm2712, 1, 0
        %v2777 = vsel %vm2713, 1, 0
        %v2778 = vsel %vm2714, 1, 0
        %v2779 = vsel %vm2715, 1, 0
        %v2780 = vsel %vm2716, 1, 0
        %v2781 = vsel %vm2717, 1, 0
        %v2782 = vsel %vm2718, 1, 0
        %v2783 = vsel %vm2719, 1, 0
        %v2784 = vsel %vm2720, 1, 0
        %v2785 = vsel %vm2721, 1, 0
        %v2786 = vsel %vm2722, 1, 0
        %v2787 = vsel %vm2723, 1, 0
        %v2788 = vsel %vm2724, 1, 0
        %v2789 = vsel %vm2725, 1, 0
        %v2790 = vsel %vm2726, 1, 0
        %v2791 = vsel %vm2727, 1, 0
        %v2792 = vsel %vm2728, 1, 0
        %v2793 = vsel %vm2729, 1, 0
        %v2794 = vsel %vm2730, 1, 0
        %v2795 = vsel %vm2731, 1, 0
        %v2796 = vsel %vm2732, 1, 0
        %v2797 = vsel %vm2733, 1, 0
        %v2798 = vsel %vm2734, 1, 0
        %v2799 = vsel %vm2735, 1, 0
        %v2800 = vsel %vm2736, 1, 0
        %v2801 = vsel %vm2737, 1, 0
        %v2802 = vsel %vm2738, 1, 0
        %v2803 = vsel %vm2739, 1, 0
        %v2804 = vsel %vm2740, 1, 0
        %v2805 = vsel %vm2741, 1, 0
        %v2806 = vsel %vm2742, 1, 0
        %v2807 = vsel %vm2743, 1, 0
        %v2808 = vsel %vm2744, 1, 0
        %v2809 = vsel %vm2745, 1, 0
        %v2810 = vsel %vm2746, 1, 0
        %v2811 = vsel %vm2747, 1, 0
        %v2812 = vsel %vm2748, 1, 0
        %v2813 = vsel %vm2749, 1, 0
        %v2814 = vsel %vm2750, 1, 0
        %v2815 = vsel %vm2751, 1, 0
        %v2816 = vsel %vm2752, 1, 0
        %v2817 = vsel %vm2753, 1, 0
        %v2818 = vsel %vm2754, 1, 0
        %v2819 = vsel %vm2755, 1, 0
        %v2820 = vsel %vm2756, 1, 0
        %v2821 = vsel %vm2757, 1, 0
        %v2822 = vsel %vm2758, 1, 0
        %v2823 = vsel %vm2759, 1, 0
        %v2824 = vsel %vm2760, 1, 0
        %v2825 = vsel %vm2761, 1, 0
        %v2826 = vsel %vm2762, 1, 0
        %v2827 = vsel %vm2763, 1, 0
        %v2828 = vsel %vm2764, 1, 0
        %v2829 = vsel %vm2765, 1, 0
        %v2830 = vsel %vm2766, 1, 0
        %v2831 = vsel %vm2767, 1, 0
        %v2832 = vsel %vm2768, 1, 0
        %v2833 = vcvt.s32.f32 %v2769
        %v2834 = vcvt.s32.f32 %v2770
        %v2835 = vcvt.s32.f32 %v2771
        %v2836 = vcvt.s32.f32 %v2772
        %v2837 = vcvt.s32.f32 %v2773
        %v2838 = vcvt.s32.f32 %v2774
        %v2839 = vcvt.s32.f32 %v2775
        %v2840 = vcvt.s32.f32 %v2776
        %v2841 = vcvt.s32.f32 %v2777
        %v2842 = vcvt.s32.f32 %v2778
        %v2843 = vcvt.s32.f32 %v2779
        %v2844 = vcvt.s32.f32 %v2780
        %v2845 = vcvt.s32.f32 %v2781
        %v2846 = vcvt.s32.f32 %v2782
        %v2847 = vcvt.s32.f32 %v2783
        %v2848 = vcvt.s32.f32 %v2784
        %v2849 = vcvt.s32.f32 %v2785
        %v2850 = vcvt.s32.f32 %v2786
        %v2851 = vcvt.s32.f32 %v2787
        %v2852 = vcvt.s32.f32 %v2788
        %v2853 = vcvt.s32.f32 %v2789
        %v2854 = vcvt.s32.f32 %v2790
        %v2855 = vcvt.s32.f32 %v2791
        %v2856 = vcvt.s32.f32 %v2792
        %v2857 = vcvt.s32.f32 %v2793
        %v2858 = vcvt.s32.f32 %v2794
        %v2859 = vcvt.s32.f32 %v2795
        %v2860 = vcvt.s32.f32 %v2796
        %v2861 = vcvt.s32.f32 %v2797
        %v2862 = vcvt.s32.f32 %v2798
        %v2863 = vcvt.s32.f32 %v2799
        %v2864 = vcvt.s32.f32 %v2800
        %v2865 = vcvt.s32.f32 %v2801
        %v2866 = vcvt.s32.f32 %v2802
        %v2867 = vcvt.s32.f32 %v2803
        %v2868 = vcvt.s32.f32 %v2804
        %v2869 = vcvt.s32.f32 %v2805
        %v2870 = vcvt.s32.f32 %v2806
        %v2871 = vcvt.s32.f32 %v2807
        %v2872 = vcvt.s32.f32 %v2808
        %v2873 = vcvt.s32.f32 %v2809
        %v2874 = vcvt.s32.f32 %v2810
        %v2875 = vcvt.s32.f32 %v2811
        %v2876 = vcvt.s32.f32 %v2812
        %v2877 = vcvt.s32.f32 %v2813
        %v2878 = vcvt.s32.f32 %v2814
        %v2879 = vcvt.s32.f32 %v2815
        %v2880 = vcvt.s32.f32 %v2816
        %v2881 = vcvt.s32.f32 %v2817
        %v2882 = vcvt.s32.f32 %v2818
        %v2883 = vcvt.s32.f32 %v2819
        %v2884 = vcvt.s32.f32 %v2820
        %v2885 = vcvt.s32.f32 %v2821
        %v2886 = vcvt.s32.f32 %v2822
        %v2887 = vcvt.s32.f32 %v2823
        %v2888 = vcvt.s32.f32 %v2824
        %v2889 = vcvt.s32.f32 %v2825
        %v2890 = vcvt.s32.f32 %v2826
        %v2891 = vcvt.s32.f32 %v2827
        %v2892 = vcvt.s32.f32 %v2828
        %v2893 = vcvt.s32.f32 %v2829
        %v2894 = vcvt.s32.f32 %v2830
        %v2895 = vcvt.s32.f32 %v2831
        %v2896 = vcvt.s32.f32 %v2832
        %2897 = vmatprep.subr.mxu0 0.0
        %2898 = vmatpush1.msra.mxu0 %v2527
        %2899 = vmatprep.subr.mxu0 0.0
        %2900 = vmatpush1.msra.mxu0 %v2526
        %2901 = vmatprep.subr.mxu0 0.0
        %2902 = vmatpush1.msra.mxu0 %v2525
        %2903 = vmatprep.subr.mxu0 0.0
        %2904 = vmatpush1.msra.mxu0 %v2524
        %2905 = vmatprep.subr.mxu0 0.0
        %2906 = vmatpush1.msra.mxu0 %v2523
        %2907 = vmatprep.subr.mxu0 0.0
        %2908 = vmatpush1.msra.mxu0 %v2522
        %2909 = vmatprep.subr.mxu0 0.0
        %2910 = vmatpush1.msra.mxu0 %v2521
        %2911 = vmatprep.subr.mxu0 0.0
        %2912 = vmatpush1.msra.mxu0 %v2520
        %2913 = vmatprep.subr.mxu0 0.0
        %2914 = vmatpush1.msra.mxu0 %v2519
        %2915 = vmatprep.subr.mxu0 0.0
        %2916 = vmatpush1.msra.mxu0 %v2518
        %2917 = vmatprep.subr.mxu0 0.0
        %2918 = vmatpush1.msra.mxu0 %v2517
        %2919 = vmatprep.subr.mxu0 0.0
        %2920 = vmatpush1.msra.mxu0 %v2516
        %2921 = vmatprep.subr.mxu0 0.0
        %2922 = vmatpush1.msra.mxu0 %v2515
        %2923 = vmatprep.subr.mxu0 0.0
        %2924 = vmatpush1.msra.mxu0 %v2514
        %2925 = vmatprep.subr.mxu0 0.0
        %2926 = vmatpush1.msra.mxu0 %v2513
        %2927 = vmatprep.subr.mxu0 0.0
        %2928 = vmatpush1.msra.mxu0 %v2512
        %2929 = vmatprep.subr.mxu0 0.0
        %2930 = vmatpush2.msra.mxu0 %v2575
        %2931 = vmatprep.subr.mxu0 0.0
        %2932 = vmatpush2.msra.mxu0 %v2573
        %2933 = vmatprep.subr.mxu0 0.0
        %2934 = vmatpush2.msra.mxu0 %v2571
        %2935 = vmatprep.subr.mxu0 0.0
        %2936 = vmatpush2.msra.mxu0 %v2569
        %2937 = vmatprep.subr.mxu0 0.0
        %2938 = vmatpush2.msra.mxu0 %v2567
        %2939 = vmatprep.subr.mxu0 0.0
        %2940 = vmatpush2.msra.mxu0 %v2565
        %2941 = vmatprep.subr.mxu0 0.0
        %2942 = vmatpush2.msra.mxu0 %v2563
        %2943 = vmatprep.subr.mxu0 0.0
        %2944 = vmatpush2.msra.mxu0 %v2561
        %2945 = vmatprep.subr.mxu0 0.0
        %2946 = vmatpush2.msra.mxu0 %v2559
        %2947 = vmatprep.subr.mxu0 0.0
        %2948 = vmatpush2.msra.mxu0 %v2557
        %2949 = vmatprep.subr.mxu0 0.0
        %2950 = vmatpush2.msra.mxu0 %v2555
        %2951 = vmatprep.subr.mxu0 0.0
        %2952 = vmatpush2.msra.mxu0 %v2553
        %2953 = vmatprep.subr.mxu0 0.0
        %2954 = vmatpush2.msra.mxu0 %v2551
        %2955 = vmatprep.subr.mxu0 0.0
        %2956 = vmatpush2.msra.mxu0 %v2549
        %2957 = vmatprep.subr.mxu0 0.0
        %2958 = vmatpush2.msra.mxu0 %v2547
        %2959 = vmatprep.subr.mxu0 0.0
        %2960 = vmatpush2.msra.mxu0 %v2545
        %2961 = vmatprep.mubr.f32.mxu0 %v2834
        %2962 = vmatmul.mubr.f32.gmra.mxu0 %v2833
        %v2963 = vpop.f32.mrf.mxu0
        %v2964 = vadd.f32 0.0, %v2963
        %v2965 = vpop.f32.mrf.mxu0
        %2966 = vmatprep.mubr.f32.mxu0 %v2836
        %2967 = vmatmul.mubr.f32.gmra.mxu0 %v2835
        %v2968 = vpop.f32.mrf.mxu0
        %v2969 = vadd.f32 0.0, %v2968
        %v2970 = vpop.f32.mrf.mxu0
        %2971 = vmatprep.mubr.f32.mxu0 %v2838
        %2972 = vmatmul.mubr.f32.gmra.mxu0 %v2837
        %v2973 = vpop.f32.mrf.mxu0
        %v2974 = vadd.f32 0.0, %v2973
        %v2975 = vpop.f32.mrf.mxu0
        %2976 = vmatprep.mubr.f32.mxu0 %v2840
        %2977 = vmatmul.mubr.f32.gmra.mxu0 %v2839
        %v2978 = vpop.f32.mrf.mxu0
        %v2979 = vadd.f32 0.0, %v2978
        %v2980 = vpop.f32.mrf.mxu0
        %2981 = vmatprep.mubr.f32.mxu0 %v2842
        %2982 = vmatmul.mubr.f32.gmra.mxu0 %v2841
        %v2983 = vpop.f32.mrf.mxu0
        %v2984 = vadd.f32 0.0, %v2983
        %v2985 = vpop.f32.mrf.mxu0
        %2986 = vmatprep.mubr.f32.mxu0 %v2844
        %2987 = vmatmul.mubr.f32.gmra.mxu0 %v2843
        %v2988 = vpop.f32.mrf.mxu0
        %v2989 = vadd.f32 0.0, %v2988
        %v2990 = vpop.f32.mrf.mxu0
        %2991 = vmatprep.mubr.f32.mxu0 %v2846
        %2992 = vmatmul.mubr.f32.gmra.mxu0 %v2845
        %v2993 = vpop.f32.mrf.mxu0
        %v2994 = vadd.f32 0.0, %v2993
        %v2995 = vpop.f32.mrf.mxu0
        %2996 = vmatprep.mubr.f32.mxu0 %v2848
        %2997 = vmatmul.mubr.f32.gmra.mxu0 %v2847
        %v2998 = vpop.f32.mrf.mxu0
        %v2999 = vadd.f32 0.0, %v2998
        %v3000 = vpop.f32.mrf.mxu0
        %3001 = vmatprep.mubr.f32.mxu0 %v2850
        %3002 = vmatmul.mubr.f32.gmra.mxu0 %v2849
        %v3003 = vpop.f32.mrf.mxu0
        %v3004 = vadd.f32 0.0, %v3003
        %v3005 = vpop.f32.mrf.mxu0
        %3006 = vmatprep.mubr.f32.mxu0 %v2852
        %3007 = vmatmul.mubr.f32.gmra.mxu0 %v2851
        %v3008 = vpop.f32.mrf.mxu0
        %v3009 = vadd.f32 0.0, %v3008
        %v3010 = vpop.f32.mrf.mxu0
        %3011 = vmatprep.mubr.f32.mxu0 %v2854
        %3012 = vmatmul.mubr.f32.gmra.mxu0 %v2853
        %v3013 = vpop.f32.mrf.mxu0
        %v3014 = vadd.f32 0.0, %v3013
        %v3015 = vpop.f32.mrf.mxu0
        %3016 = vmatprep.mubr.f32.mxu0 %v2856
        %3017 = vmatmul.mubr.f32.gmra.mxu0 %v2855
        %v3018 = vpop.f32.mrf.mxu0
        %v3019 = vadd.f32 0.0, %v3018
        %v3020 = vpop.f32.mrf.mxu0
        %3021 = vmatprep.mubr.f32.mxu0 %v2858
        %3022 = vmatmul.mubr.f32.gmra.mxu0 %v2857
        %v3023 = vpop.f32.mrf.mxu0
        %v3024 = vadd.f32 0.0, %v3023
        %v3025 = vpop.f32.mrf.mxu0
        %3026 = vmatprep.mubr.f32.mxu0 %v2860
        %3027 = vmatmul.mubr.f32.gmra.mxu0 %v2859
        %v3028 = vpop.f32.mrf.mxu0
        %v3029 = vadd.f32 0.0, %v3028
        %v3030 = vpop.f32.mrf.mxu0
        %3031 = vmatprep.mubr.f32.mxu0 %v2862
        %3032 = vmatmul.mubr.f32.gmra.mxu0 %v2861
        %v3033 = vpop.f32.mrf.mxu0
        %v3034 = vadd.f32 0.0, %v3033
        %v3035 = vpop.f32.mrf.mxu0
        %3036 = vmatprep.mubr.f32.mxu0 %v2864
        %3037 = vmatmul.mubr.f32.gmra.mxu0 %v2863
        %v3038 = vpop.f32.mrf.mxu0
        %v3039 = vadd.f32 0.0, %v3038
        %v3040 = vpop.f32.mrf.mxu0
        %3041 = vmatprep.mubr.f32.mxu0 %v2866
        %3042 = vmatmul.mubr.f32.gmra.mxu0 %v2865
        %v3043 = vpop.f32.mrf.mxu0
        %v3044 = vadd.f32 0.0, %v3043
        %v3045 = vpop.f32.mrf.mxu0
        %3046 = vmatprep.mubr.f32.mxu0 %v2868
        %3047 = vmatmul.mubr.f32.gmra.mxu0 %v2867
        %v3048 = vpop.f32.mrf.mxu0
        %v3049 = vadd.f32 0.0, %v3048
        %v3050 = vpop.f32.mrf.mxu0
        %3051 = vmatprep.mubr.f32.mxu0 %v2870
        %3052 = vmatmul.mubr.f32.gmra.mxu0 %v2869
        %v3053 = vpop.f32.mrf.mxu0
        %v3054 = vadd.f32 0.0, %v3053
        %v3055 = vpop.f32.mrf.mxu0
        %3056 = vmatprep.mubr.f32.mxu0 %v2872
        %3057 = vmatmul.mubr.f32.gmra.mxu0 %v2871
        %v3058 = vpop.f32.mrf.mxu0
        %v3059 = vadd.f32 0.0, %v3058
        %v3060 = vpop.f32.mrf.mxu0
        %3061 = vmatprep.mubr.f32.mxu0 %v2874
        %3062 = vmatmul.mubr.f32.gmra.mxu0 %v2873
        %v3063 = vpop.f32.mrf.mxu0
        %v3064 = vadd.f32 0.0, %v3063
        %v3065 = vpop.f32.mrf.mxu0
        %3066 = vmatprep.mubr.f32.mxu0 %v2876
        %3067 = vmatmul.mubr.f32.gmra.mxu0 %v2875
        %v3068 = vpop.f32.mrf.mxu0
        %v3069 = vadd.f32 0.0, %v3068
        %v3070 = vpop.f32.mrf.mxu0
        %3071 = vmatprep.mubr.f32.mxu0 %v2878
        %3072 = vmatmul.mubr.f32.gmra.mxu0 %v2877
        %v3073 = vpop.f32.mrf.mxu0
        %v3074 = vadd.f32 0.0, %v3073
        %v3075 = vpop.f32.mrf.mxu0
        %3076 = vmatprep.mubr.f32.mxu0 %v2880
        %3077 = vmatmul.mubr.f32.gmra.mxu0 %v2879
        %v3078 = vpop.f32.mrf.mxu0
        %v3079 = vadd.f32 0.0, %v3078
        %v3080 = vpop.f32.mrf.mxu0
        %3081 = vmatprep.mubr.f32.mxu0 %v2882
        %3082 = vmatmul.mubr.f32.gmra.mxu0 %v2881
        %v3083 = vpop.f32.mrf.mxu0
        %v3084 = vadd.f32 0.0, %v3083
        %v3085 = vpop.f32.mrf.mxu0
        %3086 = vmatprep.mubr.f32.mxu0 %v2884
        %3087 = vmatmul.mubr.f32.gmra.mxu0 %v2883
        %v3088 = vpop.f32.mrf.mxu0
        %v3089 = vadd.f32 0.0, %v3088
        %v3090 = vpop.f32.mrf.mxu0
        %3091 = vmatprep.mubr.f32.mxu0 %v2886
        %3092 = vmatmul.mubr.f32.gmra.mxu0 %v2885
        %v3093 = vpop.f32.mrf.mxu0
        %v3094 = vadd.f32 0.0, %v3093
        %v3095 = vpop.f32.mrf.mxu0
        %3096 = vmatprep.mubr.f32.mxu0 %v2888
        %3097 = vmatmul.mubr.f32.gmra.mxu0 %v2887
        %v3098 = vpop.f32.mrf.mxu0
        %v3099 = vadd.f32 0.0, %v3098
        %v3100 = vpop.f32.mrf.mxu0
        %3101 = vmatprep.mubr.f32.mxu0 %v2890
        %3102 = vmatmul.mubr.f32.gmra.mxu0 %v2889
        %v3103 = vpop.f32.mrf.mxu0
        %v3104 = vadd.f32 0.0, %v3103
        %v3105 = vpop.f32.mrf.mxu0
        %3106 = vmatprep.mubr.f32.mxu0 %v2892
        %3107 = vmatmul.mubr.f32.gmra.mxu0 %v2891
        %v3108 = vpop.f32.mrf.mxu0
        %v3109 = vadd.f32 0.0, %v3108
        %v3110 = vpop.f32.mrf.mxu0
        %3111 = vmatprep.mubr.f32.mxu0 %v2894
        %3112 = vmatmul.mubr.f32.gmra.mxu0 %v2893
        %v3113 = vpop.f32.mrf.mxu0
        %v3114 = vadd.f32 0.0, %v3113
        %v3115 = vpop.f32.mrf.mxu0
        %3116 = vmatprep.mubr.f32.mxu0 %v2896
        %3117 = vmatmul.mubr.f32.gmra.mxu0 %v2895
        %v3118 = vpop.f32.mrf.mxu0
        %v3119 = vadd.f32 0.0, %v3118
        %v3120 = vpop.f32.mrf.mxu0
        %3121 = vdwg.mxu0
        %v3154 = vrot.slane %v2964, 7
        %v3155 = vrot.slane %v2969, 7
        %v3156 = vsel %vm669, %v3154, %v3155
        %v3157 = vrot.slane %v2974, 7
        %v3158 = vsel %vm669, %v3155, %v3157
        %v3159 = vrot.slane %v2979, 7
        %v3160 = vsel %vm669, %v3157, %v3159
        %v3161 = vrot.slane %v2984, 7
        %v3162 = vsel %vm669, %v3159, %v3161
        %v3163 = vrot.slane %v2989, 7
        %v3164 = vsel %vm669, %v3161, %v3163
        %v3165 = vrot.slane %v2994, 7
        %v3166 = vsel %vm669, %v3163, %v3165
        %v3167 = vrot.slane %v2999, 7
        %v3168 = vsel %vm669, %v3165, %v3167
        %v3169 = vrot.slane %v3004, 7
        %v3170 = vsel %vm669, %v3167, %v3169
        %v3171 = vrot.slane %v3009, 7
        %v3172 = vsel %vm669, %v3169, %v3171
        %v3173 = vrot.slane %v3014, 7
        %v3174 = vsel %vm669, %v3171, %v3173
        %v3175 = vrot.slane %v3019, 7
        %v3176 = vsel %vm669, %v3173, %v3175
        %v3177 = vrot.slane %v3024, 7
        %v3178 = vsel %vm669, %v3175, %v3177
        %v3179 = vrot.slane %v3029, 7
        %v3180 = vsel %vm669, %v3177, %v3179
        %v3181 = vrot.slane %v3034, 7
        %v3182 = vsel %vm669, %v3179, %v3181
        %v3183 = vrot.slane %v3039, 7
        %v3184 = vsel %vm669, %v3181, %v3183
        %v3185 = vrot.slane %v3044, 7
        %v3186 = vsel %vm669, %v3183, %v3185
        %v3187 = vrot.slane %v3049, 7
        %v3188 = vsel %vm669, %v3185, %v3187
        %v3189 = vrot.slane %v3054, 7
        %v3190 = vsel %vm669, %v3187, %v3189
        %v3191 = vrot.slane %v3059, 7
        %v3192 = vsel %vm669, %v3189, %v3191
        %v3193 = vrot.slane %v3064, 7
        %v3194 = vsel %vm669, %v3191, %v3193
        %v3195 = vrot.slane %v3069, 7
        %v3196 = vsel %vm669, %v3193, %v3195
        %v3197 = vrot.slane %v3074, 7
        %v3198 = vsel %vm669, %v3195, %v3197
        %v3199 = vrot.slane %v3079, 7
        %v3200 = vsel %vm669, %v3197, %v3199
        %v3201 = vrot.slane %v3084, 7
        %v3202 = vsel %vm669, %v3199, %v3201
        %v3203 = vrot.slane %v3089, 7
        %v3204 = vsel %vm669, %v3201, %v3203
        %v3205 = vrot.slane %v3094, 7
        %v3206 = vsel %vm669, %v3203, %v3205
        %v3207 = vrot.slane %v3099, 7
        %v3208 = vsel %vm669, %v3205, %v3207
        %v3209 = vrot.slane %v3104, 7
        %v3210 = vsel %vm669, %v3207, %v3209
        %v3211 = vrot.slane %v3109, 7
        %v3212 = vsel %vm669, %v3209, %v3211
        %v3213 = vrot.slane %v3114, 7
        %v3214 = vsel %vm669, %v3211, %v3213
        %v3215 = vrot.slane %v3119, 7
        %v3216 = vsel %vm669, %v3213, %v3215
        %v3249 = vsel %vm669, 0.0, %v3154
        %v3250 = vrot.slane %v2964, 1
        %v3251 = vrot.slane %v2969, 1
        %v3252 = vsel %vm673, %v3250, %v3251
        %v3253 = vrot.slane %v2974, 1
        %v3254 = vsel %vm673, %v3251, %v3253
        %v3255 = vrot.slane %v2979, 1
        %v3256 = vsel %vm673, %v3253, %v3255
        %v3257 = vrot.slane %v2984, 1
        %v3258 = vsel %vm673, %v3255, %v3257
        %v3259 = vrot.slane %v2989, 1
        %v3260 = vsel %vm673, %v3257, %v3259
        %v3261 = vrot.slane %v2994, 1
        %v3262 = vsel %vm673, %v3259, %v3261
        %v3263 = vrot.slane %v2999, 1
        %v3264 = vsel %vm673, %v3261, %v3263
        %v3265 = vrot.slane %v3004, 1
        %v3266 = vsel %vm673, %v3263, %v3265
        %v3267 = vrot.slane %v3009, 1
        %v3268 = vsel %vm673, %v3265, %v3267
        %v3269 = vrot.slane %v3014, 1
        %v3270 = vsel %vm673, %v3267, %v3269
        %v3271 = vrot.slane %v3019, 1
        %v3272 = vsel %vm673, %v3269, %v3271
        %v3273 = vrot.slane %v3024, 1
        %v3274 = vsel %vm673, %v3271, %v3273
        %v3275 = vrot.slane %v3029, 1
        %v3276 = vsel %vm673, %v3273, %v3275
        %v3277 = vrot.slane %v3034, 1
        %v3278 = vsel %vm673, %v3275, %v3277
        %v3279 = vrot.slane %v3039, 1
        %v3280 = vsel %vm673, %v3277, %v3279
        %v3281 = vrot.slane %v3044, 1
        %v3282 = vsel %vm673, %v3279, %v3281
        %v3283 = vrot.slane %v3049, 1
        %v3284 = vsel %vm673, %v3281, %v3283
        %v3285 = vrot.slane %v3054, 1
        %v3286 = vsel %vm673, %v3283, %v3285
        %v3287 = vrot.slane %v3059, 1
        %v3288 = vsel %vm673, %v3285, %v3287
        %v3289 = vrot.slane %v3064, 1
        %v3290 = vsel %vm673, %v3287, %v3289
        %v3291 = vrot.slane %v3069, 1
        %v3292 = vsel %vm673, %v3289, %v3291
        %v3293 = vrot.slane %v3074, 1
        %v3294 = vsel %vm673, %v3291, %v3293
        %v3295 = vrot.slane %v3079, 1
        %v3296 = vsel %vm673, %v3293, %v3295
        %v3297 = vrot.slane %v3084, 1
        %v3298 = vsel %vm673, %v3295, %v3297
        %v3299 = vrot.slane %v3089, 1
        %v3300 = vsel %vm673, %v3297, %v3299
        %v3301 = vrot.slane %v3094, 1
        %v3302 = vsel %vm673, %v3299, %v3301
        %v3303 = vrot.slane %v3099, 1
        %v3304 = vsel %vm673, %v3301, %v3303
        %v3305 = vrot.slane %v3104, 1
        %v3306 = vsel %vm673, %v3303, %v3305
        %v3307 = vrot.slane %v3109, 1
        %v3308 = vsel %vm673, %v3305, %v3307
        %v3309 = vrot.slane %v3114, 1
        %v3310 = vsel %vm673, %v3307, %v3309
        %v3311 = vrot.slane %v3119, 1
        %v3312 = vsel %vm673, %v3309, %v3311
        %v3314 = vsel %vm673, %v3311, 0.0
        %3315 = vrot.lane.b32.xlu0 %v2964, 32
        %v3316 = vpop.permute.xlu0 %3315
        %3317 = vrot.lane.b32.xlu0 %v2969, 32
        %v3318 = vpop.permute.xlu0 %3317
        %3319 = vrot.lane.b32.xlu0 %v2974, 32
        %v3320 = vpop.permute.xlu0 %3319
        %3321 = vrot.lane.b32.xlu0 %v2979, 32
        %v3322 = vpop.permute.xlu0 %3321
        %3323 = vrot.lane.b32.xlu0 %v2984, 32
        %v3324 = vpop.permute.xlu0 %3323
        %3325 = vrot.lane.b32.xlu0 %v2989, 32
        %v3326 = vpop.permute.xlu0 %3325
        %3327 = vrot.lane.b32.xlu0 %v2994, 32
        %v3328 = vpop.permute.xlu0 %3327
        %3329 = vrot.lane.b32.xlu0 %v2999, 32
        %v3330 = vpop.permute.xlu0 %3329
        %3331 = vrot.lane.b32.xlu0 %v3004, 32
        %v3332 = vpop.permute.xlu0 %3331
        %3333 = vrot.lane.b32.xlu0 %v3009, 32
        %v3334 = vpop.permute.xlu0 %3333
        %3335 = vrot.lane.b32.xlu0 %v3014, 32
        %v3336 = vpop.permute.xlu0 %3335
        %3337 = vrot.lane.b32.xlu0 %v3019, 32
        %v3338 = vpop.permute.xlu0 %3337
        %3339 = vrot.lane.b32.xlu0 %v3024, 32
        %v3340 = vpop.permute.xlu0 %3339
        %3341 = vrot.lane.b32.xlu0 %v3029, 32
        %v3342 = vpop.permute.xlu0 %3341
        %3343 = vrot.lane.b32.xlu0 %v3034, 32
        %v3344 = vpop.permute.xlu0 %3343
        %3345 = vrot.lane.b32.xlu0 %v3039, 32
        %v3346 = vpop.permute.xlu0 %3345
        %3347 = vrot.lane.b32.xlu0 %v3044, 32
        %v3348 = vpop.permute.xlu0 %3347
        %3349 = vrot.lane.b32.xlu0 %v3049, 32
        %v3350 = vpop.permute.xlu0 %3349
        %3351 = vrot.lane.b32.xlu0 %v3054, 32
        %v3352 = vpop.permute.xlu0 %3351
        %3353 = vrot.lane.b32.xlu0 %v3059, 32
        %v3354 = vpop.permute.xlu0 %3353
        %3355 = vrot.lane.b32.xlu0 %v3064, 32
        %v3356 = vpop.permute.xlu0 %3355
        %3357 = vrot.lane.b32.xlu0 %v3069, 32
        %v3358 = vpop.permute.xlu0 %3357
        %3359 = vrot.lane.b32.xlu0 %v3074, 32
        %v3360 = vpop.permute.xlu0 %3359
        %3361 = vrot.lane.b32.xlu0 %v3079, 32
        %v3362 = vpop.permute.xlu0 %3361
        %3363 = vrot.lane.b32.xlu0 %v3084, 32
        %v3364 = vpop.permute.xlu0 %3363
        %3365 = vrot.lane.b32.xlu0 %v3089, 32
        %v3366 = vpop.permute.xlu0 %3365
        %3367 = vrot.lane.b32.xlu0 %v3094, 32
        %v3368 = vpop.permute.xlu0 %3367
        %3369 = vrot.lane.b32.xlu0 %v3099, 32
        %v3370 = vpop.permute.xlu0 %3369
        %3371 = vrot.lane.b32.xlu0 %v3104, 32
        %v3372 = vpop.permute.xlu0 %3371
        %3373 = vrot.lane.b32.xlu0 %v3109, 32
        %v3374 = vpop.permute.xlu0 %3373
        %3375 = vrot.lane.b32.xlu0 %v3114, 32
        %v3376 = vpop.permute.xlu0 %3375
        %3377 = vrot.lane.b32.xlu0 %v3119, 32
        %v3378 = vpop.permute.xlu0 %3377
        %3412 = vrot.lane.b32.xlu0 %v3252, 64
        %v3413 = vpop.permute.xlu0 %3412
        %3414 = vrot.lane.b32.xlu0 %v3254, 64
        %v3415 = vpop.permute.xlu0 %3414
        %3416 = vrot.lane.b32.xlu0 %v3256, 64
        %v3417 = vpop.permute.xlu0 %3416
        %3418 = vrot.lane.b32.xlu0 %v3258, 64
        %v3419 = vpop.permute.xlu0 %3418
        %3420 = vrot.lane.b32.xlu0 %v3260, 64
        %v3421 = vpop.permute.xlu0 %3420
        %3422 = vrot.lane.b32.xlu0 %v3262, 64
        %v3423 = vpop.permute.xlu0 %3422
        %3424 = vrot.lane.b32.xlu0 %v3264, 64
        %v3425 = vpop.permute.xlu0 %3424
        %3426 = vrot.lane.b32.xlu0 %v3266, 64
        %v3427 = vpop.permute.xlu0 %3426
        %3428 = vrot.lane.b32.xlu0 %v3268, 64
        %v3429 = vpop.permute.xlu0 %3428
        %3430 = vrot.lane.b32.xlu0 %v3270, 64
        %v3431 = vpop.permute.xlu0 %3430
        %3432 = vrot.lane.b32.xlu0 %v3272, 64
        %v3433 = vpop.permute.xlu0 %3432
        %3434 = vrot.lane.b32.xlu0 %v3274, 64
        %v3435 = vpop.permute.xlu0 %3434
        %3436 = vrot.lane.b32.xlu0 %v3276, 64
        %v3437 = vpop.permute.xlu0 %3436
        %3438 = vrot.lane.b32.xlu0 %v3278, 64
        %v3439 = vpop.permute.xlu0 %3438
        %3440 = vrot.lane.b32.xlu0 %v3280, 64
        %v3441 = vpop.permute.xlu0 %3440
        %3442 = vrot.lane.b32.xlu0 %v3282, 64
        %v3443 = vpop.permute.xlu0 %3442
        %3444 = vrot.lane.b32.xlu0 %v3284, 64
        %v3445 = vpop.permute.xlu0 %3444
        %3446 = vrot.lane.b32.xlu0 %v3286, 64
        %v3447 = vpop.permute.xlu0 %3446
        %3448 = vrot.lane.b32.xlu0 %v3288, 64
        %v3449 = vpop.permute.xlu0 %3448
        %3450 = vrot.lane.b32.xlu0 %v3290, 64
        %v3451 = vpop.permute.xlu0 %3450
        %3452 = vrot.lane.b32.xlu0 %v3292, 64
        %v3453 = vpop.permute.xlu0 %3452
        %3454 = vrot.lane.b32.xlu0 %v3294, 64
        %v3455 = vpop.permute.xlu0 %3454
        %3456 = vrot.lane.b32.xlu0 %v3296, 64
        %v3457 = vpop.permute.xlu0 %3456
        %3458 = vrot.lane.b32.xlu0 %v3298, 64
        %v3459 = vpop.permute.xlu0 %3458
        %3460 = vrot.lane.b32.xlu0 %v3300, 64
        %v3461 = vpop.permute.xlu0 %3460
        %3462 = vrot.lane.b32.xlu0 %v3302, 64
        %v3463 = vpop.permute.xlu0 %3462
        %3464 = vrot.lane.b32.xlu0 %v3304, 64
        %v3465 = vpop.permute.xlu0 %3464
        %3466 = vrot.lane.b32.xlu0 %v3306, 64
        %v3467 = vpop.permute.xlu0 %3466
        %3468 = vrot.lane.b32.xlu0 %v3308, 64
        %v3469 = vpop.permute.xlu0 %3468
        %3470 = vrot.lane.b32.xlu0 %v3310, 64
        %v3471 = vpop.permute.xlu0 %3470
        %3472 = vrot.lane.b32.xlu0 %v3312, 64
        %v3473 = vpop.permute.xlu0 %3472
        %3474 = vrot.lane.b32.xlu0 %v3314, 64
        %v3475 = vpop.permute.xlu0 %3474
        %v3508 = vsel %vm682, %v3249, %v3316
        %v3509 = vsel %vm682, %v3156, %v3318
        %v3510 = vsel %vm682, %v3158, %v3320
        %v3511 = vsel %vm682, %v3160, %v3322
        %v3512 = vsel %vm682, %v3162, %v3324
        %v3513 = vsel %vm682, %v3164, %v3326
        %v3514 = vsel %vm682, %v3166, %v3328
        %v3515 = vsel %vm682, %v3168, %v3330
        %v3516 = vsel %vm682, %v3170, %v3332
        %v3517 = vsel %vm682, %v3172, %v3334
        %v3518 = vsel %vm682, %v3174, %v3336
        %v3519 = vsel %vm682, %v3176, %v3338
        %v3520 = vsel %vm682, %v3178, %v3340
        %v3521 = vsel %vm682, %v3180, %v3342
        %v3522 = vsel %vm682, %v3182, %v3344
        %v3523 = vsel %vm682, %v3184, %v3346
        %v3524 = vsel %vm682, %v3186, %v3348
        %v3525 = vsel %vm682, %v3188, %v3350
        %v3526 = vsel %vm682, %v3190, %v3352
        %v3527 = vsel %vm682, %v3192, %v3354
        %v3528 = vsel %vm682, %v3194, %v3356
        %v3529 = vsel %vm682, %v3196, %v3358
        %v3530 = vsel %vm682, %v3198, %v3360
        %v3531 = vsel %vm682, %v3200, %v3362
        %v3532 = vsel %vm682, %v3202, %v3364
        %v3533 = vsel %vm682, %v3204, %v3366
        %v3534 = vsel %vm682, %v3206, %v3368
        %v3535 = vsel %vm682, %v3208, %v3370
        %v3536 = vsel %vm682, %v3210, %v3372
        %v3537 = vsel %vm682, %v3212, %v3374
        %v3538 = vsel %vm682, %v3214, %v3376
        %v3539 = vsel %vm682, %v3216, %v3378
        %v3540 = vsel %vm684, %v3508, %v3413
        %v3541 = vsel %vm684, %v3509, %v3415
        %v3542 = vsel %vm684, %v3510, %v3417
        %v3543 = vsel %vm684, %v3511, %v3419
        %v3544 = vsel %vm684, %v3512, %v3421
        %v3545 = vsel %vm684, %v3513, %v3423
        %v3546 = vsel %vm684, %v3514, %v3425
        %v3547 = vsel %vm684, %v3515, %v3427
        %v3548 = vsel %vm684, %v3516, %v3429
        %v3549 = vsel %vm684, %v3517, %v3431
        %v3550 = vsel %vm684, %v3518, %v3433
        %v3551 = vsel %vm684, %v3519, %v3435
        %v3552 = vsel %vm684, %v3520, %v3437
        %v3553 = vsel %vm684, %v3521, %v3439
        %v3554 = vsel %vm684, %v3522, %v3441
        %v3555 = vsel %vm684, %v3523, %v3443
        %v3556 = vsel %vm684, %v3524, %v3445
        %v3557 = vsel %vm684, %v3525, %v3447
        %v3558 = vsel %vm684, %v3526, %v3449
        %v3559 = vsel %vm684, %v3527, %v3451
        %v3560 = vsel %vm684, %v3528, %v3453
        %v3561 = vsel %vm684, %v3529, %v3455
        %v3562 = vsel %vm684, %v3530, %v3457
        %v3563 = vsel %vm684, %v3531, %v3459
        %v3564 = vsel %vm684, %v3532, %v3461
        %v3565 = vsel %vm684, %v3533, %v3463
        %v3566 = vsel %vm684, %v3534, %v3465
        %v3567 = vsel %vm684, %v3535, %v3467
        %v3568 = vsel %vm684, %v3536, %v3469
        %v3569 = vsel %vm684, %v3537, %v3471
        %v3570 = vsel %vm684, %v3538, %v3473
        %v3571 = vsel %vm684, %v3539, %v3475
        %v3572 = vld [vmem:[#allocation10] sm:$0xff]
        %v3573 = vld [vmem:[#allocation10 + $0x8] sm:$0xff]
        %v3574 = vld [vmem:[#allocation10 + $0x10] sm:$0xff]
        %v3575 = vld [vmem:[#allocation10 + $0x18] sm:$0xff]
        %v3576 = vld [vmem:[#allocation10 + $0x20] sm:$0xff]
        %v3577 = vld [vmem:[#allocation10 + $0x28] sm:$0xff]
        %v3578 = vld [vmem:[#allocation10 + $0x30] sm:$0xff]
        %v3579 = vld [vmem:[#allocation10 + $0x38] sm:$0xff]
        %v3580 = vld [vmem:[#allocation10 + $0x40] sm:$0xff]
        %v3581 = vld [vmem:[#allocation10 + $0x48] sm:$0xff]
        %v3582 = vld [vmem:[#allocation10 + $0x50] sm:$0xff]
        %v3583 = vld [vmem:[#allocation10 + $0x58] sm:$0xff]
        %v3584 = vld [vmem:[%s14] sm:$0x1]
        %v3586 = vlaneseq
        %v3587 = vshrl.u32 %v3586, 7
        %v3588 = vsub.s32 0, %v3587
        %v3589 = vrot.slane %v3584, %v3588
        %v3592 = vsel %vm705, %v3540, 0
        %v3595 = vsel %vm705, %v3541, 0
        %v3598 = vsel %vm705, %v3542, 0
        %v3601 = vsel %vm705, %v3543, 0
        %v3604 = vsel %vm705, %v3544, 0
        %v3607 = vsel %vm705, %v3545, 0
        %v3610 = vsel %vm705, %v3546, 0
        %v3613 = vsel %vm705, %v3547, 0
        %v3616 = vsel %vm705, %v3548, 0
        %v3619 = vsel %vm705, %v3549, 0
        %v3622 = vsel %vm705, %v3550, 0
        %v3625 = vsel %vm705, %v3551, 0
        %v3628 = vsel %vm705, %v3552, 0
        %v3631 = vsel %vm705, %v3553, 0
        %v3634 = vsel %vm705, %v3554, 0
        %v3637 = vsel %vm705, %v3555, 0
        %v3640 = vsel %vm705, %v3556, 0
        %v3643 = vsel %vm705, %v3557, 0
        %v3646 = vsel %vm705, %v3558, 0
        %v3649 = vsel %vm705, %v3559, 0
        %v3652 = vsel %vm705, %v3560, 0
        %v3655 = vsel %vm705, %v3561, 0
        %v3658 = vsel %vm705, %v3562, 0
        %v3661 = vsel %vm705, %v3563, 0
        %v3664 = vsel %vm705, %v3564, 0
        %v3667 = vsel %vm705, %v3565, 0
        %v3670 = vsel %vm705, %v3566, 0
        %v3673 = vsel %vm705, %v3567, 0
        %v3676 = vsel %vm705, %v3568, 0
        %v3679 = vsel %vm705, %v3569, 0
        %v3682 = vsel %vm705, %v3570, 0
        %v3685 = vsel %vm705, %v3571, 0
        %3687 = vmatprep.subr.mxu0 0.0
        %3688 = vmatpush1.msra.mxu0 0.0
        %3689 = vmatprep.subr.mxu0 0.0
        %3690 = vmatpush1.msra.mxu0 0.0
        %3691 = vmatprep.subr.mxu0 0.0
        %3692 = vmatpush1.msra.mxu0 0.0
        %3693 = vmatprep.subr.mxu0 0.0
        %3694 = vmatpush1.msra.mxu0 0.0
        %3695 = vmatprep.subr.mxu0 0.0
        %3696 = vmatpush1.msra.mxu0 %v3583
        %3697 = vmatprep.subr.mxu0 0.0
        %3698 = vmatpush1.msra.mxu0 %v3582
        %3699 = vmatprep.subr.mxu0 0.0
        %3700 = vmatpush1.msra.mxu0 %v3581
        %3701 = vmatprep.subr.mxu0 0.0
        %3702 = vmatpush1.msra.mxu0 %v3580
        %3703 = vmatprep.subr.mxu0 0.0
        %3704 = vmatpush1.msra.mxu0 %v3579
        %3705 = vmatprep.subr.mxu0 0.0
        %3706 = vmatpush1.msra.mxu0 %v3578
        %3707 = vmatprep.subr.mxu0 0.0
        %3708 = vmatpush1.msra.mxu0 %v3577
        %3709 = vmatprep.subr.mxu0 0.0
        %3710 = vmatpush1.msra.mxu0 %v3576
        %3711 = vmatprep.subr.mxu0 0.0
        %3712 = vmatpush1.msra.mxu0 %v3575
        %3713 = vmatprep.subr.mxu0 0.0
        %3714 = vmatpush1.msra.mxu0 %v3574
        %3715 = vmatprep.subr.mxu0 0.0
        %3716 = vmatpush1.msra.mxu0 %v3573
        %3717 = vmatprep.subr.mxu0 0.0
        %3718 = vmatpush1.msra.mxu0 %v3572
        %3719 = vmatprep.subr.mxu0 0.0
        %3720 = vmatpush2.msra.mxu0 0.0
        %3721 = vmatprep.subr.mxu0 0.0
        %3722 = vmatpush2.msra.mxu0 0.0
        %3723 = vmatprep.subr.mxu0 0.0
        %3724 = vmatpush2.msra.mxu0 0.0
        %3725 = vmatprep.subr.mxu0 0.0
        %3726 = vmatpush2.msra.mxu0 0.0
        %3727 = vmatprep.subr.mxu0 0.0
        %3728 = vmatpush2.msra.mxu0 0.0
        %3729 = vmatprep.subr.mxu0 0.0
        %3730 = vmatpush2.msra.mxu0 0.0
        %3731 = vmatprep.subr.mxu0 0.0
        %3732 = vmatpush2.msra.mxu0 0.0
        %3733 = vmatprep.subr.mxu0 0.0
        %3734 = vmatpush2.msra.mxu0 0.0
        %3735 = vmatprep.subr.mxu0 0.0
        %3736 = vmatpush2.msra.mxu0 0.0
        %3737 = vmatprep.subr.mxu0 0.0
        %3738 = vmatpush2.msra.mxu0 0.0
        %3739 = vmatprep.subr.mxu0 0.0
        %3740 = vmatpush2.msra.mxu0 0.0
        %3741 = vmatprep.subr.mxu0 0.0
        %3742 = vmatpush2.msra.mxu0 0.0
        %3743 = vmatprep.subr.mxu0 0.0
        %3744 = vmatpush2.msra.mxu0 0.0
        %3745 = vmatprep.subr.mxu0 0.0
        %3746 = vmatpush2.msra.mxu0 0.0
        %3747 = vmatprep.subr.mxu0 0.0
        %3748 = vmatpush2.msra.mxu0 0.0
        %3749 = vmatprep.subr.mxu0 0.0
        %3750 = vmatpush2.msra.mxu0 0.0
        %3751 = vmatprep.mubr.f32.mxu0 0.0
        %3752 = vmatmul.mubr.f32.gmra.mxu0 %v3592
        %v3753 = vpop.f32.mrf.mxu0
        %v3754 = vadd.f32 %v3589, %v3753
        %v3755 = vpop.f32.mrf.mxu0
        %3756 = vmatprep.mubr.f32.mxu0 0.0
        %3757 = vmatmul.mubr.f32.gmra.mxu0 %v3595
        %v3758 = vpop.f32.mrf.mxu0
        %v3759 = vadd.f32 %v3589, %v3758
        %v3760 = vpop.f32.mrf.mxu0
        %3761 = vmatprep.mubr.f32.mxu0 0.0
        %3762 = vmatmul.mubr.f32.gmra.mxu0 %v3598
        %v3763 = vpop.f32.mrf.mxu0
        %v3764 = vadd.f32 %v3589, %v3763
        %v3765 = vpop.f32.mrf.mxu0
        %3766 = vmatprep.mubr.f32.mxu0 0.0
        %3767 = vmatmul.mubr.f32.gmra.mxu0 %v3601
        %v3768 = vpop.f32.mrf.mxu0
        %v3769 = vadd.f32 %v3589, %v3768
        %v3770 = vpop.f32.mrf.mxu0
        %3771 = vmatprep.mubr.f32.mxu0 0.0
        %3772 = vmatmul.mubr.f32.gmra.mxu0 %v3604
        %v3773 = vpop.f32.mrf.mxu0
        %v3774 = vadd.f32 %v3589, %v3773
        %v3775 = vpop.f32.mrf.mxu0
        %3776 = vmatprep.mubr.f32.mxu0 0.0
        %3777 = vmatmul.mubr.f32.gmra.mxu0 %v3607
        %v3778 = vpop.f32.mrf.mxu0
        %v3779 = vadd.f32 %v3589, %v3778
        %v3780 = vpop.f32.mrf.mxu0
        %3781 = vmatprep.mubr.f32.mxu0 0.0
        %3782 = vmatmul.mubr.f32.gmra.mxu0 %v3610
        %v3783 = vpop.f32.mrf.mxu0
        %v3784 = vadd.f32 %v3589, %v3783
        %v3785 = vpop.f32.mrf.mxu0
        %3786 = vmatprep.mubr.f32.mxu0 0.0
        %3787 = vmatmul.mubr.f32.gmra.mxu0 %v3613
        %v3788 = vpop.f32.mrf.mxu0
        %v3789 = vadd.f32 %v3589, %v3788
        %v3790 = vpop.f32.mrf.mxu0
        %3791 = vmatprep.mubr.f32.mxu0 0.0
        %3792 = vmatmul.mubr.f32.gmra.mxu0 %v3616
        %v3793 = vpop.f32.mrf.mxu0
        %v3794 = vadd.f32 %v3589, %v3793
        %v3795 = vpop.f32.mrf.mxu0
        %3796 = vmatprep.mubr.f32.mxu0 0.0
        %3797 = vmatmul.mubr.f32.gmra.mxu0 %v3619
        %v3798 = vpop.f32.mrf.mxu0
        %v3799 = vadd.f32 %v3589, %v3798
        %v3800 = vpop.f32.mrf.mxu0
        %3801 = vmatprep.mubr.f32.mxu0 0.0
        %3802 = vmatmul.mubr.f32.gmra.mxu0 %v3622
        %v3803 = vpop.f32.mrf.mxu0
        %v3804 = vadd.f32 %v3589, %v3803
        %v3805 = vpop.f32.mrf.mxu0
        %3806 = vmatprep.mubr.f32.mxu0 0.0
        %3807 = vmatmul.mubr.f32.gmra.mxu0 %v3625
        %v3808 = vpop.f32.mrf.mxu0
        %v3809 = vadd.f32 %v3589, %v3808
        %v3810 = vpop.f32.mrf.mxu0
        %3811 = vmatprep.mubr.f32.mxu0 0.0
        %3812 = vmatmul.mubr.f32.gmra.mxu0 %v3628
        %v3813 = vpop.f32.mrf.mxu0
        %v3814 = vadd.f32 %v3589, %v3813
        %v3815 = vpop.f32.mrf.mxu0
        %3816 = vmatprep.mubr.f32.mxu0 0.0
        %3817 = vmatmul.mubr.f32.gmra.mxu0 %v3631
        %v3818 = vpop.f32.mrf.mxu0
        %v3819 = vadd.f32 %v3589, %v3818
        %v3820 = vpop.f32.mrf.mxu0
        %3821 = vmatprep.mubr.f32.mxu0 0.0
        %3822 = vmatmul.mubr.f32.gmra.mxu0 %v3634
        %v3823 = vpop.f32.mrf.mxu0
        %v3824 = vadd.f32 %v3589, %v3823
        %v3825 = vpop.f32.mrf.mxu0
        %3826 = vmatprep.mubr.f32.mxu0 0.0
        %3827 = vmatmul.mubr.f32.gmra.mxu0 %v3637
        %v3828 = vpop.f32.mrf.mxu0
        %v3829 = vadd.f32 %v3589, %v3828
        %v3830 = vpop.f32.mrf.mxu0
        %3831 = vmatprep.mubr.f32.mxu0 0.0
        %3832 = vmatmul.mubr.f32.gmra.mxu0 %v3640
        %v3833 = vpop.f32.mrf.mxu0
        %v3834 = vadd.f32 %v3589, %v3833
        %v3835 = vpop.f32.mrf.mxu0
        %3836 = vmatprep.mubr.f32.mxu0 0.0
        %3837 = vmatmul.mubr.f32.gmra.mxu0 %v3643
        %v3838 = vpop.f32.mrf.mxu0
        %v3839 = vadd.f32 %v3589, %v3838
        %v3840 = vpop.f32.mrf.mxu0
        %3841 = vmatprep.mubr.f32.mxu0 0.0
        %3842 = vmatmul.mubr.f32.gmra.mxu0 %v3646
        %v3843 = vpop.f32.mrf.mxu0
        %v3844 = vadd.f32 %v3589, %v3843
        %v3845 = vpop.f32.mrf.mxu0
        %3846 = vmatprep.mubr.f32.mxu0 0.0
        %3847 = vmatmul.mubr.f32.gmra.mxu0 %v3649
        %v3848 = vpop.f32.mrf.mxu0
        %v3849 = vadd.f32 %v3589, %v3848
        %v3850 = vpop.f32.mrf.mxu0
        %3851 = vmatprep.mubr.f32.mxu0 0.0
        %3852 = vmatmul.mubr.f32.gmra.mxu0 %v3652
        %v3853 = vpop.f32.mrf.mxu0
        %v3854 = vadd.f32 %v3589, %v3853
        %v3855 = vpop.f32.mrf.mxu0
        %3856 = vmatprep.mubr.f32.mxu0 0.0
        %3857 = vmatmul.mubr.f32.gmra.mxu0 %v3655
        %v3858 = vpop.f32.mrf.mxu0
        %v3859 = vadd.f32 %v3589, %v3858
        %v3860 = vpop.f32.mrf.mxu0
        %3861 = vmatprep.mubr.f32.mxu0 0.0
        %3862 = vmatmul.mubr.f32.gmra.mxu0 %v3658
        %v3863 = vpop.f32.mrf.mxu0
        %v3864 = vadd.f32 %v3589, %v3863
        %v3865 = vpop.f32.mrf.mxu0
        %3866 = vmatprep.mubr.f32.mxu0 0.0
        %3867 = vmatmul.mubr.f32.gmra.mxu0 %v3661
        %v3868 = vpop.f32.mrf.mxu0
        %v3869 = vadd.f32 %v3589, %v3868
        %v3870 = vpop.f32.mrf.mxu0
        %3871 = vmatprep.mubr.f32.mxu0 0.0
        %3872 = vmatmul.mubr.f32.gmra.mxu0 %v3664
        %v3873 = vpop.f32.mrf.mxu0
        %v3874 = vadd.f32 %v3589, %v3873
        %v3875 = vpop.f32.mrf.mxu0
        %3876 = vmatprep.mubr.f32.mxu0 0.0
        %3877 = vmatmul.mubr.f32.gmra.mxu0 %v3667
        %v3878 = vpop.f32.mrf.mxu0
        %v3879 = vadd.f32 %v3589, %v3878
        %v3880 = vpop.f32.mrf.mxu0
        %3881 = vmatprep.mubr.f32.mxu0 0.0
        %3882 = vmatmul.mubr.f32.gmra.mxu0 %v3670
        %v3883 = vpop.f32.mrf.mxu0
        %v3884 = vadd.f32 %v3589, %v3883
        %v3885 = vpop.f32.mrf.mxu0
        %3886 = vmatprep.mubr.f32.mxu0 0.0
        %3887 = vmatmul.mubr.f32.gmra.mxu0 %v3673
        %v3888 = vpop.f32.mrf.mxu0
        %v3889 = vadd.f32 %v3589, %v3888
        %v3890 = vpop.f32.mrf.mxu0
        %3891 = vmatprep.mubr.f32.mxu0 0.0
        %3892 = vmatmul.mubr.f32.gmra.mxu0 %v3676
        %v3893 = vpop.f32.mrf.mxu0
        %v3894 = vadd.f32 %v3589, %v3893
        %v3895 = vpop.f32.mrf.mxu0
        %3896 = vmatprep.mubr.f32.mxu0 0.0
        %3897 = vmatmul.mubr.f32.gmra.mxu0 %v3679
        %v3898 = vpop.f32.mrf.mxu0
        %v3899 = vadd.f32 %v3589, %v3898
        %v3900 = vpop.f32.mrf.mxu0
        %3901 = vmatprep.mubr.f32.mxu0 0.0
        %3902 = vmatmul.mubr.f32.gmra.mxu0 %v3682
        %v3903 = vpop.f32.mrf.mxu0
        %v3904 = vadd.f32 %v3589, %v3903
        %v3905 = vpop.f32.mrf.mxu0
        %3906 = vmatprep.mubr.f32.mxu0 0.0
        %3907 = vmatmul.mubr.f32.gmra.mxu0 %v3685
        %v3908 = vpop.f32.mrf.mxu0
        %v3909 = vadd.f32 %v3589, %v3908
        %v3910 = vpop.f32.mrf.mxu0
        %3911 = vdwg.mxu0
        %v3912 = vand.u32 %v785, 31
        %v3913 = vand.u32 %v786, 31
        %v3914 = vand.u32 %v1025, 31
        %v3915 = vand.u32 %v1026, 31
        %v3916 = vand.u32 %v1342, 31
        %v3917 = vand.u32 %v1343, 31
        %v3918 = vand.u32 %v1344, 31
        %v3919 = vand.u32 %v1345, 31
        %v3920 = vand.u32 %v1825, 31
        %v3921 = vand.u32 %v1826, 31
        %v3922 = vand.u32 %v1827, 31
        %v3923 = vand.u32 %v1828, 31
        %v3924 = vand.u32 %v1829, 31
        %v3925 = vand.u32 %v1830, 31
        %v3926 = vand.u32 %v1831, 31
        %v3927 = vand.u32 %v1832, 31
        %v3928 = vand.u32 %v2592, 31
        %v3929 = vand.u32 %v2593, 31
        %v3930 = vand.u32 %v2594, 31
        %v3931 = vand.u32 %v2595, 31
        %v3932 = vand.u32 %v2596, 31
        %v3933 = vand.u32 %v2597, 31
        %v3934 = vand.u32 %v2598, 31
        %v3935 = vand.u32 %v2599, 31
        %v3936 = vand.u32 %v2600, 31
        %v3937 = vand.u32 %v2601, 31
        %v3938 = vand.u32 %v2602, 31
        %v3939 = vand.u32 %v2603, 31
        %v3940 = vand.u32 %v2604, 31
        %v3941 = vand.u32 %v2605, 31
        %v3942 = vand.u32 %v2606, 31
        %v3943 = vand.u32 %v2607, 31
        %v3944 = vshra.s32 %v788, 1
        %vm3945 = vcmp.eq.s32.totalorder %v3912, %v3944
        %vm3946 = vcmp.eq.s32.totalorder %v3913, %v3944
        %vm3947 = vcmp.eq.s32.totalorder %v3914, %v3944
        %vm3948 = vcmp.eq.s32.totalorder %v3915, %v3944
        %vm3949 = vcmp.eq.s32.totalorder %v3916, %v3944
        %vm3950 = vcmp.eq.s32.totalorder %v3917, %v3944
        %vm3951 = vcmp.eq.s32.totalorder %v3918, %v3944
        %vm3952 = vcmp.eq.s32.totalorder %v3919, %v3944
        %vm3953 = vcmp.eq.s32.totalorder %v3920, %v3944
        %vm3954 = vcmp.eq.s32.totalorder %v3921, %v3944
        %vm3955 = vcmp.eq.s32.totalorder %v3922, %v3944
        %vm3956 = vcmp.eq.s32.totalorder %v3923, %v3944
        %vm3957 = vcmp.eq.s32.totalorder %v3924, %v3944
        %vm3958 = vcmp.eq.s32.totalorder %v3925, %v3944
        %vm3959 = vcmp.eq.s32.totalorder %v3926, %v3944
        %vm3960 = vcmp.eq.s32.totalorder %v3927, %v3944
        %vm3961 = vcmp.eq.s32.totalorder %v3928, %v3944
        %vm3962 = vcmp.eq.s32.totalorder %v3929, %v3944
        %vm3963 = vcmp.eq.s32.totalorder %v3930, %v3944
        %vm3964 = vcmp.eq.s32.totalorder %v3931, %v3944
        %vm3965 = vcmp.eq.s32.totalorder %v3932, %v3944
        %vm3966 = vcmp.eq.s32.totalorder %v3933, %v3944
        %vm3967 = vcmp.eq.s32.totalorder %v3934, %v3944
        %vm3968 = vcmp.eq.s32.totalorder %v3935, %v3944
        %vm3969 = vcmp.eq.s32.totalorder %v3936, %v3944
        %vm3970 = vcmp.eq.s32.totalorder %v3937, %v3944
        %vm3971 = vcmp.eq.s32.totalorder %v3938, %v3944
        %vm3972 = vcmp.eq.s32.totalorder %v3939, %v3944
        %vm3973 = vcmp.eq.s32.totalorder %v3940, %v3944
        %vm3974 = vcmp.eq.s32.totalorder %v3941, %v3944
        %vm3975 = vcmp.eq.s32.totalorder %v3942, %v3944
        %vm3976 = vcmp.eq.s32.totalorder %v3943, %v3944
        %v3977 = vand.u32 %v788, 1
        %vm3978 = vcmp.eq.s32.totalorder %v3977, 0
        %3980 = vset.pattern.permute.xlu0 0
        %3981 = vperm.xlu0 %3980, %v3754
        %v3982 = vpop.permute.xlu0 %3981
        %3985 = vset.pattern.permute.xlu0 0
        %3986 = vperm.xlu0 %3985, %v3759
        %v3987 = vpop.permute.xlu0 %3986
        %3990 = vset.pattern.permute.xlu0 0
        %3991 = vperm.xlu0 %3990, %v3764
        %v3992 = vpop.permute.xlu0 %3991
        %3995 = vset.pattern.permute.xlu0 0
        %3996 = vperm.xlu0 %3995, %v3769
        %v3997 = vpop.permute.xlu0 %3996
        %4000 = vset.pattern.permute.xlu0 0
        %4001 = vperm.xlu0 %4000, %v3774
        %v4002 = vpop.permute.xlu0 %4001
        %4005 = vset.pattern.permute.xlu0 0
        %4006 = vperm.xlu0 %4005, %v3779
        %v4007 = vpop.permute.xlu0 %4006
        %4010 = vset.pattern.permute.xlu0 0
        %4011 = vperm.xlu0 %4010, %v3784
        %v4012 = vpop.permute.xlu0 %4011
        %4015 = vset.pattern.permute.xlu0 0
        %4016 = vperm.xlu0 %4015, %v3789
        %v4017 = vpop.permute.xlu0 %4016
        %4020 = vset.pattern.permute.xlu0 0
        %4021 = vperm.xlu0 %4020, %v3794
        %v4022 = vpop.permute.xlu0 %4021
        %4025 = vset.pattern.permute.xlu0 0
        %4026 = vperm.xlu0 %4025, %v3799
        %v4027 = vpop.permute.xlu0 %4026
        %4030 = vset.pattern.permute.xlu0 0
        %4031 = vperm.xlu0 %4030, %v3804
        %v4032 = vpop.permute.xlu0 %4031
        %4035 = vset.pattern.permute.xlu0 0
        %4036 = vperm.xlu0 %4035, %v3809
        %v4037 = vpop.permute.xlu0 %4036
        %4040 = vset.pattern.permute.xlu0 0
        %4041 = vperm.xlu0 %4040, %v3814
        %v4042 = vpop.permute.xlu0 %4041
        %4045 = vset.pattern.permute.xlu0 0
        %4046 = vperm.xlu0 %4045, %v3819
        %v4047 = vpop.permute.xlu0 %4046
        %4050 = vset.pattern.permute.xlu0 0
        %4051 = vperm.xlu0 %4050, %v3824
        %v4052 = vpop.permute.xlu0 %4051
        %4055 = vset.pattern.permute.xlu0 0
        %4056 = vperm.xlu0 %4055, %v3829
        %v4057 = vpop.permute.xlu0 %4056
        %4060 = vset.pattern.permute.xlu0 0
        %4061 = vperm.xlu0 %4060, %v3834
        %v4062 = vpop.permute.xlu0 %4061
        %4065 = vset.pattern.permute.xlu0 0
        %4066 = vperm.xlu0 %4065, %v3839
        %v4067 = vpop.permute.xlu0 %4066
        %4070 = vset.pattern.permute.xlu0 0
        %4071 = vperm.xlu0 %4070, %v3844
        %v4072 = vpop.permute.xlu0 %4071
        %4075 = vset.pattern.permute.xlu0 0
        %4076 = vperm.xlu0 %4075, %v3849
        %v4077 = vpop.permute.xlu0 %4076
        %4080 = vset.pattern.permute.xlu0 0
        %4081 = vperm.xlu0 %4080, %v3854
        %v4082 = vpop.permute.xlu0 %4081
        %4085 = vset.pattern.permute.xlu0 0
        %4086 = vperm.xlu0 %4085, %v3859
        %v4087 = vpop.permute.xlu0 %4086
        %4090 = vset.pattern.permute.xlu0 0
        %4091 = vperm.xlu0 %4090, %v3864
        %v4092 = vpop.permute.xlu0 %4091
        %4095 = vset.pattern.permute.xlu0 0
        %4096 = vperm.xlu0 %4095, %v3869
        %v4097 = vpop.permute.xlu0 %4096
        %4100 = vset.pattern.permute.xlu0 0
        %4101 = vperm.xlu0 %4100, %v3874
        %v4102 = vpop.permute.xlu0 %4101
        %4105 = vset.pattern.permute.xlu0 0
        %4106 = vperm.xlu0 %4105, %v3879
        %v4107 = vpop.permute.xlu0 %4106
        %4110 = vset.pattern.permute.xlu0 0
        %4111 = vperm.xlu0 %4110, %v3884
        %v4112 = vpop.permute.xlu0 %4111
        %4115 = vset.pattern.permute.xlu0 0
        %4116 = vperm.xlu0 %4115, %v3889
        %v4117 = vpop.permute.xlu0 %4116
        %4120 = vset.pattern.permute.xlu0 0
        %4121 = vperm.xlu0 %4120, %v3894
        %v4122 = vpop.permute.xlu0 %4121
        %4125 = vset.pattern.permute.xlu0 0
        %4126 = vperm.xlu0 %4125, %v3899
        %v4127 = vpop.permute.xlu0 %4126
        %4130 = vset.pattern.permute.xlu0 0
        %4131 = vperm.xlu0 %4130, %v3904
        %v4132 = vpop.permute.xlu0 %4131
        %4135 = vset.pattern.permute.xlu0 0
        %4136 = vperm.xlu0 %4135, %v3909
        %v4137 = vpop.permute.xlu0 %4136
        %4139 = vset.pattern.permute.xlu0 1
        %4140 = vperm.xlu0 %4139, %v3754
        %v4141 = vpop.permute.xlu0 %4140
        %4143 = vset.pattern.permute.xlu0 1
        %4144 = vperm.xlu0 %4143, %v3759
        %v4145 = vpop.permute.xlu0 %4144
        %4147 = vset.pattern.permute.xlu0 1
        %4148 = vperm.xlu0 %4147, %v3764
        %v4149 = vpop.permute.xlu0 %4148
        %4151 = vset.pattern.permute.xlu0 1
        %4152 = vperm.xlu0 %4151, %v3769
        %v4153 = vpop.permute.xlu0 %4152
        %4155 = vset.pattern.permute.xlu0 1
        %4156 = vperm.xlu0 %4155, %v3774
        %v4157 = vpop.permute.xlu0 %4156
        %4159 = vset.pattern.permute.xlu0 1
        %4160 = vperm.xlu0 %4159, %v3779
        %v4161 = vpop.permute.xlu0 %4160
        %4163 = vset.pattern.permute.xlu0 1
        %4164 = vperm.xlu0 %4163, %v3784
        %v4165 = vpop.permute.xlu0 %4164
        %4167 = vset.pattern.permute.xlu0 1
        %4168 = vperm.xlu0 %4167, %v3789
        %v4169 = vpop.permute.xlu0 %4168
        %4171 = vset.pattern.permute.xlu0 1
        %4172 = vperm.xlu0 %4171, %v3794
        %v4173 = vpop.permute.xlu0 %4172
        %4175 = vset.pattern.permute.xlu0 1
        %4176 = vperm.xlu0 %4175, %v3799
        %v4177 = vpop.permute.xlu0 %4176
        %4179 = vset.pattern.permute.xlu0 1
        %4180 = vperm.xlu0 %4179, %v3804
        %v4181 = vpop.permute.xlu0 %4180
        %4183 = vset.pattern.permute.xlu0 1
        %4184 = vperm.xlu0 %4183, %v3809
        %v4185 = vpop.permute.xlu0 %4184
        %4187 = vset.pattern.permute.xlu0 1
        %4188 = vperm.xlu0 %4187, %v3814
        %v4189 = vpop.permute.xlu0 %4188
        %4191 = vset.pattern.permute.xlu0 1
        %4192 = vperm.xlu0 %4191, %v3819
        %v4193 = vpop.permute.xlu0 %4192
        %4195 = vset.pattern.permute.xlu0 1
        %4196 = vperm.xlu0 %4195, %v3824
        %v4197 = vpop.permute.xlu0 %4196
        %4199 = vset.pattern.permute.xlu0 1
        %4200 = vperm.xlu0 %4199, %v3829
        %v4201 = vpop.permute.xlu0 %4200
        %4203 = vset.pattern.permute.xlu0 1
        %4204 = vperm.xlu0 %4203, %v3834
        %v4205 = vpop.permute.xlu0 %4204
        %4207 = vset.pattern.permute.xlu0 1
        %4208 = vperm.xlu0 %4207, %v3839
        %v4209 = vpop.permute.xlu0 %4208
        %4211 = vset.pattern.permute.xlu0 1
        %4212 = vperm.xlu0 %4211, %v3844
        %v4213 = vpop.permute.xlu0 %4212
        %4215 = vset.pattern.permute.xlu0 1
        %4216 = vperm.xlu0 %4215, %v3849
        %v4217 = vpop.permute.xlu0 %4216
        %4219 = vset.pattern.permute.xlu0 1
        %4220 = vperm.xlu0 %4219, %v3854
        %v4221 = vpop.permute.xlu0 %4220
        %4223 = vset.pattern.permute.xlu0 1
        %4224 = vperm.xlu0 %4223, %v3859
        %v4225 = vpop.permute.xlu0 %4224
        %4227 = vset.pattern.permute.xlu0 1
        %4228 = vperm.xlu0 %4227, %v3864
        %v4229 = vpop.permute.xlu0 %4228
        %4231 = vset.pattern.permute.xlu0 1
        %4232 = vperm.xlu0 %4231, %v3869
        %v4233 = vpop.permute.xlu0 %4232
        %4235 = vset.pattern.permute.xlu0 1
        %4236 = vperm.xlu0 %4235, %v3874
        %v4237 = vpop.permute.xlu0 %4236
        %4239 = vset.pattern.permute.xlu0 1
        %4240 = vperm.xlu0 %4239, %v3879
        %v4241 = vpop.permute.xlu0 %4240
        %4243 = vset.pattern.permute.xlu0 1
        %4244 = vperm.xlu0 %4243, %v3884
        %v4245 = vpop.permute.xlu0 %4244
        %4247 = vset.pattern.permute.xlu0 1
        %4248 = vperm.xlu0 %4247, %v3889
        %v4249 = vpop.permute.xlu0 %4248
        %4251 = vset.pattern.permute.xlu0 1
        %4252 = vperm.xlu0 %4251, %v3894
        %v4253 = vpop.permute.xlu0 %4252
        %4255 = vset.pattern.permute.xlu0 1
        %4256 = vperm.xlu0 %4255, %v3899
        %v4257 = vpop.permute.xlu0 %4256
        %4259 = vset.pattern.permute.xlu0 1
        %4260 = vperm.xlu0 %4259, %v3904
        %v4261 = vpop.permute.xlu0 %4260
        %4263 = vset.pattern.permute.xlu0 1
        %4264 = vperm.xlu0 %4263, %v3909
        %v4265 = vpop.permute.xlu0 %4264
        %v4267 = vsel %vm3978, %v3982, %v4141
        %v4268 = vsel %vm3978, %v3987, %v4145
        %v4269 = vsel %vm3978, %v3992, %v4149
        %v4270 = vsel %vm3978, %v3997, %v4153
        %v4271 = vsel %vm3978, %v4002, %v4157
        %v4272 = vsel %vm3978, %v4007, %v4161
        %v4273 = vsel %vm3978, %v4012, %v4165
        %v4274 = vsel %vm3978, %v4017, %v4169
        %v4275 = vsel %vm3978, %v4022, %v4173
        %v4276 = vsel %vm3978, %v4027, %v4177
        %v4277 = vsel %vm3978, %v4032, %v4181
        %v4278 = vsel %vm3978, %v4037, %v4185
        %v4279 = vsel %vm3978, %v4042, %v4189
        %v4280 = vsel %vm3978, %v4047, %v4193
        %v4281 = vsel %vm3978, %v4052, %v4197
        %v4282 = vsel %vm3978, %v4057, %v4201
        %v4283 = vsel %vm3978, %v4062, %v4205
        %v4284 = vsel %vm3978, %v4067, %v4209
        %v4285 = vsel %vm3978, %v4072, %v4213
        %v4286 = vsel %vm3978, %v4077, %v4217
        %v4287 = vsel %vm3978, %v4082, %v4221
        %v4288 = vsel %vm3978, %v4087, %v4225
        %v4289 = vsel %vm3978, %v4092, %v4229
        %v4290 = vsel %vm3978, %v4097, %v4233
        %v4291 = vsel %vm3978, %v4102, %v4237
        %v4292 = vsel %vm3978, %v4107, %v4241
        %v4293 = vsel %vm3978, %v4112, %v4245
        %v4294 = vsel %vm3978, %v4117, %v4249
        %v4295 = vsel %vm3978, %v4122, %v4253
        %v4296 = vsel %vm3978, %v4127, %v4257
        %v4297 = vsel %vm3978, %v4132, %v4261
        %v4298 = vsel %vm3978, %v4137, %v4265
        %v4299 = vsel %vm3945, %v4267, 0.0
        %v4300 = vsel %vm3946, %v4268, 0.0
        %v4301 = vsel %vm3947, %v4269, 0.0
        %v4302 = vsel %vm3948, %v4270, 0.0
        %v4303 = vsel %vm3949, %v4271, 0.0
        %v4304 = vsel %vm3950, %v4272, 0.0
        %v4305 = vsel %vm3951, %v4273, 0.0
        %v4306 = vsel %vm3952, %v4274, 0.0
        %v4307 = vsel %vm3953, %v4275, 0.0
        %v4308 = vsel %vm3954, %v4276, 0.0
        %v4309 = vsel %vm3955, %v4277, 0.0
        %v4310 = vsel %vm3956, %v4278, 0.0
        %v4311 = vsel %vm3957, %v4279, 0.0
        %v4312 = vsel %vm3958, %v4280, 0.0
        %v4313 = vsel %vm3959, %v4281, 0.0
        %v4314 = vsel %vm3960, %v4282, 0.0
        %v4315 = vsel %vm3961, %v4283, 0.0
        %v4316 = vsel %vm3962, %v4284, 0.0
        %v4317 = vsel %vm3963, %v4285, 0.0
        %v4318 = vsel %vm3964, %v4286, 0.0
        %v4319 = vsel %vm3965, %v4287, 0.0
        %v4320 = vsel %vm3966, %v4288, 0.0
        %v4321 = vsel %vm3967, %v4289, 0.0
        %v4322 = vsel %vm3968, %v4290, 0.0
        %v4323 = vsel %vm3969, %v4291, 0.0
        %v4324 = vsel %vm3970, %v4292, 0.0
        %v4325 = vsel %vm3971, %v4293, 0.0
        %v4326 = vsel %vm3972, %v4294, 0.0
        %v4327 = vsel %vm3973, %v4295, 0.0
        %v4328 = vsel %vm3974, %v4296, 0.0
        %v4329 = vsel %vm3975, %v4297, 0.0
        %v4330 = vsel %vm3976, %v4298, 0.0
        %v4331 = vshra.s32 %v788, 5
        %v4332 = vshra.s32 %v2608, 5
        %vm4333 = vcmp.eq.s32.totalorder %v4331, %v785
        %vm4334 = vcmp.eq.s32.totalorder %v4332, %v785
        %v4335 = vsel %vm4333, 1, 0
        %v4336 = vsel %vm4334, 1, 0
        %v4337 = vcvt.s32.f32 %v4335
        %v4338 = vcvt.s32.f32 %v4336
        %4339 = vmatprep.subr.mxu0 0.0
        %4340 = vmatpush1.msra.mxu0 %v4314
        %4341 = vmatprep.subr.mxu0 0.0
        %4342 = vmatpush1.msra.mxu0 %v4313
        %4343 = vmatprep.subr.mxu0 0.0
        %4344 = vmatpush1.msra.mxu0 %v4312
        %4345 = vmatprep.subr.mxu0 0.0
        %4346 = vmatpush1.msra.mxu0 %v4311
        %4347 = vmatprep.subr.mxu0 0.0
        %4348 = vmatpush1.msra.mxu0 %v4310
        %4349 = vmatprep.subr.mxu0 0.0
        %4350 = vmatpush1.msra.mxu0 %v4309
        %4351 = vmatprep.subr.mxu0 0.0
        %4352 = vmatpush1.msra.mxu0 %v4308
        %4353 = vmatprep.subr.mxu0 0.0
        %4354 = vmatpush1.msra.mxu0 %v4307
        %4355 = vmatprep.subr.mxu0 0.0
        %4356 = vmatpush1.msra.mxu0 %v4306
        %4357 = vmatprep.subr.mxu0 0.0
        %4358 = vmatpush1.msra.mxu0 %v4305
        %4359 = vmatprep.subr.mxu0 0.0
        %4360 = vmatpush1.msra.mxu0 %v4304
        %4361 = vmatprep.subr.mxu0 0.0
        %4362 = vmatpush1.msra.mxu0 %v4303
        %4363 = vmatprep.subr.mxu0 0.0
        %4364 = vmatpush1.msra.mxu0 %v4302
        %4365 = vmatprep.subr.mxu0 0.0
        %4366 = vmatpush1.msra.mxu0 %v4301
        %4367 = vmatprep.subr.mxu0 0.0
        %4368 = vmatpush1.msra.mxu0 %v4300
        %4369 = vmatprep.subr.mxu0 0.0
        %4370 = vmatpush1.msra.mxu0 %v4299
        %4371 = vmatprep.subr.mxu0 0.0
        %4372 = vmatpush2.msra.mxu0 %v4330
        %4373 = vmatprep.subr.mxu0 0.0
        %4374 = vmatpush2.msra.mxu0 %v4329
        %4375 = vmatprep.subr.mxu0 0.0
        %4376 = vmatpush2.msra.mxu0 %v4328
        %4377 = vmatprep.subr.mxu0 0.0
        %4378 = vmatpush2.msra.mxu0 %v4327
        %4379 = vmatprep.subr.mxu0 0.0
        %4380 = vmatpush2.msra.mxu0 %v4326
        %4381 = vmatprep.subr.mxu0 0.0
        %4382 = vmatpush2.msra.mxu0 %v4325
        %4383 = vmatprep.subr.mxu0 0.0
        %4384 = vmatpush2.msra.mxu0 %v4324
        %4385 = vmatprep.subr.mxu0 0.0
        %4386 = vmatpush2.msra.mxu0 %v4323
        %4387 = vmatprep.subr.mxu0 0.0
        %4388 = vmatpush2.msra.mxu0 %v4322
        %4389 = vmatprep.subr.mxu0 0.0
        %4390 = vmatpush2.msra.mxu0 %v4321
        %4391 = vmatprep.subr.mxu0 0.0
        %4392 = vmatpush2.msra.mxu0 %v4320
        %4393 = vmatprep.subr.mxu0 0.0
        %4394 = vmatpush2.msra.mxu0 %v4319
        %4395 = vmatprep.subr.mxu0 0.0
        %4396 = vmatpush2.msra.mxu0 %v4318
        %4397 = vmatprep.subr.mxu0 0.0
        %4398 = vmatpush2.msra.mxu0 %v4317
        %4399 = vmatprep.subr.mxu0 0.0
        %4400 = vmatpush2.msra.mxu0 %v4316
        %4401 = vmatprep.subr.mxu0 0.0
        %4402 = vmatpush2.msra.mxu0 %v4315
        %4403 = vmatprep.mubr.f32.mxu0 %v4338
        %4404 = vmatmul.mubr.f32.gmra.mxu0 %v4337
        %v4405 = vpop.f32.mrf.mxu0
        %v4406 = vadd.f32 0.0, %v4405
        %v4407 = vpop.f32.mrf.mxu0
        %4408 = vdwg.mxu0
        %4409 = vst.msk [vmem:[%s577] sm:$0xff] %vm684, %v4406
        %p4410 = scmp.lt.s32.totalorder %s30, 1
        %s4411 = scalar_select %p4410, %s30, 1
        %s4412 = smul.addr %s4411, 8
        %s4413 = scalar_lea.vmem %s15, %s4412
        // Predicated region
        $region105: #{_lambda_.1} parent=79 // pred_check
          %p4414 = pneg %p368
        $region106: #{_lambda_.1} parent=79 // pred_check_branch
          %4416 = sbr.rel (%p4414) target = $region108
        $region107: #{_lambda_.1} parent=79 // pred_region
          _
        $region108: #{_lambda_.1} parent=79 // pred_fallthru
          _
      $region80: #{_lambda_.1} parent=5 // pred_fallthru
        _
      %p4417 = scmp.le.s32.totalorder 2, %s25
      // Predicated region
      $region109: #{_lambda_.1} parent=5 // pred_check
        %p4418 = pneg %p4417
      $region110: #{_lambda_.1} parent=5 // pred_check_branch
        %4420 = sbr.rel (%p4418) target = $region112
      $region111: #{_lambda_.1} parent=5 // pred_region
        %s4421 = ssub.s32 %s25, 2
        // Predicated region
        $region113: #{_lambda_.1} parent=111 // pred_check
          %p4422 = pneg %p374
        $region114: #{_lambda_.1} parent=111 // pred_check_branch
          %4424 = sbr.rel (%p4422) target = $region116
        $region115: #{_lambda_.1} parent=111 // pred_region
          %p4425 = scmp.lt.s32.totalorder %s31, 1
          %s4426 = scalar_select %p4425, %s31, 1
          %s4427 = smul.addr %s4426, 8
          %s4428 = scalar_lea.vmem %s15, %s4427
        $region116: #{_lambda_.1} parent=111 // pred_fallthru
          _
      $region112: #{_lambda_.1} parent=5 // pred_fallthru
        _
    $region6: #{_lambda_.1} parent=1 // loop_footer
      %s29 = sadd.s32 1, %s25
    $region7: #{_lambda_.1} parent=1 // loop_footer_branch
      %24 = sbr.rel target = $region3
    $region8: #{_lambda_.1} parent=1 // loop_exit
      _
    %4429 = vsyncpa [#allocation3], 1
    %s4430 = scalar_lea.sflag [#allocation3], 1
    %4431 = vsyncpa %s4430, 1
    %4432 = vsyncpa [#allocation5], 1
    %4433 = vsyncpa [#allocation8], 1
    %4434 = vsyncpa [#allocation11], 1

</llo_original>
